<compile_context>
chip_gen: v7x
topology: tpu7x:2x2x1
jax: 0.10.0
libtpu: 0.0.40
codegen_flags: <defaults>
</compile_context>

<pallas_src>
import jax
import jax.numpy as jnp
from jax.experimental import pallas as pl
from jax.experimental.pallas import tpu as pltpu


def _im2col_3x3(img, H, W, C):
    """img: (H+2, W+2, C) zero-padded image.

    Returns ((H*W, 9*C) patch matrix, (H*W, C) center window).
    Column block t = dh*3 + dw holds window (dh, dw), matching HWIO weights
    flattened to (9*C_in, C_out).  The 9 windows are built once per conv and
    fused into a single lane-axis concat so the conv is a single matmul.
    """
    wins = []
    for dh in range(3):
        for dw in range(3):
            wins.append(img[dh:dh + H, dw:dw + W, :].reshape(H * W, C))
    return jnp.concatenate(wins, axis=-1), wins[4]  # wins[4] == center tap


def resblock_kernel(xpad_ref, w1_ref, b1_ref, w2_ref, b2_ref, o_ref):
    """One batch element per grid step.

    xpad_ref : (1, H+2, W+2, C)  spatially pre-padded input (NHWC)
    w1_ref   : (9*C, C)          conv1 weights (HWIO, taps flattened)
    b1_ref   : (1, C)            conv1 bias
    w2_ref   : (9*C, C)          conv2 weights (HWIO, taps flattened)
    b2_ref   : (1, C)            conv2 bias
    o_ref    : (1, H, W, C)      output (NHWC)
    """
    H, W, C = o_ref.shape[1], o_ref.shape[2], o_ref.shape[3]

    xp = xpad_ref[0]                                     # (H+2, W+2, C), input dtype

    # ---- conv1 (3x3, stride 1, pad 1): one matmul + bias + ReLU ----
    p1, x_center = _im2col_3x3(xp, H, W, C)              # (H*W, 9C), (H*W, C)
    y1 = jnp.dot(p1, w1_ref[...], preferred_element_type=jnp.float32)
    y1 = jnp.maximum(y1 + b1_ref[...].astype(jnp.float32), 0.0)   # (H*W, C) f32

    # ---- zero-pad ReLU(conv1) as an in-register value (no VMEM scratch) ----
    y1 = y1.reshape(H, W, C)
    zrow = jnp.zeros((1, W, C), jnp.float32)
    y1p = jnp.concatenate([zrow, y1, zrow], axis=0)       # (H+2, W, C)
    zcol = jnp.zeros((H + 2, 1, C), jnp.float32)
    y1p = jnp.concatenate([zcol, y1p, zcol], axis=1)      # (H+2, W+2, C)

    # ---- conv2 (3x3, stride 1, pad 1): one matmul + bias ----
    p2, _ = _im2col_3x3(y1p, H, W, C)
    y2 = jnp.dot(p2.astype(w2_ref.dtype), w2_ref[...],
                 preferred_element_type=jnp.float32)
    y2 = y2 + b2_ref[...].astype(jnp.float32)             # (H*W, C) f32

    # ---- residual: input + 0.1 * conv_stack(input) ----
    out = x_center.astype(jnp.float32) + 0.1 * y2
    o_ref[0] = out.reshape(H, W, C).astype(o_ref.dtype)


def resblock_forward(x_nchw, w1_oihw, b1, w2_oihw, b2):
    """Pallas ResBlock forward.  x_nchw: (N, C, H, W); weights in PyTorch OIHW."""
    x = jnp.transpose(x_nchw, (0, 2, 3, 1))               # NCHW -> NHWC
    N, H, W, C = x.shape
    xpad = jnp.pad(x, ((0, 0), (1, 1), (1, 1), (0, 0)))

    # OIHW -> HWIO -> (9*C_in, C_out) so each conv is a single matmul.
    w1 = jnp.transpose(w1_oihw, (2, 3, 1, 0)).reshape(9 * C, C)
    w2 = jnp.transpose(w2_oihw, (2, 3, 1, 0)).reshape(9 * C, C)
    b1r = b1.reshape(1, C)
    b2r = b2.reshape(1, C)

    out_nhwc = pl.pallas_call(
        resblock_kernel,
        out_shape=jax.ShapeDtypeStruct((N, H, W, C), x.dtype),
        grid_spec=pltpu.PrefetchScalarGridSpec(
            num_scalar_prefetch=0,
            grid=(N,),
            in_specs=[
                pl.BlockSpec((1, H + 2, W + 2, C), lambda n: (n, 0, 0, 0)),
                pl.BlockSpec((9 * C, C), lambda n: (0, 0)),   # weights resident
                pl.BlockSpec((1, C), lambda n: (0, 0)),
                pl.BlockSpec((9 * C, C), lambda n: (0, 0)),
                pl.BlockSpec((1, C), lambda n: (0, 0)),
            ],
            out_specs=pl.BlockSpec((1, H, W, C), lambda n: (n, 0, 0, 0)),
        ),
        compiler_params=pltpu.CompilerParams(
            dimension_semantics=("parallel",)),               # batch is independent
    )(xpad, w1, b1r, w2, b2r)

    return jnp.transpose(out_nhwc, (0, 3, 1, 2))              # NHWC -> NCHW


def resblock_reference(x, w1, b1, w2, b2):
    """Plain-JAX reference matching torch semantics (NCHW / OIHW)."""
    dn = ("NCHW", "OIHW", "NCHW")
    y = jax.lax.conv_general_dilated(x, w1, (1, 1), ((1, 1), (1, 1)),
                                     dimension_numbers=dn)
    y = y + b1[None, :, None, None]
    y = jnp.maximum(y, 0.0)
    y = jax.lax.conv_general_dilated(y, w2, (1, 1), ((1, 1), (1, 1)),
                                     dimension_numbers=dn)
    y = y + b2[None, :, None, None]
    return x + 0.1 * y


if __name__ == "__main__":
    N, DIM, H, W = 2, 4, 16, 16

    key = jax.random.PRNGKey(0)
    kx, kw1, kb1, kw2, kb2 = jax.random.split(key, 5)

    x = jax.random.normal(kx, (N, DIM, H, W), dtype=jnp.float32)
    # Deterministic synthetic parameters (shapes match nn.Conv2d(DIM, DIM, 3)).
    w1 = 0.1 * jax.random.normal(kw1, (DIM, DIM, 3, 3), dtype=jnp.float32)
    b1 = 0.1 * jax.random.normal(kb1, (DIM,), dtype=jnp.float32)
    w2 = 0.1 * jax.random.normal(kw2, (DIM, DIM, 3, 3), dtype=jnp.float32)
    b2 = 0.1 * jax.random.normal(kb2, (DIM,), dtype=jnp.float32)

    out = resblock_forward(x, w1, b1, w2, b2)
    out = jax.block_until_ready(out)

    ref = resblock_reference(x, w1, b1, w2, b2)
    assert out.shape == ref.shape == (N, DIM, H, W)
    err = jnp.max(jnp.abs(out - ref))
    assert jnp.allclose(out, ref, rtol=1e-4, atol=1e-4), f"max abs err {err}"

    print("KERNEL_OK")
</pallas_src>

<mosaic_0001>
module attributes {stable_mosaic.version = 11 : i64} {
  func.func @resblock_kernel(%arg0: i32, %arg1: memref<1x18x18x4xf32, #tpu.memory_space<vmem>>, %arg2: memref<36x4xf32, #tpu.memory_space<vmem>>, %arg3: memref<1x4xf32, #tpu.memory_space<vmem>>, %arg4: memref<36x4xf32, #tpu.memory_space<vmem>>, %arg5: memref<1x4xf32, #tpu.memory_space<vmem>>, %arg6: memref<1x16x16x4xf32, #tpu.memory_space<vmem>>) attributes {dimension_semantics = [#tpu.dimension_semantics<parallel>], iteration_bounds = array<i64: 2>, scalar_prefetch = 0 : i64, scratch_operands = 0 : i64, tpu.core_type = #tpu.core_type<tc>, window_params = [{transform_indices = @transform_0, window_bounds = array<i64: 1, 18, 18, 4>}, {pipeline_mode = #tpu.pipeline_mode<synchronous>, transform_indices = @transform_1, window_bounds = array<i64: 36, 4>}, {pipeline_mode = #tpu.pipeline_mode<synchronous>, transform_indices = @transform_2, window_bounds = array<i64: 1, 4>}, {pipeline_mode = #tpu.pipeline_mode<synchronous>, transform_indices = @transform_3, window_bounds = array<i64: 36, 4>}, {pipeline_mode = #tpu.pipeline_mode<synchronous>, transform_indices = @transform_4, window_bounds = array<i64: 1, 4>}, {transform_indices = @transform_5, window_bounds = array<i64: 1, 16, 16, 4>}]} {
    %c0 = arith.constant 0 : index
    %c0_0 = arith.constant 0 : index
    %c0_1 = arith.constant 0 : index
    %c0_2 = arith.constant 0 : index
    %0 = vector.load %arg1[%c0, %c0_0, %c0_1, %c0_2] : memref<1x18x18x4xf32, #tpu.memory_space<vmem>>, vector<1x18x18x4xf32>
    %1 = vector.shape_cast %0 : vector<1x18x18x4xf32> to vector<18x18x4xf32>
    %2 = vector.extract_strided_slice %1 {offsets = [0, 0, 0], sizes = [16, 16, 4], strides = [1, 1, 1]} : vector<18x18x4xf32> to vector<16x16x4xf32>
    %3 = vector.shape_cast %2 : vector<16x16x4xf32> to vector<256x4xf32>
    %4 = vector.extract_strided_slice %1 {offsets = [0, 1, 0], sizes = [16, 16, 4], strides = [1, 1, 1]} : vector<18x18x4xf32> to vector<16x16x4xf32>
    %5 = vector.shape_cast %4 : vector<16x16x4xf32> to vector<256x4xf32>
    %6 = vector.extract_strided_slice %1 {offsets = [0, 2, 0], sizes = [16, 16, 4], strides = [1, 1, 1]} : vector<18x18x4xf32> to vector<16x16x4xf32>
    %7 = vector.shape_cast %6 : vector<16x16x4xf32> to vector<256x4xf32>
    %8 = vector.extract_strided_slice %1 {offsets = [1, 0, 0], sizes = [16, 16, 4], strides = [1, 1, 1]} : vector<18x18x4xf32> to vector<16x16x4xf32>
    %9 = vector.shape_cast %8 : vector<16x16x4xf32> to vector<256x4xf32>
    %10 = vector.extract_strided_slice %1 {offsets = [1, 1, 0], sizes = [16, 16, 4], strides = [1, 1, 1]} : vector<18x18x4xf32> to vector<16x16x4xf32>
    %11 = vector.shape_cast %10 : vector<16x16x4xf32> to vector<256x4xf32>
    %12 = vector.extract_strided_slice %1 {offsets = [1, 2, 0], sizes = [16, 16, 4], strides = [1, 1, 1]} : vector<18x18x4xf32> to vector<16x16x4xf32>
    %13 = vector.shape_cast %12 : vector<16x16x4xf32> to vector<256x4xf32>
    %14 = vector.extract_strided_slice %1 {offsets = [2, 0, 0], sizes = [16, 16, 4], strides = [1, 1, 1]} : vector<18x18x4xf32> to vector<16x16x4xf32>
    %15 = vector.shape_cast %14 : vector<16x16x4xf32> to vector<256x4xf32>
    %16 = vector.extract_strided_slice %1 {offsets = [2, 1, 0], sizes = [16, 16, 4], strides = [1, 1, 1]} : vector<18x18x4xf32> to vector<16x16x4xf32>
    %17 = vector.shape_cast %16 : vector<16x16x4xf32> to vector<256x4xf32>
    %18 = vector.extract_strided_slice %1 {offsets = [2, 2, 0], sizes = [16, 16, 4], strides = [1, 1, 1]} : vector<18x18x4xf32> to vector<16x16x4xf32>
    %19 = vector.shape_cast %18 : vector<16x16x4xf32> to vector<256x4xf32>
    %20 = tpu.concatenate %3, %5, %7, %9, %11, %13, %15, %17, %19 in 1 : vector<256x4xf32>, vector<256x4xf32>, vector<256x4xf32>, vector<256x4xf32>, vector<256x4xf32>, vector<256x4xf32>, vector<256x4xf32>, vector<256x4xf32>, vector<256x4xf32> -> vector<256x36xf32>
    %c0_3 = arith.constant 0 : index
    %c0_4 = arith.constant 0 : index
    %21 = vector.load %arg2[%c0_3, %c0_4] : memref<36x4xf32, #tpu.memory_space<vmem>>, vector<36x4xf32>
    %cst = arith.constant dense<0.000000e+00> : vector<256x4xf32>
    %22 = tpu.matmul %20, %21, %cst {dimension_numbers = #tpu.dot_dimension_numbers<[1], [0], [0], [1], [0, 0, 1, 1], [], []>} : vector<256x36xf32>, vector<36x4xf32>, vector<256x4xf32> -> vector<256x4xf32>
    %c0_5 = arith.constant 0 : index
    %c0_6 = arith.constant 0 : index
    %23 = vector.load %arg3[%c0_5, %c0_6] : memref<1x4xf32, #tpu.memory_space<vmem>>, vector<1x4xf32>
    %24 = vector.broadcast %23 : vector<1x4xf32> to vector<256x4xf32>
    %25 = arith.addf %22, %24 : vector<256x4xf32>
    %cst_7 = arith.constant 0.000000e+00 : f32
    %26 = vector.broadcast %cst_7 : f32 to vector<256x4xf32>
    %27 = arith.maximumf %25, %26 : vector<256x4xf32>
    %28 = vector.shape_cast %27 : vector<256x4xf32> to vector<16x16x4xf32>
    %cst_8 = arith.constant 0.000000e+00 : f32
    %29 = vector.broadcast %cst_8 : f32 to vector<1x16x4xf32>
    %30 = tpu.concatenate %29, %28, %29 in 0 : vector<1x16x4xf32>, vector<16x16x4xf32>, vector<1x16x4xf32> -> vector<18x16x4xf32>
    %cst_9 = arith.constant 0.000000e+00 : f32
    %31 = vector.broadcast %cst_9 : f32 to vector<18x1x4xf32>
    %32 = tpu.concatenate %31, %30, %31 in 1 : vector<18x1x4xf32>, vector<18x16x4xf32>, vector<18x1x4xf32> -> vector<18x18x4xf32>
    %33 = vector.extract_strided_slice %32 {offsets = [0, 0, 0], sizes = [16, 16, 4], strides = [1, 1, 1]} : vector<18x18x4xf32> to vector<16x16x4xf32>
    %34 = vector.shape_cast %33 : vector<16x16x4xf32> to vector<256x4xf32>
    %35 = vector.extract_strided_slice %32 {offsets = [0, 1, 0], sizes = [16, 16, 4], strides = [1, 1, 1]} : vector<18x18x4xf32> to vector<16x16x4xf32>
    %36 = vector.shape_cast %35 : vector<16x16x4xf32> to vector<256x4xf32>
    %37 = vector.extract_strided_slice %32 {offsets = [0, 2, 0], sizes = [16, 16, 4], strides = [1, 1, 1]} : vector<18x18x4xf32> to vector<16x16x4xf32>
    %38 = vector.shape_cast %37 : vector<16x16x4xf32> to vector<256x4xf32>
    %39 = vector.extract_strided_slice %32 {offsets = [1, 0, 0], sizes = [16, 16, 4], strides = [1, 1, 1]} : vector<18x18x4xf32> to vector<16x16x4xf32>
    %40 = vector.shape_cast %39 : vector<16x16x4xf32> to vector<256x4xf32>
    %41 = vector.extract_strided_slice %32 {offsets = [1, 1, 0], sizes = [16, 16, 4], strides = [1, 1, 1]} : vector<18x18x4xf32> to vector<16x16x4xf32>
    %42 = vector.shape_cast %41 : vector<16x16x4xf32> to vector<256x4xf32>
    %43 = vector.extract_strided_slice %32 {offsets = [1, 2, 0], sizes = [16, 16, 4], strides = [1, 1, 1]} : vector<18x18x4xf32> to vector<16x16x4xf32>
    %44 = vector.shape_cast %43 : vector<16x16x4xf32> to vector<256x4xf32>
    %45 = vector.extract_strided_slice %32 {offsets = [2, 0, 0], sizes = [16, 16, 4], strides = [1, 1, 1]} : vector<18x18x4xf32> to vector<16x16x4xf32>
    %46 = vector.shape_cast %45 : vector<16x16x4xf32> to vector<256x4xf32>
    %47 = vector.extract_strided_slice %32 {offsets = [2, 1, 0], sizes = [16, 16, 4], strides = [1, 1, 1]} : vector<18x18x4xf32> to vector<16x16x4xf32>
    %48 = vector.shape_cast %47 : vector<16x16x4xf32> to vector<256x4xf32>
    %49 = vector.extract_strided_slice %32 {offsets = [2, 2, 0], sizes = [16, 16, 4], strides = [1, 1, 1]} : vector<18x18x4xf32> to vector<16x16x4xf32>
    %50 = vector.shape_cast %49 : vector<16x16x4xf32> to vector<256x4xf32>
    %51 = tpu.concatenate %34, %36, %38, %40, %42, %44, %46, %48, %50 in 1 : vector<256x4xf32>, vector<256x4xf32>, vector<256x4xf32>, vector<256x4xf32>, vector<256x4xf32>, vector<256x4xf32>, vector<256x4xf32>, vector<256x4xf32>, vector<256x4xf32> -> vector<256x36xf32>
    %c0_10 = arith.constant 0 : index
    %c0_11 = arith.constant 0 : index
    %52 = vector.load %arg4[%c0_10, %c0_11] : memref<36x4xf32, #tpu.memory_space<vmem>>, vector<36x4xf32>
    %cst_12 = arith.constant dense<0.000000e+00> : vector<256x4xf32>
    %53 = tpu.matmul %51, %52, %cst_12 {dimension_numbers = #tpu.dot_dimension_numbers<[1], [0], [0], [1], [0, 0, 1, 1], [], []>} : vector<256x36xf32>, vector<36x4xf32>, vector<256x4xf32> -> vector<256x4xf32>
    %c0_13 = arith.constant 0 : index
    %c0_14 = arith.constant 0 : index
    %54 = vector.load %arg5[%c0_13, %c0_14] : memref<1x4xf32, #tpu.memory_space<vmem>>, vector<1x4xf32>
    %55 = vector.broadcast %54 : vector<1x4xf32> to vector<256x4xf32>
    %56 = arith.addf %53, %55 : vector<256x4xf32>
    %cst_15 = arith.constant 1.000000e-01 : f32
    %57 = vector.broadcast %cst_15 : f32 to vector<256x4xf32>
    %58 = arith.mulf %57, %56 : vector<256x4xf32>
    %59 = arith.addf %11, %58 : vector<256x4xf32>
    %60 = vector.shape_cast %59 : vector<256x4xf32> to vector<16x16x4xf32>
    %c0_16 = arith.constant 0 : index
    %c0_17 = arith.constant 0 : index
    %c0_18 = arith.constant 0 : index
    %c0_19 = arith.constant 0 : index
    %61 = vector.load %arg6[%c0_16, %c0_17, %c0_18, %c0_19] : memref<1x16x16x4xf32, #tpu.memory_space<vmem>>, vector<1x16x16x4xf32>
    %62 = vector.shape_cast %61 : vector<1x16x16x4xf32> to vector<16x16x4xf32>
    %63 = vector.shape_cast %60 : vector<16x16x4xf32> to vector<1x16x16x4xf32>
    tpu.vector_store %arg6[%c0_16, %c0_17, %c0_18, %c0_19], %63 {strides = array<i32>} : memref<1x16x16x4xf32, #tpu.memory_space<vmem>>, vector<1x16x16x4xf32>,
    return
  }
  func.func @transform_0(%arg0: i32) -> (i32, i32, i32, i32) {
    %c0_i32 = arith.constant 0 : i32
    %c0_i32_0 = arith.constant 0 : i32
    %c0_i32_1 = arith.constant 0 : i32
    %c0_i32_2 = arith.constant 0 : i32
    return %arg0, %c0_i32, %c0_i32_0, %c0_i32_1 : i32, i32, i32, i32
  }
  func.func @transform_1(%arg0: i32) -> (i32, i32) {
    %c0_i32 = arith.constant 0 : i32
    %c0_i32_0 = arith.constant 0 : i32
    %c0_i32_1 = arith.constant 0 : i32
    return %c0_i32, %c0_i32_0 : i32, i32
  }
  func.func @transform_2(%arg0: i32) -> (i32, i32) {
    %c0_i32 = arith.constant 0 : i32
    %c0_i32_0 = arith.constant 0 : i32
    %c0_i32_1 = arith.constant 0 : i32
    return %c0_i32, %c0_i32_0 : i32, i32
  }
  func.func @transform_3(%arg0: i32) -> (i32, i32) {
    %c0_i32 = arith.constant 0 : i32
    %c0_i32_0 = arith.constant 0 : i32
    %c0_i32_1 = arith.constant 0 : i32
    return %c0_i32, %c0_i32_0 : i32, i32
  }
  func.func @transform_4(%arg0: i32) -> (i32, i32) {
    %c0_i32 = arith.constant 0 : i32
    %c0_i32_0 = arith.constant 0 : i32
    %c0_i32_1 = arith.constant 0 : i32
    return %c0_i32, %c0_i32_0 : i32, i32
  }
  func.func @transform_5(%arg0: i32) -> (i32, i32, i32, i32) {
    %c0_i32 = arith.constant 0 : i32
    %c0_i32_0 = arith.constant 0 : i32
    %c0_i32_1 = arith.constant 0 : i32
    %c0_i32_2 = arith.constant 0 : i32
    return %arg0, %c0_i32, %c0_i32_0, %c0_i32_1 : i32, i32, i32, i32
  }
}

</mosaic_0001>

<llo_original>
// kernel: tpu_custom_call.1
$region0: #{tpu_custom_call.1}
  #allocation0 [shape = 'u32[]', space=smem, size = 0x4, offset = 0x4, fixed_abs, tag = 'smem constant byte address 0x4 - core index']
  #allocation1 [shape = 'u32[144,128]{1,0:T(1,128)}', space=vmem, size = 0x12000, scoped, tag = 'internal scratch']
  %s0 = inlined_call_operand.vmem [shape: f32[2,18,18,4], index: 0, kind: input, shape index: {}]
  %s1 = inlined_call_operand.vmem [shape: f32[36,4], index: 1, kind: input, shape index: {}]
  %s2 = inlined_call_operand.vmem [shape: f32[1,4], index: 2, kind: input, shape index: {}]
  %s3 = inlined_call_operand.vmem [shape: f32[36,4], index: 3, kind: input, shape index: {}]
  %s4 = inlined_call_operand.vmem [shape: f32[1,4], index: 4, kind: input, shape index: {}]
  %s5 = inlined_call_operand.vmem [shape: f32[2,16,16,4], index: 5, kind: output, shape index: {}]
  %s6 = sld [smem:[#allocation0]]
  $region53: #{tpu_custom_call.1} parent=0
    _
  %s8 = ssub.s32 1, %s6
  %s9 = scalar_select 0, %s8, %s6
  loop: start=0, step=1, limit=4
  $region2: #{tpu_custom_call.1} parent=0 // loop_pre_header
    _
  $region3: #{tpu_custom_call.1} parent=0 // loop_header
    %s11 = sphi 0, %s15
    %p12 = scmp.ge.s32.totalorder %s11, 4
    %s21 = sphi 0, %s23
    %s24 = sphi 0, %s21
    %s25 = sphi 0, %s24
    %s41 = sphi 0, %s25
    %s45 = sphi 0, %s45
    %s47 = sphi 0, %s45
    %s48 = sphi 0, %s47
    %s62 = sphi 0, %s48
    %s66 = sphi 0, %s66
    %s68 = sphi 0, %s66
    %s69 = sphi 0, %s68
    %s83 = sphi 0, %s69
    %s87 = sphi 0, %s87
    %s89 = sphi 0, %s87
    %s90 = sphi 0, %s89
    %s104 = sphi 0, %s90
    %s108 = sphi 0, %s108
    %s110 = sphi 0, %s108
    %s111 = sphi 0, %s110
    %s125 = sphi 0, %s111
    %s131 = sphi 0, %s133
    %s134 = sphi 0, %s131
    %s135 = sphi 0, %s134
    %s151 = sphi 0, %s135
  $region4: #{tpu_custom_call.1} parent=0 // loop_header_branch
    %14 = sbr.rel (%p12) target = $region8
  $region5: #{tpu_custom_call.1} parent=0 // loop_body
    %s16 = ssub.s32 %s11, 1
    %s17 = ssub.s32 %s11, 2
    %s18 = sadd.s32 %s11, 1
    %s19 = ssub.s32 %s11, %s18
    %p20 = scmp.eq.s32.totalorder %s19, 0
    %s22 = sadd.s32 %s21, 1
    %s23 = scalar_select %p20, %s21, %s22
    %p26 = pneg %p20
    %p27 = scmp.eq.s32.totalorder %s11, 1
    %p28 = por %p26, %p27
    %p29 = scmp.ne.s32.totalorder %s21, %s24
    %p30 = scmp.eq.s32.totalorder %s11, 0
    %p31 = por %p29, %p30
    %p32 = scmp.ne.s32.totalorder %s21, %s24
    %p33 = scmp.eq.s32.totalorder %s16, 1
    %p34 = por %p32, %p33
    %p35 = scmp.ne.s32.totalorder %s24, %s25
    %p36 = scmp.eq.s32.totalorder %s16, 0
    %p37 = por %p35, %p36
    %p38 = scmp.ne.s32.totalorder %s24, %s25
    %p39 = scmp.eq.s32.totalorder %s17, 1
    %p40 = por %p38, %p39
    %p42 = scmp.ne.s32.totalorder %s25, %s41
    %p43 = scmp.eq.s32.totalorder %s17, 0
    %p44 = por %p42, %p43
    %s46 = sadd.s32 %s45, 1
    %p49 = scmp.eq.s32.totalorder %s11, 1
    %p50 = scmp.ne.s32.totalorder %s45, %s47
    %p51 = scmp.eq.s32.totalorder %s11, 0
    %p52 = por %p50, %p51
    %p53 = scmp.ne.s32.totalorder %s45, %s47
    %p54 = scmp.eq.s32.totalorder %s16, 1
    %p55 = por %p53, %p54
    %p56 = scmp.ne.s32.totalorder %s47, %s48
    %p57 = scmp.eq.s32.totalorder %s16, 0
    %p58 = por %p56, %p57
    %p59 = scmp.ne.s32.totalorder %s47, %s48
    %p60 = scmp.eq.s32.totalorder %s17, 1
    %p61 = por %p59, %p60
    %p63 = scmp.ne.s32.totalorder %s48, %s62
    %p64 = scmp.eq.s32.totalorder %s17, 0
    %p65 = por %p63, %p64
    %s67 = sadd.s32 %s66, 1
    %p70 = scmp.eq.s32.totalorder %s11, 1
    %p71 = scmp.ne.s32.totalorder %s66, %s68
    %p72 = scmp.eq.s32.totalorder %s11, 0
    %p73 = por %p71, %p72
    %p74 = scmp.ne.s32.totalorder %s66, %s68
    %p75 = scmp.eq.s32.totalorder %s16, 1
    %p76 = por %p74, %p75
    %p77 = scmp.ne.s32.totalorder %s68, %s69
    %p78 = scmp.eq.s32.totalorder %s16, 0
    %p79 = por %p77, %p78
    %p80 = scmp.ne.s32.totalorder %s68, %s69
    %p81 = scmp.eq.s32.totalorder %s17, 1
    %p82 = por %p80, %p81
    %p84 = scmp.ne.s32.totalorder %s69, %s83
    %p85 = scmp.eq.s32.totalorder %s17, 0
    %p86 = por %p84, %p85
    %s88 = sadd.s32 %s87, 1
    %p91 = scmp.eq.s32.totalorder %s11, 1
    %p92 = scmp.ne.s32.totalorder %s87, %s89
    %p93 = scmp.eq.s32.totalorder %s11, 0
    %p94 = por %p92, %p93
    %p95 = scmp.ne.s32.totalorder %s87, %s89
    %p96 = scmp.eq.s32.totalorder %s16, 1
    %p97 = por %p95, %p96
    %p98 = scmp.ne.s32.totalorder %s89, %s90
    %p99 = scmp.eq.s32.totalorder %s16, 0
    %p100 = por %p98, %p99
    %p101 = scmp.ne.s32.totalorder %s89, %s90
    %p102 = scmp.eq.s32.totalorder %s17, 1
    %p103 = por %p101, %p102
    %p105 = scmp.ne.s32.totalorder %s90, %s104
    %p106 = scmp.eq.s32.totalorder %s17, 0
    %p107 = por %p105, %p106
    %s109 = sadd.s32 %s108, 1
    %p112 = scmp.eq.s32.totalorder %s11, 1
    %p113 = scmp.ne.s32.totalorder %s108, %s110
    %p114 = scmp.eq.s32.totalorder %s11, 0
    %p115 = por %p113, %p114
    %p116 = scmp.ne.s32.totalorder %s108, %s110
    %p117 = scmp.eq.s32.totalorder %s16, 1
    %p118 = por %p116, %p117
    %p119 = scmp.ne.s32.totalorder %s110, %s111
    %p120 = scmp.eq.s32.totalorder %s16, 0
    %p121 = por %p119, %p120
    %p122 = scmp.ne.s32.totalorder %s110, %s111
    %p123 = scmp.eq.s32.totalorder %s17, 1
    %p124 = por %p122, %p123
    %p126 = scmp.ne.s32.totalorder %s111, %s125
    %p127 = scmp.eq.s32.totalorder %s17, 0
    %p128 = por %p126, %p127
    %s129 = ssub.s32 %s11, %s18
    %p130 = scmp.eq.s32.totalorder %s129, 0
    %s132 = sadd.s32 %s131, 1
    %s133 = scalar_select %p130, %s131, %s132
    %p136 = pneg %p130
    %p137 = scmp.eq.s32.totalorder %s11, 1
    %p138 = por %p136, %p137
    %p139 = scmp.ne.s32.totalorder %s131, %s134
    %p140 = scmp.eq.s32.totalorder %s11, 0
    %p141 = por %p139, %p140
    %p142 = scmp.ne.s32.totalorder %s131, %s134
    %p143 = scmp.eq.s32.totalorder %s16, 1
    %p144 = por %p142, %p143
    %p145 = scmp.ne.s32.totalorder %s134, %s135
    %p146 = scmp.eq.s32.totalorder %s16, 0
    %p147 = por %p145, %p146
    %p148 = scmp.ne.s32.totalorder %s134, %s135
    %p149 = scmp.eq.s32.totalorder %s17, 1
    %p150 = por %p148, %p149
    %p152 = scmp.ne.s32.totalorder %s135, %s151
    %p153 = scmp.eq.s32.totalorder %s17, 0
    %p154 = por %p152, %p153
    %p155 = scmp.le.s32.totalorder 1, %s11
    %p156 = scmp.lt.s32.totalorder %s11, 3
    %p157 = pnand %p155, %p156
    %p158 = pneg %p157
    // Predicated region
    $region9: #{tpu_custom_call.1} parent=5 // pred_check
      _
    $region10: #{tpu_custom_call.1} parent=5 // pred_check_branch
      %160 = sbr.rel (%p157) target = $region12
    $region11: #{tpu_custom_call.1} parent=5 // pred_region
      %s161 = ssub.s32 %s11, 1
      // Predicated region
      $region13: #{tpu_custom_call.1} parent=11 // pred_check
        %p162 = pneg %p58
      $region14: #{tpu_custom_call.1} parent=11 // pred_check_branch
        %164 = sbr.rel (%p162) target = $region16
      $region15: #{tpu_custom_call.1} parent=11 // pred_region
        _
      $region16: #{tpu_custom_call.1} parent=11 // pred_fallthru
        _
      // Predicated region
      $region17: #{tpu_custom_call.1} parent=11 // pred_check
        %p165 = pneg %p79
      $region18: #{tpu_custom_call.1} parent=11 // pred_check_branch
        %167 = sbr.rel (%p165) target = $region20
      $region19: #{tpu_custom_call.1} parent=11 // pred_region
        _
      $region20: #{tpu_custom_call.1} parent=11 // pred_fallthru
        _
      // Predicated region
      $region21: #{tpu_custom_call.1} parent=11 // pred_check
        %p168 = pneg %p100
      $region22: #{tpu_custom_call.1} parent=11 // pred_check_branch
        %170 = sbr.rel (%p168) target = $region24
      $region23: #{tpu_custom_call.1} parent=11 // pred_region
        _
      $region24: #{tpu_custom_call.1} parent=11 // pred_fallthru
        _
      // Predicated region
      $region25: #{tpu_custom_call.1} parent=11 // pred_check
        %p171 = pneg %p121
      $region26: #{tpu_custom_call.1} parent=11 // pred_check_branch
        %173 = sbr.rel (%p171) target = $region28
      $region27: #{tpu_custom_call.1} parent=11 // pred_region
        _
      $region28: #{tpu_custom_call.1} parent=11 // pred_fallthru
        _
    $region12: #{tpu_custom_call.1} parent=5 // pred_fallthru
      _
    %p174 = scmp.lt.s32.totalorder %s11, 2
    // Predicated region
    $region29: #{tpu_custom_call.1} parent=5 // pred_check
      %p175 = pneg %p174
    $region30: #{tpu_custom_call.1} parent=5 // pred_check_branch
      %177 = sbr.rel (%p175) target = $region32
    $region31: #{tpu_custom_call.1} parent=5 // pred_region
      // Predicated region
      $region33: #{tpu_custom_call.1} parent=31 // pred_check
        %p178 = pneg %p31
      $region34: #{tpu_custom_call.1} parent=31 // pred_check_branch
        %180 = sbr.rel (%p178) target = $region36
      $region35: #{tpu_custom_call.1} parent=31 // pred_region
        %p181 = scmp.lt.s32.totalorder %s11, 1
        %s182 = scalar_select %p181, %s11, 1
        %s183 = smul.addr %s182, 54
        %s184 = smul.addr %s183, 8
        %s185 = scalar_lea.vmem %s0, %s184
      $region36: #{tpu_custom_call.1} parent=31 // pred_fallthru
        _
    $region32: #{tpu_custom_call.1} parent=5 // pred_fallthru
      _
    %p186 = scmp.le.s32.totalorder 1, %s11
    %p187 = scmp.lt.s32.totalorder %s11, 3
    %p188 = pnand %p186, %p187
    %p189 = pneg %p188
    // Predicated region
    $region37: #{tpu_custom_call.1} parent=5 // pred_check
      _
    $region38: #{tpu_custom_call.1} parent=5 // pred_check_branch
      %191 = sbr.rel (%p188) target = $region40
    $region39: #{tpu_custom_call.1} parent=5 // pred_region
      %s192 = ssub.s32 %s11, 1
      %p193 = scmp.lt.s32.totalorder %s16, 1
      %s194 = scalar_select %p193, %s16, 1
      %s195 = smul.addr %s194, 54
      %s196 = smul.addr %s195, 8
      %s197 = scalar_lea.vmem %s0, %s196
      %p198 = pneg %p37
      %p199 = pneg %p34
      %p200 = pneg %p58
      %p201 = pneg %p55
      %p202 = pneg %p79
      %p203 = pneg %p76
      %p204 = pneg %p100
      %p205 = pneg %p97
      %p206 = pneg %p121
      %p207 = pneg %p118
      %p208 = pneg %p147
      %p209 = pneg %p144
      %p210 = scmp.lt.s32.totalorder %s16, 1
      %s211 = scalar_select %p210, %s16, 1
      %s212 = smul.addr %s211, 32
      %s213 = smul.addr %s212, 8
      %s214 = scalar_lea.vmem %s5, %s213
      %p215 = scmp.lt.s32.totalorder %s16, 1
      %s216 = scalar_select %p215, %s16, 1
      %s217 = smul.addr %s216, 54
      %s218 = smul.addr %s217, 8
      %s219 = scalar_lea.vmem %s0, %s218
      %p220 = scmp.lt.s32.totalorder %s16, 1
      %s221 = scalar_select %p220, %s16, 1
      %s222 = smul.addr %s221, 32
      %s223 = smul.addr %s222, 8
      %s224 = scalar_lea.vmem %s5, %s223
      %v225 = vld [vmem:[%s219] sm:$0xff]
      %v226 = vld [vmem:[%s219 + $0x8] sm:$0xff]
      %v227 = vld [vmem:[%s219 + $0x10] sm:$0x3]
      %v228 = vld [vmem:[%s219 + $0x18] sm:$0xff]
      %v229 = vld [vmem:[%s219 + $0x20] sm:$0xff]
      %v230 = vld [vmem:[%s219 + $0x28] sm:$0x3]
      %v231 = vld [vmem:[%s219 + $0x30] sm:$0xff]
      %v232 = vld [vmem:[%s219 + $0x38] sm:$0xff]
      %v233 = vld [vmem:[%s219 + $0x40] sm:$0x3]
      %v234 = vld [vmem:[%s219 + $0x48] sm:$0xff]
      %v235 = vld [vmem:[%s219 + $0x50] sm:$0xff]
      %v236 = vld [vmem:[%s219 + $0x58] sm:$0x3]
      %v237 = vld [vmem:[%s219 + $0x60] sm:$0xff]
      %v238 = vld [vmem:[%s219 + $0x68] sm:$0xff]
      %v239 = vld [vmem:[%s219 + $0x70] sm:$0x3]
      %v240 = vld [vmem:[%s219 + $0x78] sm:$0xff]
      %v241 = vld [vmem:[%s219 + $0x80] sm:$0xff]
      %v242 = vld [vmem:[%s219 + $0x88] sm:$0x3]
      %v243 = vld [vmem:[%s219 + $0x90] sm:$0xff]
      %v244 = vld [vmem:[%s219 + $0x98] sm:$0xff]
      %v245 = vld [vmem:[%s219 + $0xa0] sm:$0x3]
      %v246 = vld [vmem:[%s219 + $0xa8] sm:$0xff]
      %v247 = vld [vmem:[%s219 + $0xb0] sm:$0xff]
      %v248 = vld [vmem:[%s219 + $0xb8] sm:$0x3]
      %v249 = vld [vmem:[%s219 + $0xc0] sm:$0xff]
      %v250 = vld [vmem:[%s219 + $0xc8] sm:$0xff]
      %v251 = vld [vmem:[%s219 + $0xd0] sm:$0x3]
      %v252 = vld [vmem:[%s219 + $0xd8] sm:$0xff]
      %v253 = vld [vmem:[%s219 + $0xe0] sm:$0xff]
      %v254 = vld [vmem:[%s219 + $0xe8] sm:$0x3]
      %v255 = vld [vmem:[%s219 + $0xf0] sm:$0xff]
      %v256 = vld [vmem:[%s219 + $0xf8] sm:$0xff]
      %v257 = vld [vmem:[%s219 + $0x100] sm:$0x3]
      %v258 = vld [vmem:[%s219 + $0x108] sm:$0xff]
      %v259 = vld [vmem:[%s219 + $0x110] sm:$0xff]
      %v260 = vld [vmem:[%s219 + $0x118] sm:$0x3]
      %v261 = vld [vmem:[%s219 + $0x120] sm:$0xff]
      %v262 = vld [vmem:[%s219 + $0x128] sm:$0xff]
      %v263 = vld [vmem:[%s219 + $0x130] sm:$0x3]
      %v264 = vld [vmem:[%s219 + $0x138] sm:$0xff]
      %v265 = vld [vmem:[%s219 + $0x140] sm:$0xff]
      %v266 = vld [vmem:[%s219 + $0x148] sm:$0x3]
      %v267 = vld [vmem:[%s219 + $0x150] sm:$0xff]
      %v268 = vld [vmem:[%s219 + $0x158] sm:$0xff]
      %v269 = vld [vmem:[%s219 + $0x160] sm:$0x3]
      %v270 = vld [vmem:[%s219 + $0x168] sm:$0xff]
      %v271 = vld [vmem:[%s219 + $0x170] sm:$0xff]
      %v272 = vld [vmem:[%s219 + $0x178] sm:$0x3]
      %v273 = vld [vmem:[%s219 + $0x180] sm:$0xff]
      %v274 = vld [vmem:[%s219 + $0x188] sm:$0xff]
      %v275 = vld [vmem:[%s219 + $0x190] sm:$0x3]
      %v276 = vld [vmem:[%s219 + $0x198] sm:$0xff]
      %v277 = vld [vmem:[%s219 + $0x1a0] sm:$0xff]
      %v278 = vld [vmem:[%s219 + $0x1a8] sm:$0x3]
      %vm327 = vcmask 1046528
      %v328 = vrot.slane %v225, 1
      %v329 = vrot.slane %v226, 1
      %v330 = vsel %vm327, %v328, %v329
      %v331 = vrot.slane %v227, 1
      %v332 = vsel %vm327, %v329, %v331
      %v333 = vrot.slane %v228, 1
      %v334 = vrot.slane %v229, 1
      %v335 = vsel %vm327, %v333, %v334
      %v336 = vrot.slane %v230, 1
      %v337 = vsel %vm327, %v334, %v336
      %v338 = vrot.slane %v231, 1
      %v339 = vrot.slane %v232, 1
      %v340 = vsel %vm327, %v338, %v339
      %v341 = vrot.slane %v233, 1
      %v342 = vsel %vm327, %v339, %v341
      %v343 = vrot.slane %v234, 1
      %v344 = vrot.slane %v235, 1
      %v345 = vsel %vm327, %v343, %v344
      %v346 = vrot.slane %v236, 1
      %v347 = vsel %vm327, %v344, %v346
      %v348 = vrot.slane %v237, 1
      %v349 = vrot.slane %v238, 1
      %v350 = vsel %vm327, %v348, %v349
      %v351 = vrot.slane %v239, 1
      %v352 = vsel %vm327, %v349, %v351
      %v353 = vrot.slane %v240, 1
      %v354 = vrot.slane %v241, 1
      %v355 = vsel %vm327, %v353, %v354
      %v356 = vrot.slane %v242, 1
      %v357 = vsel %vm327, %v354, %v356
      %v358 = vrot.slane %v243, 1
      %v359 = vrot.slane %v244, 1
      %v360 = vsel %vm327, %v358, %v359
      %v361 = vrot.slane %v245, 1
      %v362 = vsel %vm327, %v359, %v361
      %v363 = vrot.slane %v246, 1
      %v364 = vrot.slane %v247, 1
      %v365 = vsel %vm327, %v363, %v364
      %v366 = vrot.slane %v248, 1
      %v367 = vsel %vm327, %v364, %v366
      %v368 = vrot.slane %v249, 1
      %v369 = vrot.slane %v250, 1
      %v370 = vsel %vm327, %v368, %v369
      %v371 = vrot.slane %v251, 1
      %v372 = vsel %vm327, %v369, %v371
      %v373 = vrot.slane %v252, 1
      %v374 = vrot.slane %v253, 1
      %v375 = vsel %vm327, %v373, %v374
      %v376 = vrot.slane %v254, 1
      %v377 = vsel %vm327, %v374, %v376
      %v378 = vrot.slane %v255, 1
      %v379 = vrot.slane %v256, 1
      %v380 = vsel %vm327, %v378, %v379
      %v381 = vrot.slane %v257, 1
      %v382 = vsel %vm327, %v379, %v381
      %v383 = vrot.slane %v258, 1
      %v384 = vrot.slane %v259, 1
      %v385 = vsel %vm327, %v383, %v384
      %v386 = vrot.slane %v260, 1
      %v387 = vsel %vm327, %v384, %v386
      %v388 = vrot.slane %v261, 1
      %v389 = vrot.slane %v262, 1
      %v390 = vsel %vm327, %v388, %v389
      %v391 = vrot.slane %v263, 1
      %v392 = vsel %vm327, %v389, %v391
      %v393 = vrot.slane %v264, 1
      %v394 = vrot.slane %v265, 1
      %v395 = vsel %vm327, %v393, %v394
      %v396 = vrot.slane %v266, 1
      %v397 = vsel %vm327, %v394, %v396
      %v398 = vrot.slane %v267, 1
      %v399 = vrot.slane %v268, 1
      %v400 = vsel %vm327, %v398, %v399
      %v401 = vrot.slane %v269, 1
      %v402 = vsel %vm327, %v399, %v401
      %v403 = vrot.slane %v270, 1
      %v404 = vrot.slane %v271, 1
      %v405 = vsel %vm327, %v403, %v404
      %v406 = vrot.slane %v272, 1
      %v407 = vsel %vm327, %v404, %v406
      %vm408 = vcmask 1045504
      %v409 = vrot.slane %v225, 2
      %v410 = vrot.slane %v226, 2
      %v411 = vsel %vm408, %v409, %v410
      %v412 = vrot.slane %v227, 2
      %v413 = vsel %vm408, %v410, %v412
      %v414 = vrot.slane %v228, 2
      %v415 = vrot.slane %v229, 2
      %v416 = vsel %vm408, %v414, %v415
      %v417 = vrot.slane %v230, 2
      %v418 = vsel %vm408, %v415, %v417
      %v419 = vrot.slane %v231, 2
      %v420 = vrot.slane %v232, 2
      %v421 = vsel %vm408, %v419, %v420
      %v422 = vrot.slane %v233, 2
      %v423 = vsel %vm408, %v420, %v422
      %v424 = vrot.slane %v234, 2
      %v425 = vrot.slane %v235, 2
      %v426 = vsel %vm408, %v424, %v425
      %v427 = vrot.slane %v236, 2
      %v428 = vsel %vm408, %v425, %v427
      %v429 = vrot.slane %v237, 2
      %v430 = vrot.slane %v238, 2
      %v431 = vsel %vm408, %v429, %v430
      %v432 = vrot.slane %v239, 2
      %v433 = vsel %vm408, %v430, %v432
      %v434 = vrot.slane %v240, 2
      %v435 = vrot.slane %v241, 2
      %v436 = vsel %vm408, %v434, %v435
      %v437 = vrot.slane %v242, 2
      %v438 = vsel %vm408, %v435, %v437
      %v439 = vrot.slane %v243, 2
      %v440 = vrot.slane %v244, 2
      %v441 = vsel %vm408, %v439, %v440
      %v442 = vrot.slane %v245, 2
      %v443 = vsel %vm408, %v440, %v442
      %v444 = vrot.slane %v246, 2
      %v445 = vrot.slane %v247, 2
      %v446 = vsel %vm408, %v444, %v445
      %v447 = vrot.slane %v248, 2
      %v448 = vsel %vm408, %v445, %v447
      %v449 = vrot.slane %v249, 2
      %v450 = vrot.slane %v250, 2
      %v451 = vsel %vm408, %v449, %v450
      %v452 = vrot.slane %v251, 2
      %v453 = vsel %vm408, %v450, %v452
      %v454 = vrot.slane %v252, 2
      %v455 = vrot.slane %v253, 2
      %v456 = vsel %vm408, %v454, %v455
      %v457 = vrot.slane %v254, 2
      %v458 = vsel %vm408, %v455, %v457
      %v459 = vrot.slane %v255, 2
      %v460 = vrot.slane %v256, 2
      %v461 = vsel %vm408, %v459, %v460
      %v462 = vrot.slane %v257, 2
      %v463 = vsel %vm408, %v460, %v462
      %v464 = vrot.slane %v258, 2
      %v465 = vrot.slane %v259, 2
      %v466 = vsel %vm408, %v464, %v465
      %v467 = vrot.slane %v260, 2
      %v468 = vsel %vm408, %v465, %v467
      %v469 = vrot.slane %v261, 2
      %v470 = vrot.slane %v262, 2
      %v471 = vsel %vm408, %v469, %v470
      %v472 = vrot.slane %v263, 2
      %v473 = vsel %vm408, %v470, %v472
      %v474 = vrot.slane %v264, 2
      %v475 = vrot.slane %v265, 2
      %v476 = vsel %vm408, %v474, %v475
      %v477 = vrot.slane %v266, 2
      %v478 = vsel %vm408, %v475, %v477
      %v479 = vrot.slane %v267, 2
      %v480 = vrot.slane %v268, 2
      %v481 = vsel %vm408, %v479, %v480
      %v482 = vrot.slane %v269, 2
      %v483 = vsel %vm408, %v480, %v482
      %v484 = vrot.slane %v270, 2
      %v485 = vrot.slane %v271, 2
      %v486 = vsel %vm408, %v484, %v485
      %v487 = vrot.slane %v272, 2
      %v488 = vsel %vm408, %v485, %v487
      %v492 = vrot.slane %v273, 1
      %v493 = vrot.slane %v274, 1
      %v494 = vsel %vm327, %v492, %v493
      %v495 = vrot.slane %v275, 1
      %v496 = vsel %vm327, %v493, %v495
      %v529 = vrot.slane %v273, 2
      %v530 = vrot.slane %v274, 2
      %v531 = vsel %vm408, %v529, %v530
      %v532 = vrot.slane %v275, 2
      %v533 = vsel %vm408, %v530, %v532
      %v537 = vrot.slane %v276, 1
      %v538 = vrot.slane %v277, 1
      %v539 = vsel %vm327, %v537, %v538
      %v540 = vrot.slane %v278, 1
      %v541 = vsel %vm327, %v538, %v540
      %v542 = vrot.slane %v276, 2
      %v543 = vrot.slane %v277, 2
      %v544 = vsel %vm408, %v542, %v543
      %v545 = vrot.slane %v278, 2
      %v546 = vsel %vm408, %v543, %v545
      %547 = vrot.lane.b32.xlu0 %v330, 4
      %v548 = vpop.permute.xlu0 %547
      %549 = vrot.lane.b32.xlu0 %v332, 4
      %v550 = vpop.permute.xlu0 %549
      %551 = vrot.lane.b32.xlu0 %v335, 4
      %v552 = vpop.permute.xlu0 %551
      %553 = vrot.lane.b32.xlu0 %v337, 4
      %v554 = vpop.permute.xlu0 %553
      %555 = vrot.lane.b32.xlu0 %v340, 4
      %v556 = vpop.permute.xlu0 %555
      %557 = vrot.lane.b32.xlu0 %v342, 4
      %v558 = vpop.permute.xlu0 %557
      %559 = vrot.lane.b32.xlu0 %v345, 4
      %v560 = vpop.permute.xlu0 %559
      %561 = vrot.lane.b32.xlu0 %v347, 4
      %v562 = vpop.permute.xlu0 %561
      %563 = vrot.lane.b32.xlu0 %v350, 4
      %v564 = vpop.permute.xlu0 %563
      %565 = vrot.lane.b32.xlu0 %v352, 4
      %v566 = vpop.permute.xlu0 %565
      %567 = vrot.lane.b32.xlu0 %v355, 4
      %v568 = vpop.permute.xlu0 %567
      %569 = vrot.lane.b32.xlu0 %v357, 4
      %v570 = vpop.permute.xlu0 %569
      %571 = vrot.lane.b32.xlu0 %v360, 4
      %v572 = vpop.permute.xlu0 %571
      %573 = vrot.lane.b32.xlu0 %v362, 4
      %v574 = vpop.permute.xlu0 %573
      %575 = vrot.lane.b32.xlu0 %v365, 4
      %v576 = vpop.permute.xlu0 %575
      %577 = vrot.lane.b32.xlu0 %v367, 4
      %v578 = vpop.permute.xlu0 %577
      %579 = vrot.lane.b32.xlu0 %v370, 4
      %v580 = vpop.permute.xlu0 %579
      %581 = vrot.lane.b32.xlu0 %v372, 4
      %v582 = vpop.permute.xlu0 %581
      %583 = vrot.lane.b32.xlu0 %v375, 4
      %v584 = vpop.permute.xlu0 %583
      %585 = vrot.lane.b32.xlu0 %v377, 4
      %v586 = vpop.permute.xlu0 %585
      %587 = vrot.lane.b32.xlu0 %v380, 4
      %v588 = vpop.permute.xlu0 %587
      %589 = vrot.lane.b32.xlu0 %v382, 4
      %v590 = vpop.permute.xlu0 %589
      %591 = vrot.lane.b32.xlu0 %v385, 4
      %v592 = vpop.permute.xlu0 %591
      %593 = vrot.lane.b32.xlu0 %v387, 4
      %v594 = vpop.permute.xlu0 %593
      %595 = vrot.lane.b32.xlu0 %v390, 4
      %v596 = vpop.permute.xlu0 %595
      %597 = vrot.lane.b32.xlu0 %v392, 4
      %v598 = vpop.permute.xlu0 %597
      %599 = vrot.lane.b32.xlu0 %v395, 4
      %v600 = vpop.permute.xlu0 %599
      %601 = vrot.lane.b32.xlu0 %v397, 4
      %v602 = vpop.permute.xlu0 %601
      %603 = vrot.lane.b32.xlu0 %v400, 4
      %v604 = vpop.permute.xlu0 %603
      %605 = vrot.lane.b32.xlu0 %v402, 4
      %v606 = vpop.permute.xlu0 %605
      %607 = vrot.lane.b32.xlu0 %v405, 4
      %v608 = vpop.permute.xlu0 %607
      %609 = vrot.lane.b32.xlu0 %v407, 4
      %v610 = vpop.permute.xlu0 %609
      %643 = vrot.lane.b32.xlu0 %v411, 8
      %v644 = vpop.permute.xlu0 %643
      %645 = vrot.lane.b32.xlu0 %v413, 8
      %v646 = vpop.permute.xlu0 %645
      %647 = vrot.lane.b32.xlu0 %v416, 8
      %v648 = vpop.permute.xlu0 %647
      %649 = vrot.lane.b32.xlu0 %v418, 8
      %v650 = vpop.permute.xlu0 %649
      %651 = vrot.lane.b32.xlu0 %v421, 8
      %v652 = vpop.permute.xlu0 %651
      %653 = vrot.lane.b32.xlu0 %v423, 8
      %v654 = vpop.permute.xlu0 %653
      %655 = vrot.lane.b32.xlu0 %v426, 8
      %v656 = vpop.permute.xlu0 %655
      %657 = vrot.lane.b32.xlu0 %v428, 8
      %v658 = vpop.permute.xlu0 %657
      %659 = vrot.lane.b32.xlu0 %v431, 8
      %v660 = vpop.permute.xlu0 %659
      %661 = vrot.lane.b32.xlu0 %v433, 8
      %v662 = vpop.permute.xlu0 %661
      %663 = vrot.lane.b32.xlu0 %v436, 8
      %v664 = vpop.permute.xlu0 %663
      %665 = vrot.lane.b32.xlu0 %v438, 8
      %v666 = vpop.permute.xlu0 %665
      %667 = vrot.lane.b32.xlu0 %v441, 8
      %v668 = vpop.permute.xlu0 %667
      %669 = vrot.lane.b32.xlu0 %v443, 8
      %v670 = vpop.permute.xlu0 %669
      %671 = vrot.lane.b32.xlu0 %v446, 8
      %v672 = vpop.permute.xlu0 %671
      %673 = vrot.lane.b32.xlu0 %v448, 8
      %v674 = vpop.permute.xlu0 %673
      %675 = vrot.lane.b32.xlu0 %v451, 8
      %v676 = vpop.permute.xlu0 %675
      %677 = vrot.lane.b32.xlu0 %v453, 8
      %v678 = vpop.permute.xlu0 %677
      %679 = vrot.lane.b32.xlu0 %v456, 8
      %v680 = vpop.permute.xlu0 %679
      %681 = vrot.lane.b32.xlu0 %v458, 8
      %v682 = vpop.permute.xlu0 %681
      %683 = vrot.lane.b32.xlu0 %v461, 8
      %v684 = vpop.permute.xlu0 %683
      %685 = vrot.lane.b32.xlu0 %v463, 8
      %v686 = vpop.permute.xlu0 %685
      %687 = vrot.lane.b32.xlu0 %v466, 8
      %v688 = vpop.permute.xlu0 %687
      %689 = vrot.lane.b32.xlu0 %v468, 8
      %v690 = vpop.permute.xlu0 %689
      %691 = vrot.lane.b32.xlu0 %v471, 8
      %v692 = vpop.permute.xlu0 %691
      %693 = vrot.lane.b32.xlu0 %v473, 8
      %v694 = vpop.permute.xlu0 %693
      %695 = vrot.lane.b32.xlu0 %v476, 8
      %v696 = vpop.permute.xlu0 %695
      %697 = vrot.lane.b32.xlu0 %v478, 8
      %v698 = vpop.permute.xlu0 %697
      %699 = vrot.lane.b32.xlu0 %v481, 8
      %v700 = vpop.permute.xlu0 %699
      %701 = vrot.lane.b32.xlu0 %v483, 8
      %v702 = vpop.permute.xlu0 %701
      %703 = vrot.lane.b32.xlu0 %v486, 8
      %v704 = vpop.permute.xlu0 %703
      %705 = vrot.lane.b32.xlu0 %v488, 8
      %v706 = vpop.permute.xlu0 %705
      %739 = vrot.lane.b32.xlu0 %v228, 12
      %v740 = vpop.permute.xlu0 %739
      %741 = vrot.lane.b32.xlu0 %v229, 12
      %v742 = vpop.permute.xlu0 %741
      %743 = vrot.lane.b32.xlu0 %v231, 12
      %v744 = vpop.permute.xlu0 %743
      %745 = vrot.lane.b32.xlu0 %v232, 12
      %v746 = vpop.permute.xlu0 %745
      %747 = vrot.lane.b32.xlu0 %v234, 12
      %v748 = vpop.permute.xlu0 %747
      %749 = vrot.lane.b32.xlu0 %v235, 12
      %v750 = vpop.permute.xlu0 %749
      %751 = vrot.lane.b32.xlu0 %v237, 12
      %v752 = vpop.permute.xlu0 %751
      %753 = vrot.lane.b32.xlu0 %v238, 12
      %v754 = vpop.permute.xlu0 %753
      %755 = vrot.lane.b32.xlu0 %v240, 12
      %v756 = vpop.permute.xlu0 %755
      %757 = vrot.lane.b32.xlu0 %v241, 12
      %v758 = vpop.permute.xlu0 %757
      %759 = vrot.lane.b32.xlu0 %v243, 12
      %v760 = vpop.permute.xlu0 %759
      %761 = vrot.lane.b32.xlu0 %v244, 12
      %v762 = vpop.permute.xlu0 %761
      %763 = vrot.lane.b32.xlu0 %v246, 12
      %v764 = vpop.permute.xlu0 %763
      %765 = vrot.lane.b32.xlu0 %v247, 12
      %v766 = vpop.permute.xlu0 %765
      %767 = vrot.lane.b32.xlu0 %v249, 12
      %v768 = vpop.permute.xlu0 %767
      %769 = vrot.lane.b32.xlu0 %v250, 12
      %v770 = vpop.permute.xlu0 %769
      %771 = vrot.lane.b32.xlu0 %v252, 12
      %v772 = vpop.permute.xlu0 %771
      %773 = vrot.lane.b32.xlu0 %v253, 12
      %v774 = vpop.permute.xlu0 %773
      %775 = vrot.lane.b32.xlu0 %v255, 12
      %v776 = vpop.permute.xlu0 %775
      %777 = vrot.lane.b32.xlu0 %v256, 12
      %v778 = vpop.permute.xlu0 %777
      %779 = vrot.lane.b32.xlu0 %v258, 12
      %v780 = vpop.permute.xlu0 %779
      %781 = vrot.lane.b32.xlu0 %v259, 12
      %v782 = vpop.permute.xlu0 %781
      %783 = vrot.lane.b32.xlu0 %v261, 12
      %v784 = vpop.permute.xlu0 %783
      %785 = vrot.lane.b32.xlu0 %v262, 12
      %v786 = vpop.permute.xlu0 %785
      %787 = vrot.lane.b32.xlu0 %v264, 12
      %v788 = vpop.permute.xlu0 %787
      %789 = vrot.lane.b32.xlu0 %v265, 12
      %v790 = vpop.permute.xlu0 %789
      %791 = vrot.lane.b32.xlu0 %v267, 12
      %v792 = vpop.permute.xlu0 %791
      %793 = vrot.lane.b32.xlu0 %v268, 12
      %v794 = vpop.permute.xlu0 %793
      %795 = vrot.lane.b32.xlu0 %v270, 12
      %v796 = vpop.permute.xlu0 %795
      %797 = vrot.lane.b32.xlu0 %v271, 12
      %v798 = vpop.permute.xlu0 %797
      %799 = vrot.lane.b32.xlu0 %v273, 12
      %v800 = vpop.permute.xlu0 %799
      %801 = vrot.lane.b32.xlu0 %v274, 12
      %v802 = vpop.permute.xlu0 %801
      %835 = vrot.lane.b32.xlu0 %v335, 16
      %v836 = vpop.permute.xlu0 %835
      %837 = vrot.lane.b32.xlu0 %v337, 16
      %v838 = vpop.permute.xlu0 %837
      %839 = vrot.lane.b32.xlu0 %v340, 16
      %v840 = vpop.permute.xlu0 %839
      %841 = vrot.lane.b32.xlu0 %v342, 16
      %v842 = vpop.permute.xlu0 %841
      %843 = vrot.lane.b32.xlu0 %v345, 16
      %v844 = vpop.permute.xlu0 %843
      %845 = vrot.lane.b32.xlu0 %v347, 16
      %v846 = vpop.permute.xlu0 %845
      %847 = vrot.lane.b32.xlu0 %v350, 16
      %v848 = vpop.permute.xlu0 %847
      %849 = vrot.lane.b32.xlu0 %v352, 16
      %v850 = vpop.permute.xlu0 %849
      %851 = vrot.lane.b32.xlu0 %v355, 16
      %v852 = vpop.permute.xlu0 %851
      %853 = vrot.lane.b32.xlu0 %v357, 16
      %v854 = vpop.permute.xlu0 %853
      %855 = vrot.lane.b32.xlu0 %v360, 16
      %v856 = vpop.permute.xlu0 %855
      %857 = vrot.lane.b32.xlu0 %v362, 16
      %v858 = vpop.permute.xlu0 %857
      %859 = vrot.lane.b32.xlu0 %v365, 16
      %v860 = vpop.permute.xlu0 %859
      %861 = vrot.lane.b32.xlu0 %v367, 16
      %v862 = vpop.permute.xlu0 %861
      %863 = vrot.lane.b32.xlu0 %v370, 16
      %v864 = vpop.permute.xlu0 %863
      %865 = vrot.lane.b32.xlu0 %v372, 16
      %v866 = vpop.permute.xlu0 %865
      %867 = vrot.lane.b32.xlu0 %v375, 16
      %v868 = vpop.permute.xlu0 %867
      %869 = vrot.lane.b32.xlu0 %v377, 16
      %v870 = vpop.permute.xlu0 %869
      %871 = vrot.lane.b32.xlu0 %v380, 16
      %v872 = vpop.permute.xlu0 %871
      %873 = vrot.lane.b32.xlu0 %v382, 16
      %v874 = vpop.permute.xlu0 %873
      %875 = vrot.lane.b32.xlu0 %v385, 16
      %v876 = vpop.permute.xlu0 %875
      %877 = vrot.lane.b32.xlu0 %v387, 16
      %v878 = vpop.permute.xlu0 %877
      %879 = vrot.lane.b32.xlu0 %v390, 16
      %v880 = vpop.permute.xlu0 %879
      %881 = vrot.lane.b32.xlu0 %v392, 16
      %v882 = vpop.permute.xlu0 %881
      %883 = vrot.lane.b32.xlu0 %v395, 16
      %v884 = vpop.permute.xlu0 %883
      %885 = vrot.lane.b32.xlu0 %v397, 16
      %v886 = vpop.permute.xlu0 %885
      %887 = vrot.lane.b32.xlu0 %v400, 16
      %v888 = vpop.permute.xlu0 %887
      %889 = vrot.lane.b32.xlu0 %v402, 16
      %v890 = vpop.permute.xlu0 %889
      %891 = vrot.lane.b32.xlu0 %v405, 16
      %v892 = vpop.permute.xlu0 %891
      %893 = vrot.lane.b32.xlu0 %v407, 16
      %v894 = vpop.permute.xlu0 %893
      %895 = vrot.lane.b32.xlu0 %v494, 16
      %v896 = vpop.permute.xlu0 %895
      %897 = vrot.lane.b32.xlu0 %v496, 16
      %v898 = vpop.permute.xlu0 %897
      %931 = vrot.lane.b32.xlu0 %v416, 20
      %v932 = vpop.permute.xlu0 %931
      %933 = vrot.lane.b32.xlu0 %v418, 20
      %v934 = vpop.permute.xlu0 %933
      %935 = vrot.lane.b32.xlu0 %v421, 20
      %v936 = vpop.permute.xlu0 %935
      %937 = vrot.lane.b32.xlu0 %v423, 20
      %v938 = vpop.permute.xlu0 %937
      %939 = vrot.lane.b32.xlu0 %v426, 20
      %v940 = vpop.permute.xlu0 %939
      %941 = vrot.lane.b32.xlu0 %v428, 20
      %v942 = vpop.permute.xlu0 %941
      %943 = vrot.lane.b32.xlu0 %v431, 20
      %v944 = vpop.permute.xlu0 %943
      %945 = vrot.lane.b32.xlu0 %v433, 20
      %v946 = vpop.permute.xlu0 %945
      %947 = vrot.lane.b32.xlu0 %v436, 20
      %v948 = vpop.permute.xlu0 %947
      %949 = vrot.lane.b32.xlu0 %v438, 20
      %v950 = vpop.permute.xlu0 %949
      %951 = vrot.lane.b32.xlu0 %v441, 20
      %v952 = vpop.permute.xlu0 %951
      %953 = vrot.lane.b32.xlu0 %v443, 20
      %v954 = vpop.permute.xlu0 %953
      %955 = vrot.lane.b32.xlu0 %v446, 20
      %v956 = vpop.permute.xlu0 %955
      %957 = vrot.lane.b32.xlu0 %v448, 20
      %v958 = vpop.permute.xlu0 %957
      %959 = vrot.lane.b32.xlu0 %v451, 20
      %v960 = vpop.permute.xlu0 %959
      %961 = vrot.lane.b32.xlu0 %v453, 20
      %v962 = vpop.permute.xlu0 %961
      %963 = vrot.lane.b32.xlu0 %v456, 20
      %v964 = vpop.permute.xlu0 %963
      %965 = vrot.lane.b32.xlu0 %v458, 20
      %v966 = vpop.permute.xlu0 %965
      %967 = vrot.lane.b32.xlu0 %v461, 20
      %v968 = vpop.permute.xlu0 %967
      %969 = vrot.lane.b32.xlu0 %v463, 20
      %v970 = vpop.permute.xlu0 %969
      %971 = vrot.lane.b32.xlu0 %v466, 20
      %v972 = vpop.permute.xlu0 %971
      %973 = vrot.lane.b32.xlu0 %v468, 20
      %v974 = vpop.permute.xlu0 %973
      %975 = vrot.lane.b32.xlu0 %v471, 20
      %v976 = vpop.permute.xlu0 %975
      %977 = vrot.lane.b32.xlu0 %v473, 20
      %v978 = vpop.permute.xlu0 %977
      %979 = vrot.lane.b32.xlu0 %v476, 20
      %v980 = vpop.permute.xlu0 %979
      %981 = vrot.lane.b32.xlu0 %v478, 20
      %v982 = vpop.permute.xlu0 %981
      %983 = vrot.lane.b32.xlu0 %v481, 20
      %v984 = vpop.permute.xlu0 %983
      %985 = vrot.lane.b32.xlu0 %v483, 20
      %v986 = vpop.permute.xlu0 %985
      %987 = vrot.lane.b32.xlu0 %v486, 20
      %v988 = vpop.permute.xlu0 %987
      %989 = vrot.lane.b32.xlu0 %v488, 20
      %v990 = vpop.permute.xlu0 %989
      %991 = vrot.lane.b32.xlu0 %v531, 20
      %v992 = vpop.permute.xlu0 %991
      %993 = vrot.lane.b32.xlu0 %v533, 20
      %v994 = vpop.permute.xlu0 %993
      %1027 = vrot.lane.b32.xlu0 %v231, 24
      %v1028 = vpop.permute.xlu0 %1027
      %1029 = vrot.lane.b32.xlu0 %v232, 24
      %v1030 = vpop.permute.xlu0 %1029
      %1031 = vrot.lane.b32.xlu0 %v234, 24
      %v1032 = vpop.permute.xlu0 %1031
      %1033 = vrot.lane.b32.xlu0 %v235, 24
      %v1034 = vpop.permute.xlu0 %1033
      %1035 = vrot.lane.b32.xlu0 %v237, 24
      %v1036 = vpop.permute.xlu0 %1035
      %1037 = vrot.lane.b32.xlu0 %v238, 24
      %v1038 = vpop.permute.xlu0 %1037
      %1039 = vrot.lane.b32.xlu0 %v240, 24
      %v1040 = vpop.permute.xlu0 %1039
      %1041 = vrot.lane.b32.xlu0 %v241, 24
      %v1042 = vpop.permute.xlu0 %1041
      %1043 = vrot.lane.b32.xlu0 %v243, 24
      %v1044 = vpop.permute.xlu0 %1043
      %1045 = vrot.lane.b32.xlu0 %v244, 24
      %v1046 = vpop.permute.xlu0 %1045
      %1047 = vrot.lane.b32.xlu0 %v246, 24
      %v1048 = vpop.permute.xlu0 %1047
      %1049 = vrot.lane.b32.xlu0 %v247, 24
      %v1050 = vpop.permute.xlu0 %1049
      %1051 = vrot.lane.b32.xlu0 %v249, 24
      %v1052 = vpop.permute.xlu0 %1051
      %1053 = vrot.lane.b32.xlu0 %v250, 24
      %v1054 = vpop.permute.xlu0 %1053
      %1055 = vrot.lane.b32.xlu0 %v252, 24
      %v1056 = vpop.permute.xlu0 %1055
      %1057 = vrot.lane.b32.xlu0 %v253, 24
      %v1058 = vpop.permute.xlu0 %1057
      %1059 = vrot.lane.b32.xlu0 %v255, 24
      %v1060 = vpop.permute.xlu0 %1059
      %1061 = vrot.lane.b32.xlu0 %v256, 24
      %v1062 = vpop.permute.xlu0 %1061
      %1063 = vrot.lane.b32.xlu0 %v258, 24
      %v1064 = vpop.permute.xlu0 %1063
      %1065 = vrot.lane.b32.xlu0 %v259, 24
      %v1066 = vpop.permute.xlu0 %1065
      %1067 = vrot.lane.b32.xlu0 %v261, 24
      %v1068 = vpop.permute.xlu0 %1067
      %1069 = vrot.lane.b32.xlu0 %v262, 24
      %v1070 = vpop.permute.xlu0 %1069
      %1071 = vrot.lane.b32.xlu0 %v264, 24
      %v1072 = vpop.permute.xlu0 %1071
      %1073 = vrot.lane.b32.xlu0 %v265, 24
      %v1074 = vpop.permute.xlu0 %1073
      %1075 = vrot.lane.b32.xlu0 %v267, 24
      %v1076 = vpop.permute.xlu0 %1075
      %1077 = vrot.lane.b32.xlu0 %v268, 24
      %v1078 = vpop.permute.xlu0 %1077
      %1079 = vrot.lane.b32.xlu0 %v270, 24
      %v1080 = vpop.permute.xlu0 %1079
      %1081 = vrot.lane.b32.xlu0 %v271, 24
      %v1082 = vpop.permute.xlu0 %1081
      %1083 = vrot.lane.b32.xlu0 %v273, 24
      %v1084 = vpop.permute.xlu0 %1083
      %1085 = vrot.lane.b32.xlu0 %v274, 24
      %v1086 = vpop.permute.xlu0 %1085
      %1087 = vrot.lane.b32.xlu0 %v276, 24
      %v1088 = vpop.permute.xlu0 %1087
      %1089 = vrot.lane.b32.xlu0 %v277, 24
      %v1090 = vpop.permute.xlu0 %1089
      %1123 = vrot.lane.b32.xlu0 %v340, 28
      %v1124 = vpop.permute.xlu0 %1123
      %1125 = vrot.lane.b32.xlu0 %v342, 28
      %v1126 = vpop.permute.xlu0 %1125
      %1127 = vrot.lane.b32.xlu0 %v345, 28
      %v1128 = vpop.permute.xlu0 %1127
      %1129 = vrot.lane.b32.xlu0 %v347, 28
      %v1130 = vpop.permute.xlu0 %1129
      %1131 = vrot.lane.b32.xlu0 %v350, 28
      %v1132 = vpop.permute.xlu0 %1131
      %1133 = vrot.lane.b32.xlu0 %v352, 28
      %v1134 = vpop.permute.xlu0 %1133
      %1135 = vrot.lane.b32.xlu0 %v355, 28
      %v1136 = vpop.permute.xlu0 %1135
      %1137 = vrot.lane.b32.xlu0 %v357, 28
      %v1138 = vpop.permute.xlu0 %1137
      %1139 = vrot.lane.b32.xlu0 %v360, 28
      %v1140 = vpop.permute.xlu0 %1139
      %1141 = vrot.lane.b32.xlu0 %v362, 28
      %v1142 = vpop.permute.xlu0 %1141
      %1143 = vrot.lane.b32.xlu0 %v365, 28
      %v1144 = vpop.permute.xlu0 %1143
      %1145 = vrot.lane.b32.xlu0 %v367, 28
      %v1146 = vpop.permute.xlu0 %1145
      %1147 = vrot.lane.b32.xlu0 %v370, 28
      %v1148 = vpop.permute.xlu0 %1147
      %1149 = vrot.lane.b32.xlu0 %v372, 28
      %v1150 = vpop.permute.xlu0 %1149
      %1151 = vrot.lane.b32.xlu0 %v375, 28
      %v1152 = vpop.permute.xlu0 %1151
      %1153 = vrot.lane.b32.xlu0 %v377, 28
      %v1154 = vpop.permute.xlu0 %1153
      %1155 = vrot.lane.b32.xlu0 %v380, 28
      %v1156 = vpop.permute.xlu0 %1155
      %1157 = vrot.lane.b32.xlu0 %v382, 28
      %v1158 = vpop.permute.xlu0 %1157
      %1159 = vrot.lane.b32.xlu0 %v385, 28
      %v1160 = vpop.permute.xlu0 %1159
      %1161 = vrot.lane.b32.xlu0 %v387, 28
      %v1162 = vpop.permute.xlu0 %1161
      %1163 = vrot.lane.b32.xlu0 %v390, 28
      %v1164 = vpop.permute.xlu0 %1163
      %1165 = vrot.lane.b32.xlu0 %v392, 28
      %v1166 = vpop.permute.xlu0 %1165
      %1167 = vrot.lane.b32.xlu0 %v395, 28
      %v1168 = vpop.permute.xlu0 %1167
      %1169 = vrot.lane.b32.xlu0 %v397, 28
      %v1170 = vpop.permute.xlu0 %1169
      %1171 = vrot.lane.b32.xlu0 %v400, 28
      %v1172 = vpop.permute.xlu0 %1171
      %1173 = vrot.lane.b32.xlu0 %v402, 28
      %v1174 = vpop.permute.xlu0 %1173
      %1175 = vrot.lane.b32.xlu0 %v405, 28
      %v1176 = vpop.permute.xlu0 %1175
      %1177 = vrot.lane.b32.xlu0 %v407, 28
      %v1178 = vpop.permute.xlu0 %1177
      %1179 = vrot.lane.b32.xlu0 %v494, 28
      %v1180 = vpop.permute.xlu0 %1179
      %1181 = vrot.lane.b32.xlu0 %v496, 28
      %v1182 = vpop.permute.xlu0 %1181
      %1183 = vrot.lane.b32.xlu0 %v539, 28
      %v1184 = vpop.permute.xlu0 %1183
      %1185 = vrot.lane.b32.xlu0 %v541, 28
      %v1186 = vpop.permute.xlu0 %1185
      %1219 = vrot.lane.b32.xlu0 %v421, 32
      %v1220 = vpop.permute.xlu0 %1219
      %1221 = vrot.lane.b32.xlu0 %v423, 32
      %v1222 = vpop.permute.xlu0 %1221
      %1223 = vrot.lane.b32.xlu0 %v426, 32
      %v1224 = vpop.permute.xlu0 %1223
      %1225 = vrot.lane.b32.xlu0 %v428, 32
      %v1226 = vpop.permute.xlu0 %1225
      %1227 = vrot.lane.b32.xlu0 %v431, 32
      %v1228 = vpop.permute.xlu0 %1227
      %1229 = vrot.lane.b32.xlu0 %v433, 32
      %v1230 = vpop.permute.xlu0 %1229
      %1231 = vrot.lane.b32.xlu0 %v436, 32
      %v1232 = vpop.permute.xlu0 %1231
      %1233 = vrot.lane.b32.xlu0 %v438, 32
      %v1234 = vpop.permute.xlu0 %1233
      %1235 = vrot.lane.b32.xlu0 %v441, 32
      %v1236 = vpop.permute.xlu0 %1235
      %1237 = vrot.lane.b32.xlu0 %v443, 32
      %v1238 = vpop.permute.xlu0 %1237
      %1239 = vrot.lane.b32.xlu0 %v446, 32
      %v1240 = vpop.permute.xlu0 %1239
      %1241 = vrot.lane.b32.xlu0 %v448, 32
      %v1242 = vpop.permute.xlu0 %1241
      %1243 = vrot.lane.b32.xlu0 %v451, 32
      %v1244 = vpop.permute.xlu0 %1243
      %1245 = vrot.lane.b32.xlu0 %v453, 32
      %v1246 = vpop.permute.xlu0 %1245
      %1247 = vrot.lane.b32.xlu0 %v456, 32
      %v1248 = vpop.permute.xlu0 %1247
      %1249 = vrot.lane.b32.xlu0 %v458, 32
      %v1250 = vpop.permute.xlu0 %1249
      %1251 = vrot.lane.b32.xlu0 %v461, 32
      %v1252 = vpop.permute.xlu0 %1251
      %1253 = vrot.lane.b32.xlu0 %v463, 32
      %v1254 = vpop.permute.xlu0 %1253
      %1255 = vrot.lane.b32.xlu0 %v466, 32
      %v1256 = vpop.permute.xlu0 %1255
      %1257 = vrot.lane.b32.xlu0 %v468, 32
      %v1258 = vpop.permute.xlu0 %1257
      %1259 = vrot.lane.b32.xlu0 %v471, 32
      %v1260 = vpop.permute.xlu0 %1259
      %1261 = vrot.lane.b32.xlu0 %v473, 32
      %v1262 = vpop.permute.xlu0 %1261
      %1263 = vrot.lane.b32.xlu0 %v476, 32
      %v1264 = vpop.permute.xlu0 %1263
      %1265 = vrot.lane.b32.xlu0 %v478, 32
      %v1266 = vpop.permute.xlu0 %1265
      %1267 = vrot.lane.b32.xlu0 %v481, 32
      %v1268 = vpop.permute.xlu0 %1267
      %1269 = vrot.lane.b32.xlu0 %v483, 32
      %v1270 = vpop.permute.xlu0 %1269
      %1271 = vrot.lane.b32.xlu0 %v486, 32
      %v1272 = vpop.permute.xlu0 %1271
      %1273 = vrot.lane.b32.xlu0 %v488, 32
      %v1274 = vpop.permute.xlu0 %1273
      %1275 = vrot.lane.b32.xlu0 %v531, 32
      %v1276 = vpop.permute.xlu0 %1275
      %1277 = vrot.lane.b32.xlu0 %v533, 32
      %v1278 = vpop.permute.xlu0 %1277
      %1279 = vrot.lane.b32.xlu0 %v544, 32
      %v1280 = vpop.permute.xlu0 %1279
      %1281 = vrot.lane.b32.xlu0 %v546, 32
      %v1282 = vpop.permute.xlu0 %1281
      %vm1315 = vcmask 31744
      %v1316 = vsel %vm1315, %v225, %v548
      %v1317 = vsel %vm1315, %v226, %v550
      %v1318 = vsel %vm1315, %v228, %v552
      %v1319 = vsel %vm1315, %v229, %v554
      %v1320 = vsel %vm1315, %v231, %v556
      %v1321 = vsel %vm1315, %v232, %v558
      %v1322 = vsel %vm1315, %v234, %v560
      %v1323 = vsel %vm1315, %v235, %v562
      %v1324 = vsel %vm1315, %v237, %v564
      %v1325 = vsel %vm1315, %v238, %v566
      %v1326 = vsel %vm1315, %v240, %v568
      %v1327 = vsel %vm1315, %v241, %v570
      %v1328 = vsel %vm1315, %v243, %v572
      %v1329 = vsel %vm1315, %v244, %v574
      %v1330 = vsel %vm1315, %v246, %v576
      %v1331 = vsel %vm1315, %v247, %v578
      %v1332 = vsel %vm1315, %v249, %v580
      %v1333 = vsel %vm1315, %v250, %v582
      %v1334 = vsel %vm1315, %v252, %v584
      %v1335 = vsel %vm1315, %v253, %v586
      %v1336 = vsel %vm1315, %v255, %v588
      %v1337 = vsel %vm1315, %v256, %v590
      %v1338 = vsel %vm1315, %v258, %v592
      %v1339 = vsel %vm1315, %v259, %v594
      %v1340 = vsel %vm1315, %v261, %v596
      %v1341 = vsel %vm1315, %v262, %v598
      %v1342 = vsel %vm1315, %v264, %v600
      %v1343 = vsel %vm1315, %v265, %v602
      %v1344 = vsel %vm1315, %v267, %v604
      %v1345 = vsel %vm1315, %v268, %v606
      %v1346 = vsel %vm1315, %v270, %v608
      %v1347 = vsel %vm1315, %v271, %v610
      %vm1348 = vcmask 64512
      %v1349 = vsel %vm1348, %v1316, %v644
      %v1350 = vsel %vm1348, %v1317, %v646
      %v1351 = vsel %vm1348, %v1318, %v648
      %v1352 = vsel %vm1348, %v1319, %v650
      %v1353 = vsel %vm1348, %v1320, %v652
      %v1354 = vsel %vm1348, %v1321, %v654
      %v1355 = vsel %vm1348, %v1322, %v656
      %v1356 = vsel %vm1348, %v1323, %v658
      %v1357 = vsel %vm1348, %v1324, %v660
      %v1358 = vsel %vm1348, %v1325, %v662
      %v1359 = vsel %vm1348, %v1326, %v664
      %v1360 = vsel %vm1348, %v1327, %v666
      %v1361 = vsel %vm1348, %v1328, %v668
      %v1362 = vsel %vm1348, %v1329, %v670
      %v1363 = vsel %vm1348, %v1330, %v672
      %v1364 = vsel %vm1348, %v1331, %v674
      %v1365 = vsel %vm1348, %v1332, %v676
      %v1366 = vsel %vm1348, %v1333, %v678
      %v1367 = vsel %vm1348, %v1334, %v680
      %v1368 = vsel %vm1348, %v1335, %v682
      %v1369 = vsel %vm1348, %v1336, %v684
      %v1370 = vsel %vm1348, %v1337, %v686
      %v1371 = vsel %vm1348, %v1338, %v688
      %v1372 = vsel %vm1348, %v1339, %v690
      %v1373 = vsel %vm1348, %v1340, %v692
      %v1374 = vsel %vm1348, %v1341, %v694
      %v1375 = vsel %vm1348, %v1342, %v696
      %v1376 = vsel %vm1348, %v1343, %v698
      %v1377 = vsel %vm1348, %v1344, %v700
      %v1378 = vsel %vm1348, %v1345, %v702
      %v1379 = vsel %vm1348, %v1346, %v704
      %v1380 = vsel %vm1348, %v1347, %v706
      %vm1381 = vcmask 97280
      %v1382 = vsel %vm1381, %v1349, %v740
      %v1383 = vsel %vm1381, %v1350, %v742
      %v1384 = vsel %vm1381, %v1351, %v744
      %v1385 = vsel %vm1381, %v1352, %v746
      %v1386 = vsel %vm1381, %v1353, %v748
      %v1387 = vsel %vm1381, %v1354, %v750
      %v1388 = vsel %vm1381, %v1355, %v752
      %v1389 = vsel %vm1381, %v1356, %v754
      %v1390 = vsel %vm1381, %v1357, %v756
      %v1391 = vsel %vm1381, %v1358, %v758
      %v1392 = vsel %vm1381, %v1359, %v760
      %v1393 = vsel %vm1381, %v1360, %v762
      %v1394 = vsel %vm1381, %v1361, %v764
      %v1395 = vsel %vm1381, %v1362, %v766
      %v1396 = vsel %vm1381, %v1363, %v768
      %v1397 = vsel %vm1381, %v1364, %v770
      %v1398 = vsel %vm1381, %v1365, %v772
      %v1399 = vsel %vm1381, %v1366, %v774
      %v1400 = vsel %vm1381, %v1367, %v776
      %v1401 = vsel %vm1381, %v1368, %v778
      %v1402 = vsel %vm1381, %v1369, %v780
      %v1403 = vsel %vm1381, %v1370, %v782
      %v1404 = vsel %vm1381, %v1371, %v784
      %v1405 = vsel %vm1381, %v1372, %v786
      %v1406 = vsel %vm1381, %v1373, %v788
      %v1407 = vsel %vm1381, %v1374, %v790
      %v1408 = vsel %vm1381, %v1375, %v792
      %v1409 = vsel %vm1381, %v1376, %v794
      %v1410 = vsel %vm1381, %v1377, %v796
      %v1411 = vsel %vm1381, %v1378, %v798
      %v1412 = vsel %vm1381, %v1379, %v800
      %v1413 = vsel %vm1381, %v1380, %v802
      %vm1414 = vcmask 130048
      %v1415 = vsel %vm1414, %v1382, %v836
      %v1416 = vsel %vm1414, %v1383, %v838
      %v1417 = vsel %vm1414, %v1384, %v840
      %v1418 = vsel %vm1414, %v1385, %v842
      %v1419 = vsel %vm1414, %v1386, %v844
      %v1420 = vsel %vm1414, %v1387, %v846
      %v1421 = vsel %vm1414, %v1388, %v848
      %v1422 = vsel %vm1414, %v1389, %v850
      %v1423 = vsel %vm1414, %v1390, %v852
      %v1424 = vsel %vm1414, %v1391, %v854
      %v1425 = vsel %vm1414, %v1392, %v856
      %v1426 = vsel %vm1414, %v1393, %v858
      %v1427 = vsel %vm1414, %v1394, %v860
      %v1428 = vsel %vm1414, %v1395, %v862
      %v1429 = vsel %vm1414, %v1396, %v864
      %v1430 = vsel %vm1414, %v1397, %v866
      %v1431 = vsel %vm1414, %v1398, %v868
      %v1432 = vsel %vm1414, %v1399, %v870
      %v1433 = vsel %vm1414, %v1400, %v872
      %v1434 = vsel %vm1414, %v1401, %v874
      %v1435 = vsel %vm1414, %v1402, %v876
      %v1436 = vsel %vm1414, %v1403, %v878
      %v1437 = vsel %vm1414, %v1404, %v880
      %v1438 = vsel %vm1414, %v1405, %v882
      %v1439 = vsel %vm1414, %v1406, %v884
      %v1440 = vsel %vm1414, %v1407, %v886
      %v1441 = vsel %vm1414, %v1408, %v888
      %v1442 = vsel %vm1414, %v1409, %v890
      %v1443 = vsel %vm1414, %v1410, %v892
      %v1444 = vsel %vm1414, %v1411, %v894
      %v1445 = vsel %vm1414, %v1412, %v896
      %v1446 = vsel %vm1414, %v1413, %v898
      %vm1447 = vcmask 162816
      %v1448 = vsel %vm1447, %v1415, %v932
      %v1449 = vsel %vm1447, %v1416, %v934
      %v1450 = vsel %vm1447, %v1417, %v936
      %v1451 = vsel %vm1447, %v1418, %v938
      %v1452 = vsel %vm1447, %v1419, %v940
      %v1453 = vsel %vm1447, %v1420, %v942
      %v1454 = vsel %vm1447, %v1421, %v944
      %v1455 = vsel %vm1447, %v1422, %v946
      %v1456 = vsel %vm1447, %v1423, %v948
      %v1457 = vsel %vm1447, %v1424, %v950
      %v1458 = vsel %vm1447, %v1425, %v952
      %v1459 = vsel %vm1447, %v1426, %v954
      %v1460 = vsel %vm1447, %v1427, %v956
      %v1461 = vsel %vm1447, %v1428, %v958
      %v1462 = vsel %vm1447, %v1429, %v960
      %v1463 = vsel %vm1447, %v1430, %v962
      %v1464 = vsel %vm1447, %v1431, %v964
      %v1465 = vsel %vm1447, %v1432, %v966
      %v1466 = vsel %vm1447, %v1433, %v968
      %v1467 = vsel %vm1447, %v1434, %v970
      %v1468 = vsel %vm1447, %v1435, %v972
      %v1469 = vsel %vm1447, %v1436, %v974
      %v1470 = vsel %vm1447, %v1437, %v976
      %v1471 = vsel %vm1447, %v1438, %v978
      %v1472 = vsel %vm1447, %v1439, %v980
      %v1473 = vsel %vm1447, %v1440, %v982
      %v1474 = vsel %vm1447, %v1441, %v984
      %v1475 = vsel %vm1447, %v1442, %v986
      %v1476 = vsel %vm1447, %v1443, %v988
      %v1477 = vsel %vm1447, %v1444, %v990
      %v1478 = vsel %vm1447, %v1445, %v992
      %v1479 = vsel %vm1447, %v1446, %v994
      %vm1480 = vcmask 195584
      %v1481 = vsel %vm1480, %v1448, %v1028
      %v1482 = vsel %vm1480, %v1449, %v1030
      %v1483 = vsel %vm1480, %v1450, %v1032
      %v1484 = vsel %vm1480, %v1451, %v1034
      %v1485 = vsel %vm1480, %v1452, %v1036
      %v1486 = vsel %vm1480, %v1453, %v1038
      %v1487 = vsel %vm1480, %v1454, %v1040
      %v1488 = vsel %vm1480, %v1455, %v1042
      %v1489 = vsel %vm1480, %v1456, %v1044
      %v1490 = vsel %vm1480, %v1457, %v1046
      %v1491 = vsel %vm1480, %v1458, %v1048
      %v1492 = vsel %vm1480, %v1459, %v1050
      %v1493 = vsel %vm1480, %v1460, %v1052
      %v1494 = vsel %vm1480, %v1461, %v1054
      %v1495 = vsel %vm1480, %v1462, %v1056
      %v1496 = vsel %vm1480, %v1463, %v1058
      %v1497 = vsel %vm1480, %v1464, %v1060
      %v1498 = vsel %vm1480, %v1465, %v1062
      %v1499 = vsel %vm1480, %v1466, %v1064
      %v1500 = vsel %vm1480, %v1467, %v1066
      %v1501 = vsel %vm1480, %v1468, %v1068
      %v1502 = vsel %vm1480, %v1469, %v1070
      %v1503 = vsel %vm1480, %v1470, %v1072
      %v1504 = vsel %vm1480, %v1471, %v1074
      %v1505 = vsel %vm1480, %v1472, %v1076
      %v1506 = vsel %vm1480, %v1473, %v1078
      %v1507 = vsel %vm1480, %v1474, %v1080
      %v1508 = vsel %vm1480, %v1475, %v1082
      %v1509 = vsel %vm1480, %v1476, %v1084
      %v1510 = vsel %vm1480, %v1477, %v1086
      %v1511 = vsel %vm1480, %v1478, %v1088
      %v1512 = vsel %vm1480, %v1479, %v1090
      %vm1513 = vcmask 228352
      %v1514 = vsel %vm1513, %v1481, %v1124
      %v1515 = vsel %vm1513, %v1482, %v1126
      %v1516 = vsel %vm1513, %v1483, %v1128
      %v1517 = vsel %vm1513, %v1484, %v1130
      %v1518 = vsel %vm1513, %v1485, %v1132
      %v1519 = vsel %vm1513, %v1486, %v1134
      %v1520 = vsel %vm1513, %v1487, %v1136
      %v1521 = vsel %vm1513, %v1488, %v1138
      %v1522 = vsel %vm1513, %v1489, %v1140
      %v1523 = vsel %vm1513, %v1490, %v1142
      %v1524 = vsel %vm1513, %v1491, %v1144
      %v1525 = vsel %vm1513, %v1492, %v1146
      %v1526 = vsel %vm1513, %v1493, %v1148
      %v1527 = vsel %vm1513, %v1494, %v1150
      %v1528 = vsel %vm1513, %v1495, %v1152
      %v1529 = vsel %vm1513, %v1496, %v1154
      %v1530 = vsel %vm1513, %v1497, %v1156
      %v1531 = vsel %vm1513, %v1498, %v1158
      %v1532 = vsel %vm1513, %v1499, %v1160
      %v1533 = vsel %vm1513, %v1500, %v1162
      %v1534 = vsel %vm1513, %v1501, %v1164
      %v1535 = vsel %vm1513, %v1502, %v1166
      %v1536 = vsel %vm1513, %v1503, %v1168
      %v1537 = vsel %vm1513, %v1504, %v1170
      %v1538 = vsel %vm1513, %v1505, %v1172
      %v1539 = vsel %vm1513, %v1506, %v1174
      %v1540 = vsel %vm1513, %v1507, %v1176
      %v1541 = vsel %vm1513, %v1508, %v1178
      %v1542 = vsel %vm1513, %v1509, %v1180
      %v1543 = vsel %vm1513, %v1510, %v1182
      %v1544 = vsel %vm1513, %v1511, %v1184
      %v1545 = vsel %vm1513, %v1512, %v1186
      %vm1546 = vcmask 261120
      %v1547 = vsel %vm1546, %v1514, %v1220
      %v1548 = vsel %vm1546, %v1515, %v1222
      %v1549 = vsel %vm1546, %v1516, %v1224
      %v1550 = vsel %vm1546, %v1517, %v1226
      %v1551 = vsel %vm1546, %v1518, %v1228
      %v1552 = vsel %vm1546, %v1519, %v1230
      %v1553 = vsel %vm1546, %v1520, %v1232
      %v1554 = vsel %vm1546, %v1521, %v1234
      %v1555 = vsel %vm1546, %v1522, %v1236
      %v1556 = vsel %vm1546, %v1523, %v1238
      %v1557 = vsel %vm1546, %v1524, %v1240
      %v1558 = vsel %vm1546, %v1525, %v1242
      %v1559 = vsel %vm1546, %v1526, %v1244
      %v1560 = vsel %vm1546, %v1527, %v1246
      %v1561 = vsel %vm1546, %v1528, %v1248
      %v1562 = vsel %vm1546, %v1529, %v1250
      %v1563 = vsel %vm1546, %v1530, %v1252
      %v1564 = vsel %vm1546, %v1531, %v1254
      %v1565 = vsel %vm1546, %v1532, %v1256
      %v1566 = vsel %vm1546, %v1533, %v1258
      %v1567 = vsel %vm1546, %v1534, %v1260
      %v1568 = vsel %vm1546, %v1535, %v1262
      %v1569 = vsel %vm1546, %v1536, %v1264
      %v1570 = vsel %vm1546, %v1537, %v1266
      %v1571 = vsel %vm1546, %v1538, %v1268
      %v1572 = vsel %vm1546, %v1539, %v1270
      %v1573 = vsel %vm1546, %v1540, %v1272
      %v1574 = vsel %vm1546, %v1541, %v1274
      %v1575 = vsel %vm1546, %v1542, %v1276
      %v1576 = vsel %vm1546, %v1543, %v1278
      %v1577 = vsel %vm1546, %v1544, %v1280
      %v1578 = vsel %vm1546, %v1545, %v1282
      %v1579 = vld [vmem:[%s1] sm:$0xff]
      %v1580 = vld [vmem:[%s1 + $0x8] sm:$0xff]
      %v1581 = vld [vmem:[%s1 + $0x10] sm:$0xff]
      %v1582 = vld [vmem:[%s1 + $0x18] sm:$0xff]
      %v1583 = vld [vmem:[%s1 + $0x20] sm:$0xf]
      %v1584 = vld [vmem:[%s2] sm:$0x1]
      %v1586 = vlaneseq
      %v1587 = vshrl.u32 %v1586, 7
      %v1588 = vsub.s32 0, %v1587
      %v1589 = vrot.slane %v1584, %v1588
      %vm1591 = vcmask 293888
      %v1593 = vsel %vm1591, %v1547, 0
      %v1596 = vsel %vm1591, %v1548, 0
      %v1599 = vsel %vm1591, %v1549, 0
      %v1602 = vsel %vm1591, %v1550, 0
      %v1605 = vsel %vm1591, %v1551, 0
      %v1608 = vsel %vm1591, %v1552, 0
      %v1611 = vsel %vm1591, %v1553, 0
      %v1614 = vsel %vm1591, %v1554, 0
      %v1617 = vsel %vm1591, %v1555, 0
      %v1620 = vsel %vm1591, %v1556, 0
      %v1623 = vsel %vm1591, %v1557, 0
      %v1626 = vsel %vm1591, %v1558, 0
      %v1629 = vsel %vm1591, %v1559, 0
      %v1632 = vsel %vm1591, %v1560, 0
      %v1635 = vsel %vm1591, %v1561, 0
      %v1638 = vsel %vm1591, %v1562, 0
      %v1641 = vsel %vm1591, %v1563, 0
      %v1644 = vsel %vm1591, %v1564, 0
      %v1647 = vsel %vm1591, %v1565, 0
      %v1650 = vsel %vm1591, %v1566, 0
      %v1653 = vsel %vm1591, %v1567, 0
      %v1656 = vsel %vm1591, %v1568, 0
      %v1659 = vsel %vm1591, %v1569, 0
      %v1662 = vsel %vm1591, %v1570, 0
      %v1665 = vsel %vm1591, %v1571, 0
      %v1668 = vsel %vm1591, %v1572, 0
      %v1671 = vsel %vm1591, %v1573, 0
      %v1674 = vsel %vm1591, %v1574, 0
      %v1677 = vsel %vm1591, %v1575, 0
      %v1680 = vsel %vm1591, %v1576, 0
      %v1683 = vsel %vm1591, %v1577, 0
      %v1686 = vsel %vm1591, %v1578, 0
      %vm1688 = vcmask 1043456
      %v1690 = vsel %vm1688, %v1583, 0
      %1692 = vmatprep.subr.mxu0 0.0
      %1693 = vmatpush1.msra.mxu0 %v1579
      %1694 = vmatprep.subr.mxu0 0.0
      %1695 = vmatpush1.msra.mxu0 %v1580
      %1696 = vmatprep.subr.mxu0 0.0
      %1697 = vmatpush1.msra.mxu0 %v1581
      %1698 = vmatprep.subr.mxu0 0.0
      %1699 = vmatpush1.msra.mxu0 %v1582
      %1700 = vmatprep.subr.mxu0 0.0
      %1701 = vmatpush1.msra.mxu0 %v1690
      %1702 = vmatprep.subr.mxu0 0.0
      %1703 = vmatpush1.msra.mxu0 0.0
      %1704 = vmatprep.subr.mxu0 0.0
      %1705 = vmatpush1.msra.mxu0 0.0
      %1706 = vmatprep.subr.mxu0 0.0
      %1707 = vmatpush1.msra.mxu0 0.0
      %1708 = vmatprep.subr.mxu0 0.0
      %1709 = vmatpush1.msra.mxu0 0.0
      %1710 = vmatprep.subr.mxu0 0.0
      %1711 = vmatpush1.msra.mxu0 0.0
      %1712 = vmatprep.subr.mxu0 0.0
      %1713 = vmatpush1.msra.mxu0 0.0
      %1714 = vmatprep.subr.mxu0 0.0
      %1715 = vmatpush1.msra.mxu0 0.0
      %1716 = vmatprep.subr.mxu0 0.0
      %1717 = vmatpush1.msra.mxu0 0.0
      %1718 = vmatprep.subr.mxu0 0.0
      %1719 = vmatpush1.msra.mxu0 0.0
      %1720 = vmatprep.subr.mxu0 0.0
      %1721 = vmatpush1.msra.mxu0 0.0
      %1722 = vmatprep.subr.mxu0 0.0
      %1723 = vmatpush1.msra.mxu0 0.0
      %1724 = vmatprep.subr.mxu0 0.0
      %1725 = vmatpush1.msra.mxu0 0.0
      %1726 = vmatprep.subr.mxu0 0.0
      %1727 = vmatpush1.msra.mxu0 0.0
      %1728 = vmatprep.subr.mxu0 0.0
      %1729 = vmatpush1.msra.mxu0 0.0
      %1730 = vmatprep.subr.mxu0 0.0
      %1731 = vmatpush1.msra.mxu0 0.0
      %1732 = vmatprep.subr.mxu0 0.0
      %1733 = vmatpush1.msra.mxu0 0.0
      %1734 = vmatprep.subr.mxu0 0.0
      %1735 = vmatpush1.msra.mxu0 0.0
      %1736 = vmatprep.subr.mxu0 0.0
      %1737 = vmatpush1.msra.mxu0 0.0
      %1738 = vmatprep.subr.mxu0 0.0
      %1739 = vmatpush1.msra.mxu0 0.0
      %1740 = vmatprep.subr.mxu0 0.0
      %1741 = vmatpush1.msra.mxu0 0.0
      %1742 = vmatprep.subr.mxu0 0.0
      %1743 = vmatpush1.msra.mxu0 0.0
      %1744 = vmatprep.subr.mxu0 0.0
      %1745 = vmatpush1.msra.mxu0 0.0
      %1746 = vmatprep.subr.mxu0 0.0
      %1747 = vmatpush1.msra.mxu0 0.0
      %1748 = vmatprep.subr.mxu0 0.0
      %1749 = vmatpush1.msra.mxu0 0.0
      %1750 = vmatprep.subr.mxu0 0.0
      %1751 = vmatpush1.msra.mxu0 0.0
      %1752 = vmatprep.subr.mxu0 0.0
      %1753 = vmatpush1.msra.mxu0 0.0
      %1754 = vmatprep.subr.mxu0 0.0
      %1755 = vmatpush1.msra.mxu0 0.0
      %1756 = vmatprep.mubr.f32.mxu0 0.0
      %1757 = vmatmul.mubr.f32.gmra.mrb[0].mxu0 %v1593
      %v1758 = vpop.f32.mrb[0].mxu0
      %v1759 = vadd.f32 %v1589, %v1758
      %v1760 = vpop.f32.mrb[0].mxu0
      %1761 = vmatprep.mubr.f32.mxu0 0.0
      %1762 = vmatmul.mubr.f32.gmra.mrb[0].mxu0 %v1596
      %v1763 = vpop.f32.mrb[0].mxu0
      %v1764 = vadd.f32 %v1589, %v1763
      %v1765 = vpop.f32.mrb[0].mxu0
      %1766 = vmatprep.mubr.f32.mxu0 0.0
      %1767 = vmatmul.mubr.f32.gmra.mrb[0].mxu0 %v1599
      %v1768 = vpop.f32.mrb[0].mxu0
      %v1769 = vadd.f32 %v1589, %v1768
      %v1770 = vpop.f32.mrb[0].mxu0
      %1771 = vmatprep.mubr.f32.mxu0 0.0
      %1772 = vmatmul.mubr.f32.gmra.mrb[0].mxu0 %v1602
      %v1773 = vpop.f32.mrb[0].mxu0
      %v1774 = vadd.f32 %v1589, %v1773
      %v1775 = vpop.f32.mrb[0].mxu0
      %1776 = vmatprep.mubr.f32.mxu0 0.0
      %1777 = vmatmul.mubr.f32.gmra.mrb[0].mxu0 %v1605
      %v1778 = vpop.f32.mrb[0].mxu0
      %v1779 = vadd.f32 %v1589, %v1778
      %v1780 = vpop.f32.mrb[0].mxu0
      %1781 = vmatprep.mubr.f32.mxu0 0.0
      %1782 = vmatmul.mubr.f32.gmra.mrb[0].mxu0 %v1608
      %v1783 = vpop.f32.mrb[0].mxu0
      %v1784 = vadd.f32 %v1589, %v1783
      %v1785 = vpop.f32.mrb[0].mxu0
      %1786 = vmatprep.mubr.f32.mxu0 0.0
      %1787 = vmatmul.mubr.f32.gmra.mrb[0].mxu0 %v1611
      %v1788 = vpop.f32.mrb[0].mxu0
      %v1789 = vadd.f32 %v1589, %v1788
      %v1790 = vpop.f32.mrb[0].mxu0
      %1791 = vmatprep.mubr.f32.mxu0 0.0
      %1792 = vmatmul.mubr.f32.gmra.mrb[0].mxu0 %v1614
      %v1793 = vpop.f32.mrb[0].mxu0
      %v1794 = vadd.f32 %v1589, %v1793
      %v1795 = vpop.f32.mrb[0].mxu0
      %1796 = vmatprep.mubr.f32.mxu0 0.0
      %1797 = vmatmul.mubr.f32.gmra.mrb[0].mxu0 %v1617
      %v1798 = vpop.f32.mrb[0].mxu0
      %v1799 = vadd.f32 %v1589, %v1798
      %v1800 = vpop.f32.mrb[0].mxu0
      %1801 = vmatprep.mubr.f32.mxu0 0.0
      %1802 = vmatmul.mubr.f32.gmra.mrb[0].mxu0 %v1620
      %v1803 = vpop.f32.mrb[0].mxu0
      %v1804 = vadd.f32 %v1589, %v1803
      %v1805 = vpop.f32.mrb[0].mxu0
      %1806 = vmatprep.mubr.f32.mxu0 0.0
      %1807 = vmatmul.mubr.f32.gmra.mrb[0].mxu0 %v1623
      %v1808 = vpop.f32.mrb[0].mxu0
      %v1809 = vadd.f32 %v1589, %v1808
      %v1810 = vpop.f32.mrb[0].mxu0
      %1811 = vmatprep.mubr.f32.mxu0 0.0
      %1812 = vmatmul.mubr.f32.gmra.mrb[0].mxu0 %v1626
      %v1813 = vpop.f32.mrb[0].mxu0
      %v1814 = vadd.f32 %v1589, %v1813
      %v1815 = vpop.f32.mrb[0].mxu0
      %1816 = vmatprep.mubr.f32.mxu0 0.0
      %1817 = vmatmul.mubr.f32.gmra.mrb[0].mxu0 %v1629
      %v1818 = vpop.f32.mrb[0].mxu0
      %v1819 = vadd.f32 %v1589, %v1818
      %v1820 = vpop.f32.mrb[0].mxu0
      %1821 = vmatprep.mubr.f32.mxu0 0.0
      %1822 = vmatmul.mubr.f32.gmra.mrb[0].mxu0 %v1632
      %v1823 = vpop.f32.mrb[0].mxu0
      %v1824 = vadd.f32 %v1589, %v1823
      %v1825 = vpop.f32.mrb[0].mxu0
      %1826 = vmatprep.mubr.f32.mxu0 0.0
      %1827 = vmatmul.mubr.f32.gmra.mrb[0].mxu0 %v1635
      %v1828 = vpop.f32.mrb[0].mxu0
      %v1829 = vadd.f32 %v1589, %v1828
      %v1830 = vpop.f32.mrb[0].mxu0
      %1831 = vmatprep.mubr.f32.mxu0 0.0
      %1832 = vmatmul.mubr.f32.gmra.mrb[0].mxu0 %v1638
      %v1833 = vpop.f32.mrb[0].mxu0
      %v1834 = vadd.f32 %v1589, %v1833
      %v1835 = vpop.f32.mrb[0].mxu0
      %1836 = vmatprep.mubr.f32.mxu0 0.0
      %1837 = vmatmul.mubr.f32.gmra.mrb[0].mxu0 %v1641
      %v1838 = vpop.f32.mrb[0].mxu0
      %v1839 = vadd.f32 %v1589, %v1838
      %v1840 = vpop.f32.mrb[0].mxu0
      %1841 = vmatprep.mubr.f32.mxu0 0.0
      %1842 = vmatmul.mubr.f32.gmra.mrb[0].mxu0 %v1644
      %v1843 = vpop.f32.mrb[0].mxu0
      %v1844 = vadd.f32 %v1589, %v1843
      %v1845 = vpop.f32.mrb[0].mxu0
      %1846 = vmatprep.mubr.f32.mxu0 0.0
      %1847 = vmatmul.mubr.f32.gmra.mrb[0].mxu0 %v1647
      %v1848 = vpop.f32.mrb[0].mxu0
      %v1849 = vadd.f32 %v1589, %v1848
      %v1850 = vpop.f32.mrb[0].mxu0
      %1851 = vmatprep.mubr.f32.mxu0 0.0
      %1852 = vmatmul.mubr.f32.gmra.mrb[0].mxu0 %v1650
      %v1853 = vpop.f32.mrb[0].mxu0
      %v1854 = vadd.f32 %v1589, %v1853
      %v1855 = vpop.f32.mrb[0].mxu0
      %1856 = vmatprep.mubr.f32.mxu0 0.0
      %1857 = vmatmul.mubr.f32.gmra.mrb[0].mxu0 %v1653
      %v1858 = vpop.f32.mrb[0].mxu0
      %v1859 = vadd.f32 %v1589, %v1858
      %v1860 = vpop.f32.mrb[0].mxu0
      %1861 = vmatprep.mubr.f32.mxu0 0.0
      %1862 = vmatmul.mubr.f32.gmra.mrb[0].mxu0 %v1656
      %v1863 = vpop.f32.mrb[0].mxu0
      %v1864 = vadd.f32 %v1589, %v1863
      %v1865 = vpop.f32.mrb[0].mxu0
      %1866 = vmatprep.mubr.f32.mxu0 0.0
      %1867 = vmatmul.mubr.f32.gmra.mrb[0].mxu0 %v1659
      %v1868 = vpop.f32.mrb[0].mxu0
      %v1869 = vadd.f32 %v1589, %v1868
      %v1870 = vpop.f32.mrb[0].mxu0
      %1871 = vmatprep.mubr.f32.mxu0 0.0
      %1872 = vmatmul.mubr.f32.gmra.mrb[0].mxu0 %v1662
      %v1873 = vpop.f32.mrb[0].mxu0
      %v1874 = vadd.f32 %v1589, %v1873
      %v1875 = vpop.f32.mrb[0].mxu0
      %1876 = vmatprep.mubr.f32.mxu0 0.0
      %1877 = vmatmul.mubr.f32.gmra.mrb[0].mxu0 %v1665
      %v1878 = vpop.f32.mrb[0].mxu0
      %v1879 = vadd.f32 %v1589, %v1878
      %v1880 = vpop.f32.mrb[0].mxu0
      %1881 = vmatprep.mubr.f32.mxu0 0.0
      %1882 = vmatmul.mubr.f32.gmra.mrb[0].mxu0 %v1668
      %v1883 = vpop.f32.mrb[0].mxu0
      %v1884 = vadd.f32 %v1589, %v1883
      %v1885 = vpop.f32.mrb[0].mxu0
      %1886 = vmatprep.mubr.f32.mxu0 0.0
      %1887 = vmatmul.mubr.f32.gmra.mrb[0].mxu0 %v1671
      %v1888 = vpop.f32.mrb[0].mxu0
      %v1889 = vadd.f32 %v1589, %v1888
      %v1890 = vpop.f32.mrb[0].mxu0
      %1891 = vmatprep.mubr.f32.mxu0 0.0
      %1892 = vmatmul.mubr.f32.gmra.mrb[0].mxu0 %v1674
      %v1893 = vpop.f32.mrb[0].mxu0
      %v1894 = vadd.f32 %v1589, %v1893
      %v1895 = vpop.f32.mrb[0].mxu0
      %1896 = vmatprep.mubr.f32.mxu0 0.0
      %1897 = vmatmul.mubr.f32.gmra.mrb[0].mxu0 %v1677
      %v1898 = vpop.f32.mrb[0].mxu0
      %v1899 = vadd.f32 %v1589, %v1898
      %v1900 = vpop.f32.mrb[0].mxu0
      %1901 = vmatprep.mubr.f32.mxu0 0.0
      %1902 = vmatmul.mubr.f32.gmra.mrb[0].mxu0 %v1680
      %v1903 = vpop.f32.mrb[0].mxu0
      %v1904 = vadd.f32 %v1589, %v1903
      %v1905 = vpop.f32.mrb[0].mxu0
      %1906 = vmatprep.mubr.f32.mxu0 0.0
      %1907 = vmatmul.mubr.f32.gmra.mrb[0].mxu0 %v1683
      %v1908 = vpop.f32.mrb[0].mxu0
      %v1909 = vadd.f32 %v1589, %v1908
      %v1910 = vpop.f32.mrb[0].mxu0
      %1911 = vmatprep.mubr.f32.mxu0 0.0
      %1912 = vmatmul.mubr.f32.gmra.mrb[0].mxu0 %v1686
      %v1913 = vpop.f32.mrb[0].mxu0
      %v1914 = vadd.f32 %v1589, %v1913
      %v1915 = vpop.f32.mrb[0].mxu0
      %1916 = vdwg.mxu0
      %v1917 = vmax.f32 %v1759, 0.0
      %v1918 = vmax.f32 %v1764, 0.0
      %v1919 = vmax.f32 %v1769, 0.0
      %v1920 = vmax.f32 %v1774, 0.0
      %v1921 = vmax.f32 %v1779, 0.0
      %v1922 = vmax.f32 %v1784, 0.0
      %v1923 = vmax.f32 %v1789, 0.0
      %v1924 = vmax.f32 %v1794, 0.0
      %v1925 = vmax.f32 %v1799, 0.0
      %v1926 = vmax.f32 %v1804, 0.0
      %v1927 = vmax.f32 %v1809, 0.0
      %v1928 = vmax.f32 %v1814, 0.0
      %v1929 = vmax.f32 %v1819, 0.0
      %v1930 = vmax.f32 %v1824, 0.0
      %v1931 = vmax.f32 %v1829, 0.0
      %v1932 = vmax.f32 %v1834, 0.0
      %v1933 = vmax.f32 %v1839, 0.0
      %v1934 = vmax.f32 %v1844, 0.0
      %v1935 = vmax.f32 %v1849, 0.0
      %v1936 = vmax.f32 %v1854, 0.0
      %v1937 = vmax.f32 %v1859, 0.0
      %v1938 = vmax.f32 %v1864, 0.0
      %v1939 = vmax.f32 %v1869, 0.0
      %v1940 = vmax.f32 %v1874, 0.0
      %v1941 = vmax.f32 %v1879, 0.0
      %v1942 = vmax.f32 %v1884, 0.0
      %v1943 = vmax.f32 %v1889, 0.0
      %v1944 = vmax.f32 %v1894, 0.0
      %v1945 = vmax.f32 %v1899, 0.0
      %v1946 = vmax.f32 %v1904, 0.0
      %v1947 = vmax.f32 %v1909, 0.0
      %v1948 = vmax.f32 %v1914, 0.0
      %vm1982 = vcmask 1040384
      %v1983 = vrot.slane 0.0, 7
      %v1984 = vsel %vm1982, %v1983, %v1983
      %v1985 = vrot.slane %v1917, 7
      %v1986 = vrot.slane %v1918, 7
      %v1987 = vsel %vm1982, %v1985, %v1986
      %v1988 = vrot.slane %v1919, 7
      %v1989 = vrot.slane %v1920, 7
      %v1990 = vsel %vm1982, %v1988, %v1989
      %v1991 = vrot.slane %v1921, 7
      %v1992 = vrot.slane %v1922, 7
      %v1993 = vsel %vm1982, %v1991, %v1992
      %v1994 = vrot.slane %v1923, 7
      %v1995 = vrot.slane %v1924, 7
      %v1996 = vsel %vm1982, %v1994, %v1995
      %v1997 = vrot.slane %v1925, 7
      %v1998 = vrot.slane %v1926, 7
      %v1999 = vsel %vm1982, %v1997, %v1998
      %v2000 = vrot.slane %v1927, 7
      %v2001 = vrot.slane %v1928, 7
      %v2002 = vsel %vm1982, %v2000, %v2001
      %v2003 = vrot.slane %v1929, 7
      %v2004 = vrot.slane %v1930, 7
      %v2005 = vsel %vm1982, %v2003, %v2004
      %v2006 = vrot.slane %v1931, 7
      %v2007 = vrot.slane %v1932, 7
      %v2008 = vsel %vm1982, %v2006, %v2007
      %v2009 = vrot.slane %v1933, 7
      %v2010 = vrot.slane %v1934, 7
      %v2011 = vsel %vm1982, %v2009, %v2010
      %v2012 = vrot.slane %v1935, 7
      %v2013 = vrot.slane %v1936, 7
      %v2014 = vsel %vm1982, %v2012, %v2013
      %v2015 = vrot.slane %v1937, 7
      %v2016 = vrot.slane %v1938, 7
      %v2017 = vsel %vm1982, %v2015, %v2016
      %v2018 = vrot.slane %v1939, 7
      %v2019 = vrot.slane %v1940, 7
      %v2020 = vsel %vm1982, %v2018, %v2019
      %v2021 = vrot.slane %v1941, 7
      %v2022 = vrot.slane %v1942, 7
      %v2023 = vsel %vm1982, %v2021, %v2022
      %v2024 = vrot.slane %v1943, 7
      %v2025 = vrot.slane %v1944, 7
      %v2026 = vsel %vm1982, %v2024, %v2025
      %v2027 = vrot.slane %v1945, 7
      %v2028 = vrot.slane %v1946, 7
      %v2029 = vsel %vm1982, %v2027, %v2028
      %v2030 = vrot.slane %v1947, 7
      %v2031 = vrot.slane %v1948, 7
      %v2032 = vsel %vm1982, %v2030, %v2031
      %v2082 = vsel %vm1982, 0.0, %v1983
      %v2083 = vsel %vm1982, 0.0, %v1985
      %v2084 = vsel %vm1982, 0.0, %v1988
      %v2085 = vsel %vm1982, 0.0, %v1991
      %v2086 = vsel %vm1982, 0.0, %v1994
      %v2087 = vsel %vm1982, 0.0, %v1997
      %v2088 = vsel %vm1982, 0.0, %v2000
      %v2089 = vsel %vm1982, 0.0, %v2003
      %v2090 = vsel %vm1982, 0.0, %v2006
      %v2091 = vsel %vm1982, 0.0, %v2009
      %v2092 = vsel %vm1982, 0.0, %v2012
      %v2093 = vsel %vm1982, 0.0, %v2015
      %v2094 = vsel %vm1982, 0.0, %v2018
      %v2095 = vsel %vm1982, 0.0, %v2021
      %v2096 = vsel %vm1982, 0.0, %v2024
      %v2097 = vsel %vm1982, 0.0, %v2027
      %v2098 = vsel %vm1982, 0.0, %v2030
      %v2099 = vsel %vm1982, %v1983, 0.0
      %v2100 = vsel %vm1982, %v1986, 0.0
      %v2101 = vsel %vm1982, %v1989, 0.0
      %v2102 = vsel %vm1982, %v1992, 0.0
      %v2103 = vsel %vm1982, %v1995, 0.0
      %v2104 = vsel %vm1982, %v1998, 0.0
      %v2105 = vsel %vm1982, %v2001, 0.0
      %v2106 = vsel %vm1982, %v2004, 0.0
      %v2107 = vsel %vm1982, %v2007, 0.0
      %v2108 = vsel %vm1982, %v2010, 0.0
      %v2109 = vsel %vm1982, %v2013, 0.0
      %v2110 = vsel %vm1982, %v2016, 0.0
      %v2111 = vsel %vm1982, %v2019, 0.0
      %v2112 = vsel %vm1982, %v2022, 0.0
      %v2113 = vsel %vm1982, %v2025, 0.0
      %v2114 = vsel %vm1982, %v2028, 0.0
      %v2115 = vsel %vm1982, %v2031, 0.0
      %v2148 = vrot.slane %v2082, 1
      %v2149 = vrot.slane %v1984, 1
      %v2150 = vsel %vm327, %v2148, %v2149
      %v2151 = vrot.slane %v2099, 1
      %v2152 = vsel %vm327, %v2149, %v2151
      %v2153 = vrot.slane %v2083, 1
      %v2154 = vrot.slane %v1987, 1
      %v2155 = vsel %vm327, %v2153, %v2154
      %v2156 = vrot.slane %v2100, 1
      %v2157 = vsel %vm327, %v2154, %v2156
      %v2158 = vrot.slane %v2084, 1
      %v2159 = vrot.slane %v1990, 1
      %v2160 = vsel %vm327, %v2158, %v2159
      %v2161 = vrot.slane %v2101, 1
      %v2162 = vsel %vm327, %v2159, %v2161
      %v2163 = vrot.slane %v2085, 1
      %v2164 = vrot.slane %v1993, 1
      %v2165 = vsel %vm327, %v2163, %v2164
      %v2166 = vrot.slane %v2102, 1
      %v2167 = vsel %vm327, %v2164, %v2166
      %v2168 = vrot.slane %v2086, 1
      %v2169 = vrot.slane %v1996, 1
      %v2170 = vsel %vm327, %v2168, %v2169
      %v2171 = vrot.slane %v2103, 1
      %v2172 = vsel %vm327, %v2169, %v2171
      %v2173 = vrot.slane %v2087, 1
      %v2174 = vrot.slane %v1999, 1
      %v2175 = vsel %vm327, %v2173, %v2174
      %v2176 = vrot.slane %v2104, 1
      %v2177 = vsel %vm327, %v2174, %v2176
      %v2178 = vrot.slane %v2088, 1
      %v2179 = vrot.slane %v2002, 1
      %v2180 = vsel %vm327, %v2178, %v2179
      %v2181 = vrot.slane %v2105, 1
      %v2182 = vsel %vm327, %v2179, %v2181
      %v2183 = vrot.slane %v2089, 1
      %v2184 = vrot.slane %v2005, 1
      %v2185 = vsel %vm327, %v2183, %v2184
      %v2186 = vrot.slane %v2106, 1
      %v2187 = vsel %vm327, %v2184, %v2186
      %v2188 = vrot.slane %v2090, 1
      %v2189 = vrot.slane %v2008, 1
      %v2190 = vsel %vm327, %v2188, %v2189
      %v2191 = vrot.slane %v2107, 1
      %v2192 = vsel %vm327, %v2189, %v2191
      %v2193 = vrot.slane %v2091, 1
      %v2194 = vrot.slane %v2011, 1
      %v2195 = vsel %vm327, %v2193, %v2194
      %v2196 = vrot.slane %v2108, 1
      %v2197 = vsel %vm327, %v2194, %v2196
      %v2198 = vrot.slane %v2092, 1
      %v2199 = vrot.slane %v2014, 1
      %v2200 = vsel %vm327, %v2198, %v2199
      %v2201 = vrot.slane %v2109, 1
      %v2202 = vsel %vm327, %v2199, %v2201
      %v2203 = vrot.slane %v2093, 1
      %v2204 = vrot.slane %v2017, 1
      %v2205 = vsel %vm327, %v2203, %v2204
      %v2206 = vrot.slane %v2110, 1
      %v2207 = vsel %vm327, %v2204, %v2206
      %v2208 = vrot.slane %v2094, 1
      %v2209 = vrot.slane %v2020, 1
      %v2210 = vsel %vm327, %v2208, %v2209
      %v2211 = vrot.slane %v2111, 1
      %v2212 = vsel %vm327, %v2209, %v2211
      %v2213 = vrot.slane %v2095, 1
      %v2214 = vrot.slane %v2023, 1
      %v2215 = vsel %vm327, %v2213, %v2214
      %v2216 = vrot.slane %v2112, 1
      %v2217 = vsel %vm327, %v2214, %v2216
      %v2218 = vrot.slane %v2096, 1
      %v2219 = vrot.slane %v2026, 1
      %v2220 = vsel %vm327, %v2218, %v2219
      %v2221 = vrot.slane %v2113, 1
      %v2222 = vsel %vm327, %v2219, %v2221
      %v2223 = vrot.slane %v2097, 1
      %v2224 = vrot.slane %v2029, 1
      %v2225 = vsel %vm327, %v2223, %v2224
      %v2226 = vrot.slane %v2114, 1
      %v2227 = vsel %vm327, %v2224, %v2226
      %v2228 = vrot.slane %v2082, 2
      %v2229 = vrot.slane %v1984, 2
      %v2230 = vsel %vm408, %v2228, %v2229
      %v2231 = vrot.slane %v2099, 2
      %v2232 = vsel %vm408, %v2229, %v2231
      %v2233 = vrot.slane %v2083, 2
      %v2234 = vrot.slane %v1987, 2
      %v2235 = vsel %vm408, %v2233, %v2234
      %v2236 = vrot.slane %v2100, 2
      %v2237 = vsel %vm408, %v2234, %v2236
      %v2238 = vrot.slane %v2084, 2
      %v2239 = vrot.slane %v1990, 2
      %v2240 = vsel %vm408, %v2238, %v2239
      %v2241 = vrot.slane %v2101, 2
      %v2242 = vsel %vm408, %v2239, %v2241
      %v2243 = vrot.slane %v2085, 2
      %v2244 = vrot.slane %v1993, 2
      %v2245 = vsel %vm408, %v2243, %v2244
      %v2246 = vrot.slane %v2102, 2
      %v2247 = vsel %vm408, %v2244, %v2246
      %v2248 = vrot.slane %v2086, 2
      %v2249 = vrot.slane %v1996, 2
      %v2250 = vsel %vm408, %v2248, %v2249
      %v2251 = vrot.slane %v2103, 2
      %v2252 = vsel %vm408, %v2249, %v2251
      %v2253 = vrot.slane %v2087, 2
      %v2254 = vrot.slane %v1999, 2
      %v2255 = vsel %vm408, %v2253, %v2254
      %v2256 = vrot.slane %v2104, 2
      %v2257 = vsel %vm408, %v2254, %v2256
      %v2258 = vrot.slane %v2088, 2
      %v2259 = vrot.slane %v2002, 2
      %v2260 = vsel %vm408, %v2258, %v2259
      %v2261 = vrot.slane %v2105, 2
      %v2262 = vsel %vm408, %v2259, %v2261
      %v2263 = vrot.slane %v2089, 2
      %v2264 = vrot.slane %v2005, 2
      %v2265 = vsel %vm408, %v2263, %v2264
      %v2266 = vrot.slane %v2106, 2
      %v2267 = vsel %vm408, %v2264, %v2266
      %v2268 = vrot.slane %v2090, 2
      %v2269 = vrot.slane %v2008, 2
      %v2270 = vsel %vm408, %v2268, %v2269
      %v2271 = vrot.slane %v2107, 2
      %v2272 = vsel %vm408, %v2269, %v2271
      %v2273 = vrot.slane %v2091, 2
      %v2274 = vrot.slane %v2011, 2
      %v2275 = vsel %vm408, %v2273, %v2274
      %v2276 = vrot.slane %v2108, 2
      %v2277 = vsel %vm408, %v2274, %v2276
      %v2278 = vrot.slane %v2092, 2
      %v2279 = vrot.slane %v2014, 2
      %v2280 = vsel %vm408, %v2278, %v2279
      %v2281 = vrot.slane %v2109, 2
      %v2282 = vsel %vm408, %v2279, %v2281
      %v2283 = vrot.slane %v2093, 2
      %v2284 = vrot.slane %v2017, 2
      %v2285 = vsel %vm408, %v2283, %v2284
      %v2286 = vrot.slane %v2110, 2
      %v2287 = vsel %vm408, %v2284, %v2286
      %v2288 = vrot.slane %v2094, 2
      %v2289 = vrot.slane %v2020, 2
      %v2290 = vsel %vm408, %v2288, %v2289
      %v2291 = vrot.slane %v2111, 2
      %v2292 = vsel %vm408, %v2289, %v2291
      %v2293 = vrot.slane %v2095, 2
      %v2294 = vrot.slane %v2023, 2
      %v2295 = vsel %vm408, %v2293, %v2294
      %v2296 = vrot.slane %v2112, 2
      %v2297 = vsel %vm408, %v2294, %v2296
      %v2298 = vrot.slane %v2096, 2
      %v2299 = vrot.slane %v2026, 2
      %v2300 = vsel %vm408, %v2298, %v2299
      %v2301 = vrot.slane %v2113, 2
      %v2302 = vsel %vm408, %v2299, %v2301
      %v2303 = vrot.slane %v2097, 2
      %v2304 = vrot.slane %v2029, 2
      %v2305 = vsel %vm408, %v2303, %v2304
      %v2306 = vrot.slane %v2114, 2
      %v2307 = vsel %vm408, %v2304, %v2306
      %v2310 = vrot.slane %v2098, 1
      %v2311 = vrot.slane %v2032, 1
      %v2312 = vsel %vm327, %v2310, %v2311
      %v2313 = vrot.slane %v2115, 1
      %v2314 = vsel %vm327, %v2311, %v2313
      %v2315 = vrot.slane %v2098, 2
      %v2316 = vrot.slane %v2032, 2
      %v2317 = vsel %vm408, %v2315, %v2316
      %v2318 = vrot.slane %v2115, 2
      %v2319 = vsel %vm408, %v2316, %v2318
      %2320 = vrot.lane.b32.xlu0 %v2150, 4
      %v2321 = vpop.permute.xlu0 %2320
      %2322 = vrot.lane.b32.xlu0 %v2152, 4
      %v2323 = vpop.permute.xlu0 %2322
      %2324 = vrot.lane.b32.xlu0 %v2155, 4
      %v2325 = vpop.permute.xlu0 %2324
      %2326 = vrot.lane.b32.xlu0 %v2157, 4
      %v2327 = vpop.permute.xlu0 %2326
      %2328 = vrot.lane.b32.xlu0 %v2160, 4
      %v2329 = vpop.permute.xlu0 %2328
      %2330 = vrot.lane.b32.xlu0 %v2162, 4
      %v2331 = vpop.permute.xlu0 %2330
      %2332 = vrot.lane.b32.xlu0 %v2165, 4
      %v2333 = vpop.permute.xlu0 %2332
      %2334 = vrot.lane.b32.xlu0 %v2167, 4
      %v2335 = vpop.permute.xlu0 %2334
      %2336 = vrot.lane.b32.xlu0 %v2170, 4
      %v2337 = vpop.permute.xlu0 %2336
      %2338 = vrot.lane.b32.xlu0 %v2172, 4
      %v2339 = vpop.permute.xlu0 %2338
      %2340 = vrot.lane.b32.xlu0 %v2175, 4
      %v2341 = vpop.permute.xlu0 %2340
      %2342 = vrot.lane.b32.xlu0 %v2177, 4
      %v2343 = vpop.permute.xlu0 %2342
      %2344 = vrot.lane.b32.xlu0 %v2180, 4
      %v2345 = vpop.permute.xlu0 %2344
      %2346 = vrot.lane.b32.xlu0 %v2182, 4
      %v2347 = vpop.permute.xlu0 %2346
      %2348 = vrot.lane.b32.xlu0 %v2185, 4
      %v2349 = vpop.permute.xlu0 %2348
      %2350 = vrot.lane.b32.xlu0 %v2187, 4
      %v2351 = vpop.permute.xlu0 %2350
      %2352 = vrot.lane.b32.xlu0 %v2190, 4
      %v2353 = vpop.permute.xlu0 %2352
      %2354 = vrot.lane.b32.xlu0 %v2192, 4
      %v2355 = vpop.permute.xlu0 %2354
      %2356 = vrot.lane.b32.xlu0 %v2195, 4
      %v2357 = vpop.permute.xlu0 %2356
      %2358 = vrot.lane.b32.xlu0 %v2197, 4
      %v2359 = vpop.permute.xlu0 %2358
      %2360 = vrot.lane.b32.xlu0 %v2200, 4
      %v2361 = vpop.permute.xlu0 %2360
      %2362 = vrot.lane.b32.xlu0 %v2202, 4
      %v2363 = vpop.permute.xlu0 %2362
      %2364 = vrot.lane.b32.xlu0 %v2205, 4
      %v2365 = vpop.permute.xlu0 %2364
      %2366 = vrot.lane.b32.xlu0 %v2207, 4
      %v2367 = vpop.permute.xlu0 %2366
      %2368 = vrot.lane.b32.xlu0 %v2210, 4
      %v2369 = vpop.permute.xlu0 %2368
      %2370 = vrot.lane.b32.xlu0 %v2212, 4
      %v2371 = vpop.permute.xlu0 %2370
      %2372 = vrot.lane.b32.xlu0 %v2215, 4
      %v2373 = vpop.permute.xlu0 %2372
      %2374 = vrot.lane.b32.xlu0 %v2217, 4
      %v2375 = vpop.permute.xlu0 %2374
      %2376 = vrot.lane.b32.xlu0 %v2220, 4
      %v2377 = vpop.permute.xlu0 %2376
      %2378 = vrot.lane.b32.xlu0 %v2222, 4
      %v2379 = vpop.permute.xlu0 %2378
      %2380 = vrot.lane.b32.xlu0 %v2225, 4
      %v2381 = vpop.permute.xlu0 %2380
      %2382 = vrot.lane.b32.xlu0 %v2227, 4
      %v2383 = vpop.permute.xlu0 %2382
      %2416 = vrot.lane.b32.xlu0 %v2230, 8
      %v2417 = vpop.permute.xlu0 %2416
      %2418 = vrot.lane.b32.xlu0 %v2232, 8
      %v2419 = vpop.permute.xlu0 %2418
      %2420 = vrot.lane.b32.xlu0 %v2235, 8
      %v2421 = vpop.permute.xlu0 %2420
      %2422 = vrot.lane.b32.xlu0 %v2237, 8
      %v2423 = vpop.permute.xlu0 %2422
      %2424 = vrot.lane.b32.xlu0 %v2240, 8
      %v2425 = vpop.permute.xlu0 %2424
      %2426 = vrot.lane.b32.xlu0 %v2242, 8
      %v2427 = vpop.permute.xlu0 %2426
      %2428 = vrot.lane.b32.xlu0 %v2245, 8
      %v2429 = vpop.permute.xlu0 %2428
      %2430 = vrot.lane.b32.xlu0 %v2247, 8
      %v2431 = vpop.permute.xlu0 %2430
      %2432 = vrot.lane.b32.xlu0 %v2250, 8
      %v2433 = vpop.permute.xlu0 %2432
      %2434 = vrot.lane.b32.xlu0 %v2252, 8
      %v2435 = vpop.permute.xlu0 %2434
      %2436 = vrot.lane.b32.xlu0 %v2255, 8
      %v2437 = vpop.permute.xlu0 %2436
      %2438 = vrot.lane.b32.xlu0 %v2257, 8
      %v2439 = vpop.permute.xlu0 %2438
      %2440 = vrot.lane.b32.xlu0 %v2260, 8
      %v2441 = vpop.permute.xlu0 %2440
      %2442 = vrot.lane.b32.xlu0 %v2262, 8
      %v2443 = vpop.permute.xlu0 %2442
      %2444 = vrot.lane.b32.xlu0 %v2265, 8
      %v2445 = vpop.permute.xlu0 %2444
      %2446 = vrot.lane.b32.xlu0 %v2267, 8
      %v2447 = vpop.permute.xlu0 %2446
      %2448 = vrot.lane.b32.xlu0 %v2270, 8
      %v2449 = vpop.permute.xlu0 %2448
      %2450 = vrot.lane.b32.xlu0 %v2272, 8
      %v2451 = vpop.permute.xlu0 %2450
      %2452 = vrot.lane.b32.xlu0 %v2275, 8
      %v2453 = vpop.permute.xlu0 %2452
      %2454 = vrot.lane.b32.xlu0 %v2277, 8
      %v2455 = vpop.permute.xlu0 %2454
      %2456 = vrot.lane.b32.xlu0 %v2280, 8
      %v2457 = vpop.permute.xlu0 %2456
      %2458 = vrot.lane.b32.xlu0 %v2282, 8
      %v2459 = vpop.permute.xlu0 %2458
      %2460 = vrot.lane.b32.xlu0 %v2285, 8
      %v2461 = vpop.permute.xlu0 %2460
      %2462 = vrot.lane.b32.xlu0 %v2287, 8
      %v2463 = vpop.permute.xlu0 %2462
      %2464 = vrot.lane.b32.xlu0 %v2290, 8
      %v2465 = vpop.permute.xlu0 %2464
      %2466 = vrot.lane.b32.xlu0 %v2292, 8
      %v2467 = vpop.permute.xlu0 %2466
      %2468 = vrot.lane.b32.xlu0 %v2295, 8
      %v2469 = vpop.permute.xlu0 %2468
      %2470 = vrot.lane.b32.xlu0 %v2297, 8
      %v2471 = vpop.permute.xlu0 %2470
      %2472 = vrot.lane.b32.xlu0 %v2300, 8
      %v2473 = vpop.permute.xlu0 %2472
      %2474 = vrot.lane.b32.xlu0 %v2302, 8
      %v2475 = vpop.permute.xlu0 %2474
      %2476 = vrot.lane.b32.xlu0 %v2305, 8
      %v2477 = vpop.permute.xlu0 %2476
      %2478 = vrot.lane.b32.xlu0 %v2307, 8
      %v2479 = vpop.permute.xlu0 %2478
      %2512 = vrot.lane.b32.xlu0 %v2083, 12
      %v2513 = vpop.permute.xlu0 %2512
      %2514 = vrot.lane.b32.xlu0 %v1987, 12
      %v2515 = vpop.permute.xlu0 %2514
      %2516 = vrot.lane.b32.xlu0 %v2084, 12
      %v2517 = vpop.permute.xlu0 %2516
      %2518 = vrot.lane.b32.xlu0 %v1990, 12
      %v2519 = vpop.permute.xlu0 %2518
      %2520 = vrot.lane.b32.xlu0 %v2085, 12
      %v2521 = vpop.permute.xlu0 %2520
      %2522 = vrot.lane.b32.xlu0 %v1993, 12
      %v2523 = vpop.permute.xlu0 %2522
      %2524 = vrot.lane.b32.xlu0 %v2086, 12
      %v2525 = vpop.permute.xlu0 %2524
      %2526 = vrot.lane.b32.xlu0 %v1996, 12
      %v2527 = vpop.permute.xlu0 %2526
      %2528 = vrot.lane.b32.xlu0 %v2087, 12
      %v2529 = vpop.permute.xlu0 %2528
      %2530 = vrot.lane.b32.xlu0 %v1999, 12
      %v2531 = vpop.permute.xlu0 %2530
      %2532 = vrot.lane.b32.xlu0 %v2088, 12
      %v2533 = vpop.permute.xlu0 %2532
      %2534 = vrot.lane.b32.xlu0 %v2002, 12
      %v2535 = vpop.permute.xlu0 %2534
      %2536 = vrot.lane.b32.xlu0 %v2089, 12
      %v2537 = vpop.permute.xlu0 %2536
      %2538 = vrot.lane.b32.xlu0 %v2005, 12
      %v2539 = vpop.permute.xlu0 %2538
      %2540 = vrot.lane.b32.xlu0 %v2090, 12
      %v2541 = vpop.permute.xlu0 %2540
      %2542 = vrot.lane.b32.xlu0 %v2008, 12
      %v2543 = vpop.permute.xlu0 %2542
      %2544 = vrot.lane.b32.xlu0 %v2091, 12
      %v2545 = vpop.permute.xlu0 %2544
      %2546 = vrot.lane.b32.xlu0 %v2011, 12
      %v2547 = vpop.permute.xlu0 %2546
      %2548 = vrot.lane.b32.xlu0 %v2092, 12
      %v2549 = vpop.permute.xlu0 %2548
      %2550 = vrot.lane.b32.xlu0 %v2014, 12
      %v2551 = vpop.permute.xlu0 %2550
      %2552 = vrot.lane.b32.xlu0 %v2093, 12
      %v2553 = vpop.permute.xlu0 %2552
      %2554 = vrot.lane.b32.xlu0 %v2017, 12
      %v2555 = vpop.permute.xlu0 %2554
      %2556 = vrot.lane.b32.xlu0 %v2094, 12
      %v2557 = vpop.permute.xlu0 %2556
      %2558 = vrot.lane.b32.xlu0 %v2020, 12
      %v2559 = vpop.permute.xlu0 %2558
      %2560 = vrot.lane.b32.xlu0 %v2095, 12
      %v2561 = vpop.permute.xlu0 %2560
      %2562 = vrot.lane.b32.xlu0 %v2023, 12
      %v2563 = vpop.permute.xlu0 %2562
      %2564 = vrot.lane.b32.xlu0 %v2096, 12
      %v2565 = vpop.permute.xlu0 %2564
      %2566 = vrot.lane.b32.xlu0 %v2026, 12
      %v2567 = vpop.permute.xlu0 %2566
      %2568 = vrot.lane.b32.xlu0 %v2097, 12
      %v2569 = vpop.permute.xlu0 %2568
      %2570 = vrot.lane.b32.xlu0 %v2029, 12
      %v2571 = vpop.permute.xlu0 %2570
      %2572 = vrot.lane.b32.xlu0 %v2098, 12
      %v2573 = vpop.permute.xlu0 %2572
      %2574 = vrot.lane.b32.xlu0 %v2032, 12
      %v2575 = vpop.permute.xlu0 %2574
      %2608 = vrot.lane.b32.xlu0 %v2155, 16
      %v2609 = vpop.permute.xlu0 %2608
      %2610 = vrot.lane.b32.xlu0 %v2157, 16
      %v2611 = vpop.permute.xlu0 %2610
      %2612 = vrot.lane.b32.xlu0 %v2160, 16
      %v2613 = vpop.permute.xlu0 %2612
      %2614 = vrot.lane.b32.xlu0 %v2162, 16
      %v2615 = vpop.permute.xlu0 %2614
      %2616 = vrot.lane.b32.xlu0 %v2165, 16
      %v2617 = vpop.permute.xlu0 %2616
      %2618 = vrot.lane.b32.xlu0 %v2167, 16
      %v2619 = vpop.permute.xlu0 %2618
      %2620 = vrot.lane.b32.xlu0 %v2170, 16
      %v2621 = vpop.permute.xlu0 %2620
      %2622 = vrot.lane.b32.xlu0 %v2172, 16
      %v2623 = vpop.permute.xlu0 %2622
      %2624 = vrot.lane.b32.xlu0 %v2175, 16
      %v2625 = vpop.permute.xlu0 %2624
      %2626 = vrot.lane.b32.xlu0 %v2177, 16
      %v2627 = vpop.permute.xlu0 %2626
      %2628 = vrot.lane.b32.xlu0 %v2180, 16
      %v2629 = vpop.permute.xlu0 %2628
      %2630 = vrot.lane.b32.xlu0 %v2182, 16
      %v2631 = vpop.permute.xlu0 %2630
      %2632 = vrot.lane.b32.xlu0 %v2185, 16
      %v2633 = vpop.permute.xlu0 %2632
      %2634 = vrot.lane.b32.xlu0 %v2187, 16
      %v2635 = vpop.permute.xlu0 %2634
      %2636 = vrot.lane.b32.xlu0 %v2190, 16
      %v2637 = vpop.permute.xlu0 %2636
      %2638 = vrot.lane.b32.xlu0 %v2192, 16
      %v2639 = vpop.permute.xlu0 %2638
      %2640 = vrot.lane.b32.xlu0 %v2195, 16
      %v2641 = vpop.permute.xlu0 %2640
      %2642 = vrot.lane.b32.xlu0 %v2197, 16
      %v2643 = vpop.permute.xlu0 %2642
      %2644 = vrot.lane.b32.xlu0 %v2200, 16
      %v2645 = vpop.permute.xlu0 %2644
      %2646 = vrot.lane.b32.xlu0 %v2202, 16
      %v2647 = vpop.permute.xlu0 %2646
      %2648 = vrot.lane.b32.xlu0 %v2205, 16
      %v2649 = vpop.permute.xlu0 %2648
      %2650 = vrot.lane.b32.xlu0 %v2207, 16
      %v2651 = vpop.permute.xlu0 %2650
      %2652 = vrot.lane.b32.xlu0 %v2210, 16
      %v2653 = vpop.permute.xlu0 %2652
      %2654 = vrot.lane.b32.xlu0 %v2212, 16
      %v2655 = vpop.permute.xlu0 %2654
      %2656 = vrot.lane.b32.xlu0 %v2215, 16
      %v2657 = vpop.permute.xlu0 %2656
      %2658 = vrot.lane.b32.xlu0 %v2217, 16
      %v2659 = vpop.permute.xlu0 %2658
      %2660 = vrot.lane.b32.xlu0 %v2220, 16
      %v2661 = vpop.permute.xlu0 %2660
      %2662 = vrot.lane.b32.xlu0 %v2222, 16
      %v2663 = vpop.permute.xlu0 %2662
      %2664 = vrot.lane.b32.xlu0 %v2225, 16
      %v2665 = vpop.permute.xlu0 %2664
      %2666 = vrot.lane.b32.xlu0 %v2227, 16
      %v2667 = vpop.permute.xlu0 %2666
      %2668 = vrot.lane.b32.xlu0 %v2312, 16
      %v2669 = vpop.permute.xlu0 %2668
      %2670 = vrot.lane.b32.xlu0 %v2314, 16
      %v2671 = vpop.permute.xlu0 %2670
      %2704 = vrot.lane.b32.xlu0 %v2235, 20
      %v2705 = vpop.permute.xlu0 %2704
      %2706 = vrot.lane.b32.xlu0 %v2237, 20
      %v2707 = vpop.permute.xlu0 %2706
      %2708 = vrot.lane.b32.xlu0 %v2240, 20
      %v2709 = vpop.permute.xlu0 %2708
      %2710 = vrot.lane.b32.xlu0 %v2242, 20
      %v2711 = vpop.permute.xlu0 %2710
      %2712 = vrot.lane.b32.xlu0 %v2245, 20
      %v2713 = vpop.permute.xlu0 %2712
      %2714 = vrot.lane.b32.xlu0 %v2247, 20
      %v2715 = vpop.permute.xlu0 %2714
      %2716 = vrot.lane.b32.xlu0 %v2250, 20
      %v2717 = vpop.permute.xlu0 %2716
      %2718 = vrot.lane.b32.xlu0 %v2252, 20
      %v2719 = vpop.permute.xlu0 %2718
      %2720 = vrot.lane.b32.xlu0 %v2255, 20
      %v2721 = vpop.permute.xlu0 %2720
      %2722 = vrot.lane.b32.xlu0 %v2257, 20
      %v2723 = vpop.permute.xlu0 %2722
      %2724 = vrot.lane.b32.xlu0 %v2260, 20
      %v2725 = vpop.permute.xlu0 %2724
      %2726 = vrot.lane.b32.xlu0 %v2262, 20
      %v2727 = vpop.permute.xlu0 %2726
      %2728 = vrot.lane.b32.xlu0 %v2265, 20
      %v2729 = vpop.permute.xlu0 %2728
      %2730 = vrot.lane.b32.xlu0 %v2267, 20
      %v2731 = vpop.permute.xlu0 %2730
      %2732 = vrot.lane.b32.xlu0 %v2270, 20
      %v2733 = vpop.permute.xlu0 %2732
      %2734 = vrot.lane.b32.xlu0 %v2272, 20
      %v2735 = vpop.permute.xlu0 %2734
      %2736 = vrot.lane.b32.xlu0 %v2275, 20
      %v2737 = vpop.permute.xlu0 %2736
      %2738 = vrot.lane.b32.xlu0 %v2277, 20
      %v2739 = vpop.permute.xlu0 %2738
      %2740 = vrot.lane.b32.xlu0 %v2280, 20
      %v2741 = vpop.permute.xlu0 %2740
      %2742 = vrot.lane.b32.xlu0 %v2282, 20
      %v2743 = vpop.permute.xlu0 %2742
      %2744 = vrot.lane.b32.xlu0 %v2285, 20
      %v2745 = vpop.permute.xlu0 %2744
      %2746 = vrot.lane.b32.xlu0 %v2287, 20
      %v2747 = vpop.permute.xlu0 %2746
      %2748 = vrot.lane.b32.xlu0 %v2290, 20
      %v2749 = vpop.permute.xlu0 %2748
      %2750 = vrot.lane.b32.xlu0 %v2292, 20
      %v2751 = vpop.permute.xlu0 %2750
      %2752 = vrot.lane.b32.xlu0 %v2295, 20
      %v2753 = vpop.permute.xlu0 %2752
      %2754 = vrot.lane.b32.xlu0 %v2297, 20
      %v2755 = vpop.permute.xlu0 %2754
      %2756 = vrot.lane.b32.xlu0 %v2300, 20
      %v2757 = vpop.permute.xlu0 %2756
      %2758 = vrot.lane.b32.xlu0 %v2302, 20
      %v2759 = vpop.permute.xlu0 %2758
      %2760 = vrot.lane.b32.xlu0 %v2305, 20
      %v2761 = vpop.permute.xlu0 %2760
      %2762 = vrot.lane.b32.xlu0 %v2307, 20
      %v2763 = vpop.permute.xlu0 %2762
      %2764 = vrot.lane.b32.xlu0 %v2317, 20
      %v2765 = vpop.permute.xlu0 %2764
      %2766 = vrot.lane.b32.xlu0 %v2319, 20
      %v2767 = vpop.permute.xlu0 %2766
      %2800 = vrot.lane.b32.xlu0 %v2084, 24
      %v2801 = vpop.permute.xlu0 %2800
      %2802 = vrot.lane.b32.xlu0 %v1990, 24
      %v2803 = vpop.permute.xlu0 %2802
      %2804 = vrot.lane.b32.xlu0 %v2085, 24
      %v2805 = vpop.permute.xlu0 %2804
      %2806 = vrot.lane.b32.xlu0 %v1993, 24
      %v2807 = vpop.permute.xlu0 %2806
      %2808 = vrot.lane.b32.xlu0 %v2086, 24
      %v2809 = vpop.permute.xlu0 %2808
      %2810 = vrot.lane.b32.xlu0 %v1996, 24
      %v2811 = vpop.permute.xlu0 %2810
      %2812 = vrot.lane.b32.xlu0 %v2087, 24
      %v2813 = vpop.permute.xlu0 %2812
      %2814 = vrot.lane.b32.xlu0 %v1999, 24
      %v2815 = vpop.permute.xlu0 %2814
      %2816 = vrot.lane.b32.xlu0 %v2088, 24
      %v2817 = vpop.permute.xlu0 %2816
      %2818 = vrot.lane.b32.xlu0 %v2002, 24
      %v2819 = vpop.permute.xlu0 %2818
      %2820 = vrot.lane.b32.xlu0 %v2089, 24
      %v2821 = vpop.permute.xlu0 %2820
      %2822 = vrot.lane.b32.xlu0 %v2005, 24
      %v2823 = vpop.permute.xlu0 %2822
      %2824 = vrot.lane.b32.xlu0 %v2090, 24
      %v2825 = vpop.permute.xlu0 %2824
      %2826 = vrot.lane.b32.xlu0 %v2008, 24
      %v2827 = vpop.permute.xlu0 %2826
      %2828 = vrot.lane.b32.xlu0 %v2091, 24
      %v2829 = vpop.permute.xlu0 %2828
      %2830 = vrot.lane.b32.xlu0 %v2011, 24
      %v2831 = vpop.permute.xlu0 %2830
      %2832 = vrot.lane.b32.xlu0 %v2092, 24
      %v2833 = vpop.permute.xlu0 %2832
      %2834 = vrot.lane.b32.xlu0 %v2014, 24
      %v2835 = vpop.permute.xlu0 %2834
      %2836 = vrot.lane.b32.xlu0 %v2093, 24
      %v2837 = vpop.permute.xlu0 %2836
      %2838 = vrot.lane.b32.xlu0 %v2017, 24
      %v2839 = vpop.permute.xlu0 %2838
      %2840 = vrot.lane.b32.xlu0 %v2094, 24
      %v2841 = vpop.permute.xlu0 %2840
      %2842 = vrot.lane.b32.xlu0 %v2020, 24
      %v2843 = vpop.permute.xlu0 %2842
      %2844 = vrot.lane.b32.xlu0 %v2095, 24
      %v2845 = vpop.permute.xlu0 %2844
      %2846 = vrot.lane.b32.xlu0 %v2023, 24
      %v2847 = vpop.permute.xlu0 %2846
      %2848 = vrot.lane.b32.xlu0 %v2096, 24
      %v2849 = vpop.permute.xlu0 %2848
      %2850 = vrot.lane.b32.xlu0 %v2026, 24
      %v2851 = vpop.permute.xlu0 %2850
      %2852 = vrot.lane.b32.xlu0 %v2097, 24
      %v2853 = vpop.permute.xlu0 %2852
      %2854 = vrot.lane.b32.xlu0 %v2029, 24
      %v2855 = vpop.permute.xlu0 %2854
      %2856 = vrot.lane.b32.xlu0 %v2098, 24
      %v2857 = vpop.permute.xlu0 %2856
      %2858 = vrot.lane.b32.xlu0 %v2032, 24
      %v2859 = vpop.permute.xlu0 %2858
      %2860 = vrot.lane.b32.xlu0 %v2082, 24
      %v2861 = vpop.permute.xlu0 %2860
      %2862 = vrot.lane.b32.xlu0 %v1984, 24
      %v2863 = vpop.permute.xlu0 %2862
      %2896 = vrot.lane.b32.xlu0 %v2160, 28
      %v2897 = vpop.permute.xlu0 %2896
      %2898 = vrot.lane.b32.xlu0 %v2162, 28
      %v2899 = vpop.permute.xlu0 %2898
      %2900 = vrot.lane.b32.xlu0 %v2165, 28
      %v2901 = vpop.permute.xlu0 %2900
      %2902 = vrot.lane.b32.xlu0 %v2167, 28
      %v2903 = vpop.permute.xlu0 %2902
      %2904 = vrot.lane.b32.xlu0 %v2170, 28
      %v2905 = vpop.permute.xlu0 %2904
      %2906 = vrot.lane.b32.xlu0 %v2172, 28
      %v2907 = vpop.permute.xlu0 %2906
      %2908 = vrot.lane.b32.xlu0 %v2175, 28
      %v2909 = vpop.permute.xlu0 %2908
      %2910 = vrot.lane.b32.xlu0 %v2177, 28
      %v2911 = vpop.permute.xlu0 %2910
      %2912 = vrot.lane.b32.xlu0 %v2180, 28
      %v2913 = vpop.permute.xlu0 %2912
      %2914 = vrot.lane.b32.xlu0 %v2182, 28
      %v2915 = vpop.permute.xlu0 %2914
      %2916 = vrot.lane.b32.xlu0 %v2185, 28
      %v2917 = vpop.permute.xlu0 %2916
      %2918 = vrot.lane.b32.xlu0 %v2187, 28
      %v2919 = vpop.permute.xlu0 %2918
      %2920 = vrot.lane.b32.xlu0 %v2190, 28
      %v2921 = vpop.permute.xlu0 %2920
      %2922 = vrot.lane.b32.xlu0 %v2192, 28
      %v2923 = vpop.permute.xlu0 %2922
      %2924 = vrot.lane.b32.xlu0 %v2195, 28
      %v2925 = vpop.permute.xlu0 %2924
      %2926 = vrot.lane.b32.xlu0 %v2197, 28
      %v2927 = vpop.permute.xlu0 %2926
      %2928 = vrot.lane.b32.xlu0 %v2200, 28
      %v2929 = vpop.permute.xlu0 %2928
      %2930 = vrot.lane.b32.xlu0 %v2202, 28
      %v2931 = vpop.permute.xlu0 %2930
      %2932 = vrot.lane.b32.xlu0 %v2205, 28
      %v2933 = vpop.permute.xlu0 %2932
      %2934 = vrot.lane.b32.xlu0 %v2207, 28
      %v2935 = vpop.permute.xlu0 %2934
      %2936 = vrot.lane.b32.xlu0 %v2210, 28
      %v2937 = vpop.permute.xlu0 %2936
      %2938 = vrot.lane.b32.xlu0 %v2212, 28
      %v2939 = vpop.permute.xlu0 %2938
      %2940 = vrot.lane.b32.xlu0 %v2215, 28
      %v2941 = vpop.permute.xlu0 %2940
      %2942 = vrot.lane.b32.xlu0 %v2217, 28
      %v2943 = vpop.permute.xlu0 %2942
      %2944 = vrot.lane.b32.xlu0 %v2220, 28
      %v2945 = vpop.permute.xlu0 %2944
      %2946 = vrot.lane.b32.xlu0 %v2222, 28
      %v2947 = vpop.permute.xlu0 %2946
      %2948 = vrot.lane.b32.xlu0 %v2225, 28
      %v2949 = vpop.permute.xlu0 %2948
      %2950 = vrot.lane.b32.xlu0 %v2227, 28
      %v2951 = vpop.permute.xlu0 %2950
      %2952 = vrot.lane.b32.xlu0 %v2312, 28
      %v2953 = vpop.permute.xlu0 %2952
      %2954 = vrot.lane.b32.xlu0 %v2314, 28
      %v2955 = vpop.permute.xlu0 %2954
      %2956 = vrot.lane.b32.xlu0 %v2150, 28
      %v2957 = vpop.permute.xlu0 %2956
      %2958 = vrot.lane.b32.xlu0 %v2152, 28
      %v2959 = vpop.permute.xlu0 %2958
      %2992 = vrot.lane.b32.xlu0 %v2240, 32
      %v2993 = vpop.permute.xlu0 %2992
      %2994 = vrot.lane.b32.xlu0 %v2242, 32
      %v2995 = vpop.permute.xlu0 %2994
      %2996 = vrot.lane.b32.xlu0 %v2245, 32
      %v2997 = vpop.permute.xlu0 %2996
      %2998 = vrot.lane.b32.xlu0 %v2247, 32
      %v2999 = vpop.permute.xlu0 %2998
      %3000 = vrot.lane.b32.xlu0 %v2250, 32
      %v3001 = vpop.permute.xlu0 %3000
      %3002 = vrot.lane.b32.xlu0 %v2252, 32
      %v3003 = vpop.permute.xlu0 %3002
      %3004 = vrot.lane.b32.xlu0 %v2255, 32
      %v3005 = vpop.permute.xlu0 %3004
      %3006 = vrot.lane.b32.xlu0 %v2257, 32
      %v3007 = vpop.permute.xlu0 %3006
      %3008 = vrot.lane.b32.xlu0 %v2260, 32
      %v3009 = vpop.permute.xlu0 %3008
      %3010 = vrot.lane.b32.xlu0 %v2262, 32
      %v3011 = vpop.permute.xlu0 %3010
      %3012 = vrot.lane.b32.xlu0 %v2265, 32
      %v3013 = vpop.permute.xlu0 %3012
      %3014 = vrot.lane.b32.xlu0 %v2267, 32
      %v3015 = vpop.permute.xlu0 %3014
      %3016 = vrot.lane.b32.xlu0 %v2270, 32
      %v3017 = vpop.permute.xlu0 %3016
      %3018 = vrot.lane.b32.xlu0 %v2272, 32
      %v3019 = vpop.permute.xlu0 %3018
      %3020 = vrot.lane.b32.xlu0 %v2275, 32
      %v3021 = vpop.permute.xlu0 %3020
      %3022 = vrot.lane.b32.xlu0 %v2277, 32
      %v3023 = vpop.permute.xlu0 %3022
      %3024 = vrot.lane.b32.xlu0 %v2280, 32
      %v3025 = vpop.permute.xlu0 %3024
      %3026 = vrot.lane.b32.xlu0 %v2282, 32
      %v3027 = vpop.permute.xlu0 %3026
      %3028 = vrot.lane.b32.xlu0 %v2285, 32
      %v3029 = vpop.permute.xlu0 %3028
      %3030 = vrot.lane.b32.xlu0 %v2287, 32
      %v3031 = vpop.permute.xlu0 %3030
      %3032 = vrot.lane.b32.xlu0 %v2290, 32
      %v3033 = vpop.permute.xlu0 %3032
      %3034 = vrot.lane.b32.xlu0 %v2292, 32
      %v3035 = vpop.permute.xlu0 %3034
      %3036 = vrot.lane.b32.xlu0 %v2295, 32
      %v3037 = vpop.permute.xlu0 %3036
      %3038 = vrot.lane.b32.xlu0 %v2297, 32
      %v3039 = vpop.permute.xlu0 %3038
      %3040 = vrot.lane.b32.xlu0 %v2300, 32
      %v3041 = vpop.permute.xlu0 %3040
      %3042 = vrot.lane.b32.xlu0 %v2302, 32
      %v3043 = vpop.permute.xlu0 %3042
      %3044 = vrot.lane.b32.xlu0 %v2305, 32
      %v3045 = vpop.permute.xlu0 %3044
      %3046 = vrot.lane.b32.xlu0 %v2307, 32
      %v3047 = vpop.permute.xlu0 %3046
      %3048 = vrot.lane.b32.xlu0 %v2317, 32
      %v3049 = vpop.permute.xlu0 %3048
      %3050 = vrot.lane.b32.xlu0 %v2319, 32
      %v3051 = vpop.permute.xlu0 %3050
      %3052 = vrot.lane.b32.xlu0 %v2230, 32
      %v3053 = vpop.permute.xlu0 %3052
      %3054 = vrot.lane.b32.xlu0 %v2232, 32
      %v3055 = vpop.permute.xlu0 %3054
      %v3088 = vsel %vm1315, %v2082, %v2321
      %v3089 = vsel %vm1315, %v1984, %v2323
      %v3090 = vsel %vm1315, %v2083, %v2325
      %v3091 = vsel %vm1315, %v1987, %v2327
      %v3092 = vsel %vm1315, %v2084, %v2329
      %v3093 = vsel %vm1315, %v1990, %v2331
      %v3094 = vsel %vm1315, %v2085, %v2333
      %v3095 = vsel %vm1315, %v1993, %v2335
      %v3096 = vsel %vm1315, %v2086, %v2337
      %v3097 = vsel %vm1315, %v1996, %v2339
      %v3098 = vsel %vm1315, %v2087, %v2341
      %v3099 = vsel %vm1315, %v1999, %v2343
      %v3100 = vsel %vm1315, %v2088, %v2345
      %v3101 = vsel %vm1315, %v2002, %v2347
      %v3102 = vsel %vm1315, %v2089, %v2349
      %v3103 = vsel %vm1315, %v2005, %v2351
      %v3104 = vsel %vm1315, %v2090, %v2353
      %v3105 = vsel %vm1315, %v2008, %v2355
      %v3106 = vsel %vm1315, %v2091, %v2357
      %v3107 = vsel %vm1315, %v2011, %v2359
      %v3108 = vsel %vm1315, %v2092, %v2361
      %v3109 = vsel %vm1315, %v2014, %v2363
      %v3110 = vsel %vm1315, %v2093, %v2365
      %v3111 = vsel %vm1315, %v2017, %v2367
      %v3112 = vsel %vm1315, %v2094, %v2369
      %v3113 = vsel %vm1315, %v2020, %v2371
      %v3114 = vsel %vm1315, %v2095, %v2373
      %v3115 = vsel %vm1315, %v2023, %v2375
      %v3116 = vsel %vm1315, %v2096, %v2377
      %v3117 = vsel %vm1315, %v2026, %v2379
      %v3118 = vsel %vm1315, %v2097, %v2381
      %v3119 = vsel %vm1315, %v2029, %v2383
      %v3120 = vsel %vm1348, %v3088, %v2417
      %v3121 = vsel %vm1348, %v3089, %v2419
      %v3122 = vsel %vm1348, %v3090, %v2421
      %v3123 = vsel %vm1348, %v3091, %v2423
      %v3124 = vsel %vm1348, %v3092, %v2425
      %v3125 = vsel %vm1348, %v3093, %v2427
      %v3126 = vsel %vm1348, %v3094, %v2429
      %v3127 = vsel %vm1348, %v3095, %v2431
      %v3128 = vsel %vm1348, %v3096, %v2433
      %v3129 = vsel %vm1348, %v3097, %v2435
      %v3130 = vsel %vm1348, %v3098, %v2437
      %v3131 = vsel %vm1348, %v3099, %v2439
      %v3132 = vsel %vm1348, %v3100, %v2441
      %v3133 = vsel %vm1348, %v3101, %v2443
      %v3134 = vsel %vm1348, %v3102, %v2445
      %v3135 = vsel %vm1348, %v3103, %v2447
      %v3136 = vsel %vm1348, %v3104, %v2449
      %v3137 = vsel %vm1348, %v3105, %v2451
      %v3138 = vsel %vm1348, %v3106, %v2453
      %v3139 = vsel %vm1348, %v3107, %v2455
      %v3140 = vsel %vm1348, %v3108, %v2457
      %v3141 = vsel %vm1348, %v3109, %v2459
      %v3142 = vsel %vm1348, %v3110, %v2461
      %v3143 = vsel %vm1348, %v3111, %v2463
      %v3144 = vsel %vm1348, %v3112, %v2465
      %v3145 = vsel %vm1348, %v3113, %v2467
      %v3146 = vsel %vm1348, %v3114, %v2469
      %v3147 = vsel %vm1348, %v3115, %v2471
      %v3148 = vsel %vm1348, %v3116, %v2473
      %v3149 = vsel %vm1348, %v3117, %v2475
      %v3150 = vsel %vm1348, %v3118, %v2477
      %v3151 = vsel %vm1348, %v3119, %v2479
      %v3152 = vsel %vm1381, %v3120, %v2513
      %v3153 = vsel %vm1381, %v3121, %v2515
      %v3154 = vsel %vm1381, %v3122, %v2517
      %v3155 = vsel %vm1381, %v3123, %v2519
      %v3156 = vsel %vm1381, %v3124, %v2521
      %v3157 = vsel %vm1381, %v3125, %v2523
      %v3158 = vsel %vm1381, %v3126, %v2525
      %v3159 = vsel %vm1381, %v3127, %v2527
      %v3160 = vsel %vm1381, %v3128, %v2529
      %v3161 = vsel %vm1381, %v3129, %v2531
      %v3162 = vsel %vm1381, %v3130, %v2533
      %v3163 = vsel %vm1381, %v3131, %v2535
      %v3164 = vsel %vm1381, %v3132, %v2537
      %v3165 = vsel %vm1381, %v3133, %v2539
      %v3166 = vsel %vm1381, %v3134, %v2541
      %v3167 = vsel %vm1381, %v3135, %v2543
      %v3168 = vsel %vm1381, %v3136, %v2545
      %v3169 = vsel %vm1381, %v3137, %v2547
      %v3170 = vsel %vm1381, %v3138, %v2549
      %v3171 = vsel %vm1381, %v3139, %v2551
      %v3172 = vsel %vm1381, %v3140, %v2553
      %v3173 = vsel %vm1381, %v3141, %v2555
      %v3174 = vsel %vm1381, %v3142, %v2557
      %v3175 = vsel %vm1381, %v3143, %v2559
      %v3176 = vsel %vm1381, %v3144, %v2561
      %v3177 = vsel %vm1381, %v3145, %v2563
      %v3178 = vsel %vm1381, %v3146, %v2565
      %v3179 = vsel %vm1381, %v3147, %v2567
      %v3180 = vsel %vm1381, %v3148, %v2569
      %v3181 = vsel %vm1381, %v3149, %v2571
      %v3182 = vsel %vm1381, %v3150, %v2573
      %v3183 = vsel %vm1381, %v3151, %v2575
      %v3184 = vsel %vm1414, %v3152, %v2609
      %v3185 = vsel %vm1414, %v3153, %v2611
      %v3186 = vsel %vm1414, %v3154, %v2613
      %v3187 = vsel %vm1414, %v3155, %v2615
      %v3188 = vsel %vm1414, %v3156, %v2617
      %v3189 = vsel %vm1414, %v3157, %v2619
      %v3190 = vsel %vm1414, %v3158, %v2621
      %v3191 = vsel %vm1414, %v3159, %v2623
      %v3192 = vsel %vm1414, %v3160, %v2625
      %v3193 = vsel %vm1414, %v3161, %v2627
      %v3194 = vsel %vm1414, %v3162, %v2629
      %v3195 = vsel %vm1414, %v3163, %v2631
      %v3196 = vsel %vm1414, %v3164, %v2633
      %v3197 = vsel %vm1414, %v3165, %v2635
      %v3198 = vsel %vm1414, %v3166, %v2637
      %v3199 = vsel %vm1414, %v3167, %v2639
      %v3200 = vsel %vm1414, %v3168, %v2641
      %v3201 = vsel %vm1414, %v3169, %v2643
      %v3202 = vsel %vm1414, %v3170, %v2645
      %v3203 = vsel %vm1414, %v3171, %v2647
      %v3204 = vsel %vm1414, %v3172, %v2649
      %v3205 = vsel %vm1414, %v3173, %v2651
      %v3206 = vsel %vm1414, %v3174, %v2653
      %v3207 = vsel %vm1414, %v3175, %v2655
      %v3208 = vsel %vm1414, %v3176, %v2657
      %v3209 = vsel %vm1414, %v3177, %v2659
      %v3210 = vsel %vm1414, %v3178, %v2661
      %v3211 = vsel %vm1414, %v3179, %v2663
      %v3212 = vsel %vm1414, %v3180, %v2665
      %v3213 = vsel %vm1414, %v3181, %v2667
      %v3214 = vsel %vm1414, %v3182, %v2669
      %v3215 = vsel %vm1414, %v3183, %v2671
      %v3216 = vsel %vm1447, %v3184, %v2705
      %v3217 = vsel %vm1447, %v3185, %v2707
      %v3218 = vsel %vm1447, %v3186, %v2709
      %v3219 = vsel %vm1447, %v3187, %v2711
      %v3220 = vsel %vm1447, %v3188, %v2713
      %v3221 = vsel %vm1447, %v3189, %v2715
      %v3222 = vsel %vm1447, %v3190, %v2717
      %v3223 = vsel %vm1447, %v3191, %v2719
      %v3224 = vsel %vm1447, %v3192, %v2721
      %v3225 = vsel %vm1447, %v3193, %v2723
      %v3226 = vsel %vm1447, %v3194, %v2725
      %v3227 = vsel %vm1447, %v3195, %v2727
      %v3228 = vsel %vm1447, %v3196, %v2729
      %v3229 = vsel %vm1447, %v3197, %v2731
      %v3230 = vsel %vm1447, %v3198, %v2733
      %v3231 = vsel %vm1447, %v3199, %v2735
      %v3232 = vsel %vm1447, %v3200, %v2737
      %v3233 = vsel %vm1447, %v3201, %v2739
      %v3234 = vsel %vm1447, %v3202, %v2741
      %v3235 = vsel %vm1447, %v3203, %v2743
      %v3236 = vsel %vm1447, %v3204, %v2745
      %v3237 = vsel %vm1447, %v3205, %v2747
      %v3238 = vsel %vm1447, %v3206, %v2749
      %v3239 = vsel %vm1447, %v3207, %v2751
      %v3240 = vsel %vm1447, %v3208, %v2753
      %v3241 = vsel %vm1447, %v3209, %v2755
      %v3242 = vsel %vm1447, %v3210, %v2757
      %v3243 = vsel %vm1447, %v3211, %v2759
      %v3244 = vsel %vm1447, %v3212, %v2761
      %v3245 = vsel %vm1447, %v3213, %v2763
      %v3246 = vsel %vm1447, %v3214, %v2765
      %v3247 = vsel %vm1447, %v3215, %v2767
      %v3248 = vsel %vm1480, %v3216, %v2801
      %v3249 = vsel %vm1480, %v3217, %v2803
      %v3250 = vsel %vm1480, %v3218, %v2805
      %v3251 = vsel %vm1480, %v3219, %v2807
      %v3252 = vsel %vm1480, %v3220, %v2809
      %v3253 = vsel %vm1480, %v3221, %v2811
      %v3254 = vsel %vm1480, %v3222, %v2813
      %v3255 = vsel %vm1480, %v3223, %v2815
      %v3256 = vsel %vm1480, %v3224, %v2817
      %v3257 = vsel %vm1480, %v3225, %v2819
      %v3258 = vsel %vm1480, %v3226, %v2821
      %v3259 = vsel %vm1480, %v3227, %v2823
      %v3260 = vsel %vm1480, %v3228, %v2825
      %v3261 = vsel %vm1480, %v3229, %v2827
      %v3262 = vsel %vm1480, %v3230, %v2829
      %v3263 = vsel %vm1480, %v3231, %v2831
      %v3264 = vsel %vm1480, %v3232, %v2833
      %v3265 = vsel %vm1480, %v3233, %v2835
      %v3266 = vsel %vm1480, %v3234, %v2837
      %v3267 = vsel %vm1480, %v3235, %v2839
      %v3268 = vsel %vm1480, %v3236, %v2841
      %v3269 = vsel %vm1480, %v3237, %v2843
      %v3270 = vsel %vm1480, %v3238, %v2845
      %v3271 = vsel %vm1480, %v3239, %v2847
      %v3272 = vsel %vm1480, %v3240, %v2849
      %v3273 = vsel %vm1480, %v3241, %v2851
      %v3274 = vsel %vm1480, %v3242, %v2853
      %v3275 = vsel %vm1480, %v3243, %v2855
      %v3276 = vsel %vm1480, %v3244, %v2857
      %v3277 = vsel %vm1480, %v3245, %v2859
      %v3278 = vsel %vm1480, %v3246, %v2861
      %v3279 = vsel %vm1480, %v3247, %v2863
      %v3280 = vsel %vm1513, %v3248, %v2897
      %v3281 = vsel %vm1513, %v3249, %v2899
      %v3282 = vsel %vm1513, %v3250, %v2901
      %v3283 = vsel %vm1513, %v3251, %v2903
      %v3284 = vsel %vm1513, %v3252, %v2905
      %v3285 = vsel %vm1513, %v3253, %v2907
      %v3286 = vsel %vm1513, %v3254, %v2909
      %v3287 = vsel %vm1513, %v3255, %v2911
      %v3288 = vsel %vm1513, %v3256, %v2913
      %v3289 = vsel %vm1513, %v3257, %v2915
      %v3290 = vsel %vm1513, %v3258, %v2917
      %v3291 = vsel %vm1513, %v3259, %v2919
      %v3292 = vsel %vm1513, %v3260, %v2921
      %v3293 = vsel %vm1513, %v3261, %v2923
      %v3294 = vsel %vm1513, %v3262, %v2925
      %v3295 = vsel %vm1513, %v3263, %v2927
      %v3296 = vsel %vm1513, %v3264, %v2929
      %v3297 = vsel %vm1513, %v3265, %v2931
      %v3298 = vsel %vm1513, %v3266, %v2933
      %v3299 = vsel %vm1513, %v3267, %v2935
      %v3300 = vsel %vm1513, %v3268, %v2937
      %v3301 = vsel %vm1513, %v3269, %v2939
      %v3302 = vsel %vm1513, %v3270, %v2941
      %v3303 = vsel %vm1513, %v3271, %v2943
      %v3304 = vsel %vm1513, %v3272, %v2945
      %v3305 = vsel %vm1513, %v3273, %v2947
      %v3306 = vsel %vm1513, %v3274, %v2949
      %v3307 = vsel %vm1513, %v3275, %v2951
      %v3308 = vsel %vm1513, %v3276, %v2953
      %v3309 = vsel %vm1513, %v3277, %v2955
      %v3310 = vsel %vm1513, %v3278, %v2957
      %v3311 = vsel %vm1513, %v3279, %v2959
      %v3312 = vsel %vm1546, %v3280, %v2993
      %v3313 = vsel %vm1546, %v3281, %v2995
      %v3314 = vsel %vm1546, %v3282, %v2997
      %v3315 = vsel %vm1546, %v3283, %v2999
      %v3316 = vsel %vm1546, %v3284, %v3001
      %v3317 = vsel %vm1546, %v3285, %v3003
      %v3318 = vsel %vm1546, %v3286, %v3005
      %v3319 = vsel %vm1546, %v3287, %v3007
      %v3320 = vsel %vm1546, %v3288, %v3009
      %v3321 = vsel %vm1546, %v3289, %v3011
      %v3322 = vsel %vm1546, %v3290, %v3013
      %v3323 = vsel %vm1546, %v3291, %v3015
      %v3324 = vsel %vm1546, %v3292, %v3017
      %v3325 = vsel %vm1546, %v3293, %v3019
      %v3326 = vsel %vm1546, %v3294, %v3021
      %v3327 = vsel %vm1546, %v3295, %v3023
      %v3328 = vsel %vm1546, %v3296, %v3025
      %v3329 = vsel %vm1546, %v3297, %v3027
      %v3330 = vsel %vm1546, %v3298, %v3029
      %v3331 = vsel %vm1546, %v3299, %v3031
      %v3332 = vsel %vm1546, %v3300, %v3033
      %v3333 = vsel %vm1546, %v3301, %v3035
      %v3334 = vsel %vm1546, %v3302, %v3037
      %v3335 = vsel %vm1546, %v3303, %v3039
      %v3336 = vsel %vm1546, %v3304, %v3041
      %v3337 = vsel %vm1546, %v3305, %v3043
      %v3338 = vsel %vm1546, %v3306, %v3045
      %v3339 = vsel %vm1546, %v3307, %v3047
      %v3340 = vsel %vm1546, %v3308, %v3049
      %v3341 = vsel %vm1546, %v3309, %v3051
      %v3342 = vsel %vm1546, %v3310, %v3053
      %v3343 = vsel %vm1546, %v3311, %v3055
      %v3344 = vld [vmem:[%s3] sm:$0xff]
      %v3345 = vld [vmem:[%s3 + $0x8] sm:$0xff]
      %v3346 = vld [vmem:[%s3 + $0x10] sm:$0xff]
      %v3347 = vld [vmem:[%s3 + $0x18] sm:$0xff]
      %v3348 = vld [vmem:[%s3 + $0x20] sm:$0xf]
      %v3349 = vld [vmem:[%s4] sm:$0x1]
      %v3351 = vlaneseq
      %v3352 = vshrl.u32 %v3351, 7
      %v3353 = vsub.s32 0, %v3352
      %v3354 = vrot.slane %v3349, %v3353
      %v3357 = vsel %vm1591, %v3312, 0
      %v3360 = vsel %vm1591, %v3313, 0
      %v3363 = vsel %vm1591, %v3314, 0
      %v3366 = vsel %vm1591, %v3315, 0
      %v3369 = vsel %vm1591, %v3316, 0
      %v3372 = vsel %vm1591, %v3317, 0
      %v3375 = vsel %vm1591, %v3318, 0
      %v3378 = vsel %vm1591, %v3319, 0
      %v3381 = vsel %vm1591, %v3320, 0
      %v3384 = vsel %vm1591, %v3321, 0
      %v3387 = vsel %vm1591, %v3322, 0
      %v3390 = vsel %vm1591, %v3323, 0
      %v3393 = vsel %vm1591, %v3324, 0
      %v3396 = vsel %vm1591, %v3325, 0
      %v3399 = vsel %vm1591, %v3326, 0
      %v3402 = vsel %vm1591, %v3327, 0
      %v3405 = vsel %vm1591, %v3328, 0
      %v3408 = vsel %vm1591, %v3329, 0
      %v3411 = vsel %vm1591, %v3330, 0
      %v3414 = vsel %vm1591, %v3331, 0
      %v3417 = vsel %vm1591, %v3332, 0
      %v3420 = vsel %vm1591, %v3333, 0
      %v3423 = vsel %vm1591, %v3334, 0
      %v3426 = vsel %vm1591, %v3335, 0
      %v3429 = vsel %vm1591, %v3336, 0
      %v3432 = vsel %vm1591, %v3337, 0
      %v3435 = vsel %vm1591, %v3338, 0
      %v3438 = vsel %vm1591, %v3339, 0
      %v3441 = vsel %vm1591, %v3340, 0
      %v3444 = vsel %vm1591, %v3341, 0
      %v3447 = vsel %vm1591, %v3342, 0
      %v3450 = vsel %vm1591, %v3343, 0
      %v3453 = vsel %vm1688, %v3348, 0
      %3455 = vmatprep.subr.mxu0 0.0
      %3456 = vmatpush1.msra.mxu0 %v3344
      %3457 = vmatprep.subr.mxu0 0.0
      %3458 = vmatpush1.msra.mxu0 %v3345
      %3459 = vmatprep.subr.mxu0 0.0
      %3460 = vmatpush1.msra.mxu0 %v3346
      %3461 = vmatprep.subr.mxu0 0.0
      %3462 = vmatpush1.msra.mxu0 %v3347
      %3463 = vmatprep.subr.mxu0 0.0
      %3464 = vmatpush1.msra.mxu0 %v3453
      %3465 = vmatprep.subr.mxu0 0.0
      %3466 = vmatpush1.msra.mxu0 0.0
      %3467 = vmatprep.subr.mxu0 0.0
      %3468 = vmatpush1.msra.mxu0 0.0
      %3469 = vmatprep.subr.mxu0 0.0
      %3470 = vmatpush1.msra.mxu0 0.0
      %3471 = vmatprep.subr.mxu0 0.0
      %3472 = vmatpush1.msra.mxu0 0.0
      %3473 = vmatprep.subr.mxu0 0.0
      %3474 = vmatpush1.msra.mxu0 0.0
      %3475 = vmatprep.subr.mxu0 0.0
      %3476 = vmatpush1.msra.mxu0 0.0
      %3477 = vmatprep.subr.mxu0 0.0
      %3478 = vmatpush1.msra.mxu0 0.0
      %3479 = vmatprep.subr.mxu0 0.0
      %3480 = vmatpush1.msra.mxu0 0.0
      %3481 = vmatprep.subr.mxu0 0.0
      %3482 = vmatpush1.msra.mxu0 0.0
      %3483 = vmatprep.subr.mxu0 0.0
      %3484 = vmatpush1.msra.mxu0 0.0
      %3485 = vmatprep.subr.mxu0 0.0
      %3486 = vmatpush1.msra.mxu0 0.0
      %3487 = vmatprep.subr.mxu0 0.0
      %3488 = vmatpush1.msra.mxu0 0.0
      %3489 = vmatprep.subr.mxu0 0.0
      %3490 = vmatpush1.msra.mxu0 0.0
      %3491 = vmatprep.subr.mxu0 0.0
      %3492 = vmatpush1.msra.mxu0 0.0
      %3493 = vmatprep.subr.mxu0 0.0
      %3494 = vmatpush1.msra.mxu0 0.0
      %3495 = vmatprep.subr.mxu0 0.0
      %3496 = vmatpush1.msra.mxu0 0.0
      %3497 = vmatprep.subr.mxu0 0.0
      %3498 = vmatpush1.msra.mxu0 0.0
      %3499 = vmatprep.subr.mxu0 0.0
      %3500 = vmatpush1.msra.mxu0 0.0
      %3501 = vmatprep.subr.mxu0 0.0
      %3502 = vmatpush1.msra.mxu0 0.0
      %3503 = vmatprep.subr.mxu0 0.0
      %3504 = vmatpush1.msra.mxu0 0.0
      %3505 = vmatprep.subr.mxu0 0.0
      %3506 = vmatpush1.msra.mxu0 0.0
      %3507 = vmatprep.subr.mxu0 0.0
      %3508 = vmatpush1.msra.mxu0 0.0
      %3509 = vmatprep.subr.mxu0 0.0
      %3510 = vmatpush1.msra.mxu0 0.0
      %3511 = vmatprep.subr.mxu0 0.0
      %3512 = vmatpush1.msra.mxu0 0.0
      %3513 = vmatprep.subr.mxu0 0.0
      %3514 = vmatpush1.msra.mxu0 0.0
      %3515 = vmatprep.subr.mxu0 0.0
      %3516 = vmatpush1.msra.mxu0 0.0
      %3517 = vmatprep.subr.mxu0 0.0
      %3518 = vmatpush1.msra.mxu0 0.0
      %3519 = vmatprep.mubr.f32.mxu0 0.0
      %3520 = vmatmul.mubr.f32.gmra.mrb[0].mxu0 %v3357
      %v3521 = vpop.f32.mrb[0].mxu0
      %v3522 = vadd.f32 %v3354, %v3521
      %v3523 = vpop.f32.mrb[0].mxu0
      %3524 = vmatprep.mubr.f32.mxu0 0.0
      %3525 = vmatmul.mubr.f32.gmra.mrb[0].mxu0 %v3360
      %v3526 = vpop.f32.mrb[0].mxu0
      %v3527 = vadd.f32 %v3354, %v3526
      %v3528 = vpop.f32.mrb[0].mxu0
      %3529 = vmatprep.mubr.f32.mxu0 0.0
      %3530 = vmatmul.mubr.f32.gmra.mrb[0].mxu0 %v3363
      %v3531 = vpop.f32.mrb[0].mxu0
      %v3532 = vadd.f32 %v3354, %v3531
      %v3533 = vpop.f32.mrb[0].mxu0
      %3534 = vmatprep.mubr.f32.mxu0 0.0
      %3535 = vmatmul.mubr.f32.gmra.mrb[0].mxu0 %v3366
      %v3536 = vpop.f32.mrb[0].mxu0
      %v3537 = vadd.f32 %v3354, %v3536
      %v3538 = vpop.f32.mrb[0].mxu0
      %3539 = vmatprep.mubr.f32.mxu0 0.0
      %3540 = vmatmul.mubr.f32.gmra.mrb[0].mxu0 %v3369
      %v3541 = vpop.f32.mrb[0].mxu0
      %v3542 = vadd.f32 %v3354, %v3541
      %v3543 = vpop.f32.mrb[0].mxu0
      %3544 = vmatprep.mubr.f32.mxu0 0.0
      %3545 = vmatmul.mubr.f32.gmra.mrb[0].mxu0 %v3372
      %v3546 = vpop.f32.mrb[0].mxu0
      %v3547 = vadd.f32 %v3354, %v3546
      %v3548 = vpop.f32.mrb[0].mxu0
      %3549 = vmatprep.mubr.f32.mxu0 0.0
      %3550 = vmatmul.mubr.f32.gmra.mrb[0].mxu0 %v3375
      %v3551 = vpop.f32.mrb[0].mxu0
      %v3552 = vadd.f32 %v3354, %v3551
      %v3553 = vpop.f32.mrb[0].mxu0
      %3554 = vmatprep.mubr.f32.mxu0 0.0
      %3555 = vmatmul.mubr.f32.gmra.mrb[0].mxu0 %v3378
      %v3556 = vpop.f32.mrb[0].mxu0
      %v3557 = vadd.f32 %v3354, %v3556
      %v3558 = vpop.f32.mrb[0].mxu0
      %3559 = vmatprep.mubr.f32.mxu0 0.0
      %3560 = vmatmul.mubr.f32.gmra.mrb[0].mxu0 %v3381
      %v3561 = vpop.f32.mrb[0].mxu0
      %v3562 = vadd.f32 %v3354, %v3561
      %v3563 = vpop.f32.mrb[0].mxu0
      %3564 = vmatprep.mubr.f32.mxu0 0.0
      %3565 = vmatmul.mubr.f32.gmra.mrb[0].mxu0 %v3384
      %v3566 = vpop.f32.mrb[0].mxu0
      %v3567 = vadd.f32 %v3354, %v3566
      %v3568 = vpop.f32.mrb[0].mxu0
      %3569 = vmatprep.mubr.f32.mxu0 0.0
      %3570 = vmatmul.mubr.f32.gmra.mrb[0].mxu0 %v3387
      %v3571 = vpop.f32.mrb[0].mxu0
      %v3572 = vadd.f32 %v3354, %v3571
      %v3573 = vpop.f32.mrb[0].mxu0
      %3574 = vmatprep.mubr.f32.mxu0 0.0
      %3575 = vmatmul.mubr.f32.gmra.mrb[0].mxu0 %v3390
      %v3576 = vpop.f32.mrb[0].mxu0
      %v3577 = vadd.f32 %v3354, %v3576
      %v3578 = vpop.f32.mrb[0].mxu0
      %3579 = vmatprep.mubr.f32.mxu0 0.0
      %3580 = vmatmul.mubr.f32.gmra.mrb[0].mxu0 %v3393
      %v3581 = vpop.f32.mrb[0].mxu0
      %v3582 = vadd.f32 %v3354, %v3581
      %v3583 = vpop.f32.mrb[0].mxu0
      %3584 = vmatprep.mubr.f32.mxu0 0.0
      %3585 = vmatmul.mubr.f32.gmra.mrb[0].mxu0 %v3396
      %v3586 = vpop.f32.mrb[0].mxu0
      %v3587 = vadd.f32 %v3354, %v3586
      %v3588 = vpop.f32.mrb[0].mxu0
      %3589 = vmatprep.mubr.f32.mxu0 0.0
      %3590 = vmatmul.mubr.f32.gmra.mrb[0].mxu0 %v3399
      %v3591 = vpop.f32.mrb[0].mxu0
      %v3592 = vadd.f32 %v3354, %v3591
      %v3593 = vpop.f32.mrb[0].mxu0
      %3594 = vmatprep.mubr.f32.mxu0 0.0
      %3595 = vmatmul.mubr.f32.gmra.mrb[0].mxu0 %v3402
      %v3596 = vpop.f32.mrb[0].mxu0
      %v3597 = vadd.f32 %v3354, %v3596
      %v3598 = vpop.f32.mrb[0].mxu0
      %3599 = vmatprep.mubr.f32.mxu0 0.0
      %3600 = vmatmul.mubr.f32.gmra.mrb[0].mxu0 %v3405
      %v3601 = vpop.f32.mrb[0].mxu0
      %v3602 = vadd.f32 %v3354, %v3601
      %v3603 = vpop.f32.mrb[0].mxu0
      %3604 = vmatprep.mubr.f32.mxu0 0.0
      %3605 = vmatmul.mubr.f32.gmra.mrb[0].mxu0 %v3408
      %v3606 = vpop.f32.mrb[0].mxu0
      %v3607 = vadd.f32 %v3354, %v3606
      %v3608 = vpop.f32.mrb[0].mxu0
      %3609 = vmatprep.mubr.f32.mxu0 0.0
      %3610 = vmatmul.mubr.f32.gmra.mrb[0].mxu0 %v3411
      %v3611 = vpop.f32.mrb[0].mxu0
      %v3612 = vadd.f32 %v3354, %v3611
      %v3613 = vpop.f32.mrb[0].mxu0
      %3614 = vmatprep.mubr.f32.mxu0 0.0
      %3615 = vmatmul.mubr.f32.gmra.mrb[0].mxu0 %v3414
      %v3616 = vpop.f32.mrb[0].mxu0
      %v3617 = vadd.f32 %v3354, %v3616
      %v3618 = vpop.f32.mrb[0].mxu0
      %3619 = vmatprep.mubr.f32.mxu0 0.0
      %3620 = vmatmul.mubr.f32.gmra.mrb[0].mxu0 %v3417
      %v3621 = vpop.f32.mrb[0].mxu0
      %v3622 = vadd.f32 %v3354, %v3621
      %v3623 = vpop.f32.mrb[0].mxu0
      %3624 = vmatprep.mubr.f32.mxu0 0.0
      %3625 = vmatmul.mubr.f32.gmra.mrb[0].mxu0 %v3420
      %v3626 = vpop.f32.mrb[0].mxu0
      %v3627 = vadd.f32 %v3354, %v3626
      %v3628 = vpop.f32.mrb[0].mxu0
      %3629 = vmatprep.mubr.f32.mxu0 0.0
      %3630 = vmatmul.mubr.f32.gmra.mrb[0].mxu0 %v3423
      %v3631 = vpop.f32.mrb[0].mxu0
      %v3632 = vadd.f32 %v3354, %v3631
      %v3633 = vpop.f32.mrb[0].mxu0
      %3634 = vmatprep.mubr.f32.mxu0 0.0
      %3635 = vmatmul.mubr.f32.gmra.mrb[0].mxu0 %v3426
      %v3636 = vpop.f32.mrb[0].mxu0
      %v3637 = vadd.f32 %v3354, %v3636
      %v3638 = vpop.f32.mrb[0].mxu0
      %3639 = vmatprep.mubr.f32.mxu0 0.0
      %3640 = vmatmul.mubr.f32.gmra.mrb[0].mxu0 %v3429
      %v3641 = vpop.f32.mrb[0].mxu0
      %v3642 = vadd.f32 %v3354, %v3641
      %v3643 = vpop.f32.mrb[0].mxu0
      %3644 = vmatprep.mubr.f32.mxu0 0.0
      %3645 = vmatmul.mubr.f32.gmra.mrb[0].mxu0 %v3432
      %v3646 = vpop.f32.mrb[0].mxu0
      %v3647 = vadd.f32 %v3354, %v3646
      %v3648 = vpop.f32.mrb[0].mxu0
      %3649 = vmatprep.mubr.f32.mxu0 0.0
      %3650 = vmatmul.mubr.f32.gmra.mrb[0].mxu0 %v3435
      %v3651 = vpop.f32.mrb[0].mxu0
      %v3652 = vadd.f32 %v3354, %v3651
      %v3653 = vpop.f32.mrb[0].mxu0
      %3654 = vmatprep.mubr.f32.mxu0 0.0
      %3655 = vmatmul.mubr.f32.gmra.mrb[0].mxu0 %v3438
      %v3656 = vpop.f32.mrb[0].mxu0
      %v3657 = vadd.f32 %v3354, %v3656
      %v3658 = vpop.f32.mrb[0].mxu0
      %3659 = vmatprep.mubr.f32.mxu0 0.0
      %3660 = vmatmul.mubr.f32.gmra.mrb[0].mxu0 %v3441
      %v3661 = vpop.f32.mrb[0].mxu0
      %v3662 = vadd.f32 %v3354, %v3661
      %v3663 = vpop.f32.mrb[0].mxu0
      %3664 = vmatprep.mubr.f32.mxu0 0.0
      %3665 = vmatmul.mubr.f32.gmra.mrb[0].mxu0 %v3444
      %v3666 = vpop.f32.mrb[0].mxu0
      %v3667 = vadd.f32 %v3354, %v3666
      %v3668 = vpop.f32.mrb[0].mxu0
      %3669 = vmatprep.mubr.f32.mxu0 0.0
      %3670 = vmatmul.mubr.f32.gmra.mrb[0].mxu0 %v3447
      %v3671 = vpop.f32.mrb[0].mxu0
      %v3672 = vadd.f32 %v3354, %v3671
      %v3673 = vpop.f32.mrb[0].mxu0
      %3674 = vmatprep.mubr.f32.mxu0 0.0
      %3675 = vmatmul.mubr.f32.gmra.mrb[0].mxu0 %v3450
      %v3676 = vpop.f32.mrb[0].mxu0
      %v3677 = vadd.f32 %v3354, %v3676
      %v3678 = vpop.f32.mrb[0].mxu0
      %3679 = vdwg.mxu0
      %v3680 = vmul.f32 %v3522, 0.1
      %v3681 = vmul.f32 %v3527, 0.1
      %v3682 = vmul.f32 %v3532, 0.1
      %v3683 = vmul.f32 %v3537, 0.1
      %v3684 = vmul.f32 %v3542, 0.1
      %v3685 = vmul.f32 %v3547, 0.1
      %v3686 = vmul.f32 %v3552, 0.1
      %v3687 = vmul.f32 %v3557, 0.1
      %v3688 = vmul.f32 %v3562, 0.1
      %v3689 = vmul.f32 %v3567, 0.1
      %v3690 = vmul.f32 %v3572, 0.1
      %v3691 = vmul.f32 %v3577, 0.1
      %v3692 = vmul.f32 %v3582, 0.1
      %v3693 = vmul.f32 %v3587, 0.1
      %v3694 = vmul.f32 %v3592, 0.1
      %v3695 = vmul.f32 %v3597, 0.1
      %v3696 = vmul.f32 %v3602, 0.1
      %v3697 = vmul.f32 %v3607, 0.1
      %v3698 = vmul.f32 %v3612, 0.1
      %v3699 = vmul.f32 %v3617, 0.1
      %v3700 = vmul.f32 %v3622, 0.1
      %v3701 = vmul.f32 %v3627, 0.1
      %v3702 = vmul.f32 %v3632, 0.1
      %v3703 = vmul.f32 %v3637, 0.1
      %v3704 = vmul.f32 %v3642, 0.1
      %v3705 = vmul.f32 %v3647, 0.1
      %v3706 = vmul.f32 %v3652, 0.1
      %v3707 = vmul.f32 %v3657, 0.1
      %v3708 = vmul.f32 %v3662, 0.1
      %v3709 = vmul.f32 %v3667, 0.1
      %v3710 = vmul.f32 %v3672, 0.1
      %v3711 = vmul.f32 %v3677, 0.1
      %v3712 = vadd.f32 %v335, %v3680
      %v3713 = vadd.f32 %v337, %v3681
      %v3714 = vadd.f32 %v340, %v3682
      %v3715 = vadd.f32 %v342, %v3683
      %v3716 = vadd.f32 %v345, %v3684
      %v3717 = vadd.f32 %v347, %v3685
      %v3718 = vadd.f32 %v350, %v3686
      %v3719 = vadd.f32 %v352, %v3687
      %v3720 = vadd.f32 %v355, %v3688
      %v3721 = vadd.f32 %v357, %v3689
      %v3722 = vadd.f32 %v360, %v3690
      %v3723 = vadd.f32 %v362, %v3691
      %v3724 = vadd.f32 %v365, %v3692
      %v3725 = vadd.f32 %v367, %v3693
      %v3726 = vadd.f32 %v370, %v3694
      %v3727 = vadd.f32 %v372, %v3695
      %v3728 = vadd.f32 %v375, %v3696
      %v3729 = vadd.f32 %v377, %v3697
      %v3730 = vadd.f32 %v380, %v3698
      %v3731 = vadd.f32 %v382, %v3699
      %v3732 = vadd.f32 %v385, %v3700
      %v3733 = vadd.f32 %v387, %v3701
      %v3734 = vadd.f32 %v390, %v3702
      %v3735 = vadd.f32 %v392, %v3703
      %v3736 = vadd.f32 %v395, %v3704
      %v3737 = vadd.f32 %v397, %v3705
      %v3738 = vadd.f32 %v400, %v3706
      %v3739 = vadd.f32 %v402, %v3707
      %v3740 = vadd.f32 %v405, %v3708
      %v3741 = vadd.f32 %v407, %v3709
      %v3742 = vadd.f32 %v494, %v3710
      %v3743 = vadd.f32 %v496, %v3711
      %3744 = vst.msk [vmem:[%s224] sm:$0xff] %vm1315, %v3712
      %3745 = vst.msk [vmem:[%s224 + $0x8] sm:$0xff] %vm1315, %v3713
      %3746 = vst.msk [vmem:[%s224 + $0x10] sm:$0xff] %vm1315, %v3714
      %3747 = vst.msk [vmem:[%s224 + $0x18] sm:$0xff] %vm1315, %v3715
      %3748 = vst.msk [vmem:[%s224 + $0x20] sm:$0xff] %vm1315, %v3716
      %3749 = vst.msk [vmem:[%s224 + $0x28] sm:$0xff] %vm1315, %v3717
      %3750 = vst.msk [vmem:[%s224 + $0x30] sm:$0xff] %vm1315, %v3718
      %3751 = vst.msk [vmem:[%s224 + $0x38] sm:$0xff] %vm1315, %v3719
      %3752 = vst.msk [vmem:[%s224 + $0x40] sm:$0xff] %vm1315, %v3720
      %3753 = vst.msk [vmem:[%s224 + $0x48] sm:$0xff] %vm1315, %v3721
      %3754 = vst.msk [vmem:[%s224 + $0x50] sm:$0xff] %vm1315, %v3722
      %3755 = vst.msk [vmem:[%s224 + $0x58] sm:$0xff] %vm1315, %v3723
      %3756 = vst.msk [vmem:[%s224 + $0x60] sm:$0xff] %vm1315, %v3724
      %3757 = vst.msk [vmem:[%s224 + $0x68] sm:$0xff] %vm1315, %v3725
      %3758 = vst.msk [vmem:[%s224 + $0x70] sm:$0xff] %vm1315, %v3726
      %3759 = vst.msk [vmem:[%s224 + $0x78] sm:$0xff] %vm1315, %v3727
      %3760 = vst.msk [vmem:[%s224 + $0x80] sm:$0xff] %vm1315, %v3728
      %3761 = vst.msk [vmem:[%s224 + $0x88] sm:$0xff] %vm1315, %v3729
      %3762 = vst.msk [vmem:[%s224 + $0x90] sm:$0xff] %vm1315, %v3730
      %3763 = vst.msk [vmem:[%s224 + $0x98] sm:$0xff] %vm1315, %v3731
      %3764 = vst.msk [vmem:[%s224 + $0xa0] sm:$0xff] %vm1315, %v3732
      %3765 = vst.msk [vmem:[%s224 + $0xa8] sm:$0xff] %vm1315, %v3733
      %3766 = vst.msk [vmem:[%s224 + $0xb0] sm:$0xff] %vm1315, %v3734
      %3767 = vst.msk [vmem:[%s224 + $0xb8] sm:$0xff] %vm1315, %v3735
      %3768 = vst.msk [vmem:[%s224 + $0xc0] sm:$0xff] %vm1315, %v3736
      %3769 = vst.msk [vmem:[%s224 + $0xc8] sm:$0xff] %vm1315, %v3737
      %3770 = vst.msk [vmem:[%s224 + $0xd0] sm:$0xff] %vm1315, %v3738
      %3771 = vst.msk [vmem:[%s224 + $0xd8] sm:$0xff] %vm1315, %v3739
      %3772 = vst.msk [vmem:[%s224 + $0xe0] sm:$0xff] %vm1315, %v3740
      %3773 = vst.msk [vmem:[%s224 + $0xe8] sm:$0xff] %vm1315, %v3741
      %3774 = vst.msk [vmem:[%s224 + $0xf0] sm:$0xff] %vm1315, %v3742
      %3775 = vst.msk [vmem:[%s224 + $0xf8] sm:$0xff] %vm1315, %v3743
      %p3776 = scmp.lt.s32.totalorder %s16, 1
      %s3777 = scalar_select %p3776, %s16, 1
      %s3778 = smul.addr %s3777, 32
      %s3779 = smul.addr %s3778, 8
      %s3780 = scalar_lea.vmem %s5, %s3779
      // Predicated region
      $region41: #{tpu_custom_call.1} parent=39 // pred_check
        %p3781 = pneg %p144
      $region42: #{tpu_custom_call.1} parent=39 // pred_check_branch
        %3783 = sbr.rel (%p3781) target = $region44
      $region43: #{tpu_custom_call.1} parent=39 // pred_region
        _
      $region44: #{tpu_custom_call.1} parent=39 // pred_fallthru
        _
    $region40: #{tpu_custom_call.1} parent=5 // pred_fallthru
      _
    %p3784 = scmp.le.s32.totalorder 2, %s11
    // Predicated region
    $region45: #{tpu_custom_call.1} parent=5 // pred_check
      %p3785 = pneg %p3784
    $region46: #{tpu_custom_call.1} parent=5 // pred_check_branch
      %3787 = sbr.rel (%p3785) target = $region48
    $region47: #{tpu_custom_call.1} parent=5 // pred_region
      %s3788 = ssub.s32 %s11, 2
      // Predicated region
      $region49: #{tpu_custom_call.1} parent=47 // pred_check
        %p3789 = pneg %p150
      $region50: #{tpu_custom_call.1} parent=47 // pred_check_branch
        %3791 = sbr.rel (%p3789) target = $region52
      $region51: #{tpu_custom_call.1} parent=47 // pred_region
        %p3792 = scmp.lt.s32.totalorder %s17, 1
        %s3793 = scalar_select %p3792, %s17, 1
        %s3794 = smul.addr %s3793, 32
        %s3795 = smul.addr %s3794, 8
        %s3796 = scalar_lea.vmem %s5, %s3795
      $region52: #{tpu_custom_call.1} parent=47 // pred_fallthru
        _
    $region48: #{tpu_custom_call.1} parent=5 // pred_fallthru
      _
  $region6: #{tpu_custom_call.1} parent=0 // loop_footer
    %s15 = sadd.s32 1, %s11
  $region7: #{tpu_custom_call.1} parent=0 // loop_footer_branch
    %10 = sbr.rel target = $region3
  $region8: #{tpu_custom_call.1} parent=0 // loop_exit
    _

</llo_original>
